<compile_context>
chip_gen: v7x
topology: tpu7x:2x2x1
jax: 0.10.0
libtpu: 0.0.40
codegen_flags: <defaults>
</compile_context>

<pallas_src>
import jax
import jax.numpy as jnp
from jax.experimental import pallas as pl
from jax.experimental.pallas import tpu as pltpu

IMG_SIZE = 28
LEN_Z = 100
N_CHANNEL = 1
BN_EPS = 0.8          # from the (buggy) positional-arg call in the reference
LEAKY_SLOPE = 0.2

LAYER_DIMS = [LEN_Z, 128, 256, 512, 1024, N_CHANNEL * IMG_SIZE * IMG_SIZE]
OUT_DIM = LAYER_DIMS[-1]            # 784
HEAD_CHUNK = 128                    # lane width of one output-head slab
N_HEAD_CHUNKS = 7                   # 7 * 128 = 896 padded output columns
OUT_PAD = HEAD_CHUNK * N_HEAD_CHUNKS
Z_PAD = 128                         # block-1 contraction dim, padded 100 -> 128

# Packed small-vector layout: b1, b2, g2, be2, b3, g3, be3, b4, g4, be4, b5(pad)
# All offsets are multiples of 128 -> every slice is a lane-aligned load.
_VEC_SIZES = [128, 256, 256, 256, 512, 512, 512, 1024, 1024, 1024, OUT_PAD]
_VEC_OFFS = [0]
for _s in _VEC_SIZES:
    _VEC_OFFS.append(_VEC_OFFS[-1] + _s)
VEC_TOTAL = _VEC_OFFS[-1]           # 6400 (= 50 * 128)


def _leaky_relu(x, slope=LEAKY_SLOPE):
    return jnp.where(x > 0, x, slope * x)


def _batchnorm_train(x, gamma, beta, eps=BN_EPS):
    # Training-mode BatchNorm1d: batch mean + biased batch variance,
    # folded into a single scale/shift.
    mean = jnp.mean(x, axis=0, keepdims=True)
    var = jnp.mean((x - mean) ** 2, axis=0, keepdims=True)
    scale = gamma * jax.lax.rsqrt(var + eps)
    shift = beta - mean * scale
    return x * scale + shift


def generator_kernel(z_ref, vec_ref,
                     w1_ref, w2_ref, w3_ref,
                     w4_hbm, w5_hbm,
                     out_ref,
                     w4_buf, w5_buf, dma_sem):
    # Kick off the big-weight DMAs immediately: w4 first (needed first), then
    # the 7 contiguous w5 column slabs so the output head can start as soon as
    # slab 0 lands instead of after all of w5.
    cp4 = pltpu.make_async_copy(w4_hbm, w4_buf, dma_sem.at[0])
    cp4.start()
    cp5 = [pltpu.make_async_copy(w5_hbm.at[c], w5_buf.at[c], dma_sem.at[1 + c])
           for c in range(N_HEAD_CHUNKS)]
    for c in range(N_HEAD_CHUNKS):
        cp5[c].start()

    o = _VEC_OFFS  # lazy Ref slices below; never materialize the whole vector

    # Block 1: Linear(100->128, K zero-padded to 128) + LeakyReLU (no BN)
    h = jnp.dot(z_ref[...].astype(jnp.bfloat16), w1_ref[...],
                preferred_element_type=jnp.float32) + vec_ref[:, o[0]:o[1]]
    h = _leaky_relu(h)

    # Block 2: Linear(128->256) + BN + LeakyReLU
    h = jnp.dot(h.astype(jnp.bfloat16), w2_ref[...],
                preferred_element_type=jnp.float32) + vec_ref[:, o[1]:o[2]]
    h = _leaky_relu(_batchnorm_train(h, vec_ref[:, o[2]:o[3]],
                                     vec_ref[:, o[3]:o[4]]))

    # Block 3: Linear(256->512) + BN + LeakyReLU
    h = jnp.dot(h.astype(jnp.bfloat16), w3_ref[...],
                preferred_element_type=jnp.float32) + vec_ref[:, o[4]:o[5]]
    h = _leaky_relu(_batchnorm_train(h, vec_ref[:, o[5]:o[6]],
                                     vec_ref[:, o[6]:o[7]]))

    # Block 4: Linear(512->1024) + BN + LeakyReLU (manually prefetched w4)
    cp4.wait()
    h = jnp.dot(h.astype(jnp.bfloat16), w4_buf[...],
                preferred_element_type=jnp.float32) + vec_ref[:, o[7]:o[8]]
    h = _leaky_relu(_batchnorm_train(h, vec_ref[:, o[8]:o[9]],
                                     vec_ref[:, o[9]:o[10]]))
    h = h.astype(jnp.bfloat16)  # cast once, reused by all head slabs

    # Output head: Linear(1024 -> 896 padded) + Tanh, one 128-wide slab at a
    # time, each computed as soon as its w5 slab's DMA completes.
    for c in range(N_HEAD_CHUNKS):
        cp5[c].wait()
        col = jnp.dot(h, w5_buf[c], preferred_element_type=jnp.float32)
        col = col + vec_ref[:, o[10] + c * HEAD_CHUNK:
                            o[10] + (c + 1) * HEAD_CHUNK]
        out_ref[:, c * HEAD_CHUNK:(c + 1) * HEAD_CHUNK] = jnp.tanh(col)


def init_params(key):
    """Deterministic PyTorch-style init: U(-1/sqrt(fan_in), 1/sqrt(fan_in))."""
    params = []
    for i in range(5):
        fan_in, fan_out = LAYER_DIMS[i], LAYER_DIMS[i + 1]
        key, kw, kb = jax.random.split(key, 3)
        bound = 1.0 / jnp.sqrt(fan_in)
        # Stored already transposed to (in, out) so the kernel does x @ W.
        w = jax.random.uniform(kw, (fan_in, fan_out), jnp.float32, -bound, bound)
        b = jax.random.uniform(kb, (1, fan_out), jnp.float32, -bound, bound)
        params.append((w, b))
    # BatchNorm affine params (gamma=1, beta=0) for blocks 2..4
    bn_params = [(jnp.ones((1, LAYER_DIMS[i + 1]), jnp.float32),
                  jnp.zeros((1, LAYER_DIMS[i + 1]), jnp.float32))
                 for i in range(1, 4)]
    return params, bn_params


def prepare_params(params, bn_params):
    """ONE-TIME packing (hoisted out of the per-call forward path).

    bf16 casts, block-1 K padding 100->128, head padding 784->896, w5 slab
    re-layout, and the bias/BN concat all happen here exactly once, so each
    forward call only streams the ~3.3 MB of packed bf16 weights.
    """
    (w1, b1), (w2, b2), (w3, b3), (w4, b4), (w5, b5) = params
    (g2, be2), (g3, be3), (g4, be4) = bn_params

    # Block 1: pad contraction dim to 128 (zero weight rows x zero z cols).
    w1p = jnp.pad(w1, ((0, Z_PAD - LEN_Z), (0, 0))).astype(jnp.bfloat16)
    w2b = w2.astype(jnp.bfloat16)
    w3b = w3.astype(jnp.bfloat16)
    w4b = w4.astype(jnp.bfloat16)

    # Output head: pad 784 -> 896 lane-dense columns, then reorganize into 7
    # contiguous (1024, 128) slabs so each per-slab DMA is a contiguous read.
    w5p = jnp.pad(w5, ((0, 0), (0, OUT_PAD - OUT_DIM)))
    w5c = jnp.transpose(
        w5p.reshape(LAYER_DIMS[4], N_HEAD_CHUNKS, HEAD_CHUNK),
        (1, 0, 2)).astype(jnp.bfloat16)
    b5p = jnp.pad(b5, ((0, 0), (0, OUT_PAD - OUT_DIM)))

    # One packed f32 vector for all biases / BN affine params -> single DMA.
    vec = jnp.concatenate([b1, b2, g2, be2, b3, g3, be3, b4, g4, be4, b5p],
                          axis=1)
    assert vec.shape == (1, VEC_TOTAL)

    return {"w1": w1p, "w2": w2b, "w3": w3b, "w4": w4b, "w5": w5c, "vec": vec}


@jax.jit
def generator_forward(z, packed):
    B = z.shape[0]
    z_pad = jnp.pad(z, ((0, 0), (0, Z_PAD - LEN_Z)))  # tiny; fused by jit

    vmem = pl.BlockSpec(memory_space=pltpu.MemorySpace.VMEM)
    hbm = pl.BlockSpec(memory_space=pl.ANY)

    flat = pl.pallas_call(
        generator_kernel,
        out_shape=jax.ShapeDtypeStruct((B, OUT_PAD), jnp.float32),
        in_specs=[vmem, vmem, vmem, vmem, vmem, hbm, hbm],
        out_specs=vmem,
        scratch_shapes=[
            pltpu.VMEM((LAYER_DIMS[3], LAYER_DIMS[4]), jnp.bfloat16),   # w4
            pltpu.VMEM((N_HEAD_CHUNKS, LAYER_DIMS[4], HEAD_CHUNK),
                       jnp.bfloat16),                                    # w5 slabs
            pltpu.SemaphoreType.DMA((1 + N_HEAD_CHUNKS,)),
        ],
        compiler_params=pltpu.CompilerParams(
            vmem_limit_bytes=8 * 1024 * 1024),
    )(z_pad, packed["vec"], packed["w1"], packed["w2"], packed["w3"],
      packed["w4"], packed["w5"])

    # PyTorch: fake_img.view(B, n_channel, img_size, img_size) -> NCHW
    return flat[:, :OUT_DIM].reshape(B, N_CHANNEL, IMG_SIZE, IMG_SIZE)


if __name__ == "__main__":
    key = jax.random.PRNGKey(0)
    key, kz, kp = jax.random.split(key, 3)

    batch = 8
    z = jax.random.normal(kz, (batch, LEN_Z), dtype=jnp.float32)

    params, bn_params = init_params(kp)
    packed = prepare_params(params, bn_params)   # one-time prep, not per call

    fake_img = generator_forward(z, packed)
    fake_img = jax.block_until_ready(fake_img)

    assert fake_img.shape == (batch, N_CHANNEL, IMG_SIZE, IMG_SIZE)
    assert bool(jnp.all(jnp.isfinite(fake_img)))
    assert bool(jnp.all(jnp.abs(fake_img) <= 1.0))  # tanh output range

    print("KERNEL_OK")
</pallas_src>

<mosaic_0001>
module attributes {stable_mosaic.version = 11 : i64} {
  func.func @generator_kernel(%arg0: memref<8x128xf32, #tpu.memory_space<vmem>>, %arg1: memref<1x6400xf32, #tpu.memory_space<vmem>>, %arg2: memref<128x128xbf16, #tpu.memory_space<vmem>>, %arg3: memref<128x256xbf16, #tpu.memory_space<vmem>>, %arg4: memref<256x512xbf16, #tpu.memory_space<vmem>>, %arg5: memref<512x1024xbf16, #tpu.memory_space<any>>, %arg6: memref<7x1024x128xbf16, #tpu.memory_space<any>>, %arg7: memref<8x896xf32, #tpu.memory_space<vmem>>, %arg8: memref<512x1024xbf16, #tpu.memory_space<vmem>>, %arg9: memref<7x1024x128xbf16, #tpu.memory_space<vmem>>, %arg10: memref<8x!tpu.dma_semaphore, #tpu.memory_space<semaphore_mem>>) attributes {dimension_semantics = [], scalar_prefetch = 0 : i64, scratch_operands = 3 : i64, tpu.core_type = #tpu.core_type<tc>} {
    %c0_i32 = arith.constant 0 : i32
    %0 = tpu.memref_slice %arg10[%c0_i32] : memref<8x!tpu.dma_semaphore, #tpu.memory_space<semaphore_mem>> -> memref<1x!tpu.dma_semaphore, #tpu.memory_space<semaphore_mem>>
    %1 = tpu.memref_squeeze %0 : memref<1x!tpu.dma_semaphore, #tpu.memory_space<semaphore_mem>> -> memref<!tpu.dma_semaphore, #tpu.memory_space<semaphore_mem>>
    tpu.enqueue_dma source(%arg5 : memref<512x1024xbf16, #tpu.memory_space<any>>) target(%arg8 : memref<512x1024xbf16, #tpu.memory_space<vmem>>) target_semaphore(%1 : memref<!tpu.dma_semaphore, #tpu.memory_space<semaphore_mem>>)
    %c0_i32_0 = arith.constant 0 : i32
    %c0_i32_1 = arith.constant 0 : i32
    %c1_i32 = arith.constant 1 : i32
    %c0_i32_2 = arith.constant 0 : i32
    %c0_i32_3 = arith.constant 0 : i32
    %2 = tpu.memref_slice %arg6[%c0_i32_0, %c0_i32_2, %c0_i32_3] : memref<7x1024x128xbf16, #tpu.memory_space<any>> -> memref<1x1024x128xbf16, #tpu.memory_space<any>>
    %3 = tpu.memref_squeeze %2 : memref<1x1024x128xbf16, #tpu.memory_space<any>> -> memref<1024x128xbf16, #tpu.memory_space<any>>
    %c0_i32_4 = arith.constant 0 : i32
    %c0_i32_5 = arith.constant 0 : i32
    %4 = tpu.memref_slice %arg9[%c0_i32_1, %c0_i32_4, %c0_i32_5] : memref<7x1024x128xbf16, #tpu.memory_space<vmem>> -> memref<1x1024x128xbf16, #tpu.memory_space<vmem>>
    %5 = tpu.memref_squeeze %4 : memref<1x1024x128xbf16, #tpu.memory_space<vmem>> -> memref<1024x128xbf16, #tpu.memory_space<vmem>>
    %6 = tpu.memref_slice %arg10[%c1_i32] : memref<8x!tpu.dma_semaphore, #tpu.memory_space<semaphore_mem>> -> memref<1x!tpu.dma_semaphore, #tpu.memory_space<semaphore_mem>>
    %7 = tpu.memref_squeeze %6 : memref<1x!tpu.dma_semaphore, #tpu.memory_space<semaphore_mem>> -> memref<!tpu.dma_semaphore, #tpu.memory_space<semaphore_mem>>
    tpu.enqueue_dma source(%3 : memref<1024x128xbf16, #tpu.memory_space<any>>) target(%5 : memref<1024x128xbf16, #tpu.memory_space<vmem>>) target_semaphore(%7 : memref<!tpu.dma_semaphore, #tpu.memory_space<semaphore_mem>>)
    %c1_i32_6 = arith.constant 1 : i32
    %c1_i32_7 = arith.constant 1 : i32
    %c2_i32 = arith.constant 2 : i32
    %c0_i32_8 = arith.constant 0 : i32
    %c0_i32_9 = arith.constant 0 : i32
    %8 = tpu.memref_slice %arg6[%c1_i32_6, %c0_i32_8, %c0_i32_9] : memref<7x1024x128xbf16, #tpu.memory_space<any>> -> memref<1x1024x128xbf16, #tpu.memory_space<any>>
    %9 = tpu.memref_squeeze %8 : memref<1x1024x128xbf16, #tpu.memory_space<any>> -> memref<1024x128xbf16, #tpu.memory_space<any>>
    %c0_i32_10 = arith.constant 0 : i32
    %c0_i32_11 = arith.constant 0 : i32
    %10 = tpu.memref_slice %arg9[%c1_i32_7, %c0_i32_10, %c0_i32_11] : memref<7x1024x128xbf16, #tpu.memory_space<vmem>> -> memref<1x1024x128xbf16, #tpu.memory_space<vmem>>
    %11 = tpu.memref_squeeze %10 : memref<1x1024x128xbf16, #tpu.memory_space<vmem>> -> memref<1024x128xbf16, #tpu.memory_space<vmem>>
    %12 = tpu.memref_slice %arg10[%c2_i32] : memref<8x!tpu.dma_semaphore, #tpu.memory_space<semaphore_mem>> -> memref<1x!tpu.dma_semaphore, #tpu.memory_space<semaphore_mem>>
    %13 = tpu.memref_squeeze %12 : memref<1x!tpu.dma_semaphore, #tpu.memory_space<semaphore_mem>> -> memref<!tpu.dma_semaphore, #tpu.memory_space<semaphore_mem>>
    tpu.enqueue_dma source(%9 : memref<1024x128xbf16, #tpu.memory_space<any>>) target(%11 : memref<1024x128xbf16, #tpu.memory_space<vmem>>) target_semaphore(%13 : memref<!tpu.dma_semaphore, #tpu.memory_space<semaphore_mem>>)
    %c2_i32_12 = arith.constant 2 : i32
    %c2_i32_13 = arith.constant 2 : i32
    %c3_i32 = arith.constant 3 : i32
    %c0_i32_14 = arith.constant 0 : i32
    %c0_i32_15 = arith.constant 0 : i32
    %14 = tpu.memref_slice %arg6[%c2_i32_12, %c0_i32_14, %c0_i32_15] : memref<7x1024x128xbf16, #tpu.memory_space<any>> -> memref<1x1024x128xbf16, #tpu.memory_space<any>>
    %15 = tpu.memref_squeeze %14 : memref<1x1024x128xbf16, #tpu.memory_space<any>> -> memref<1024x128xbf16, #tpu.memory_space<any>>
    %c0_i32_16 = arith.constant 0 : i32
    %c0_i32_17 = arith.constant 0 : i32
    %16 = tpu.memref_slice %arg9[%c2_i32_13, %c0_i32_16, %c0_i32_17] : memref<7x1024x128xbf16, #tpu.memory_space<vmem>> -> memref<1x1024x128xbf16, #tpu.memory_space<vmem>>
    %17 = tpu.memref_squeeze %16 : memref<1x1024x128xbf16, #tpu.memory_space<vmem>> -> memref<1024x128xbf16, #tpu.memory_space<vmem>>
    %18 = tpu.memref_slice %arg10[%c3_i32] : memref<8x!tpu.dma_semaphore, #tpu.memory_space<semaphore_mem>> -> memref<1x!tpu.dma_semaphore, #tpu.memory_space<semaphore_mem>>
    %19 = tpu.memref_squeeze %18 : memref<1x!tpu.dma_semaphore, #tpu.memory_space<semaphore_mem>> -> memref<!tpu.dma_semaphore, #tpu.memory_space<semaphore_mem>>
    tpu.enqueue_dma source(%15 : memref<1024x128xbf16, #tpu.memory_space<any>>) target(%17 : memref<1024x128xbf16, #tpu.memory_space<vmem>>) target_semaphore(%19 : memref<!tpu.dma_semaphore, #tpu.memory_space<semaphore_mem>>)
    %c3_i32_18 = arith.constant 3 : i32
    %c3_i32_19 = arith.constant 3 : i32
    %c4_i32 = arith.constant 4 : i32
    %c0_i32_20 = arith.constant 0 : i32
    %c0_i32_21 = arith.constant 0 : i32
    %20 = tpu.memref_slice %arg6[%c3_i32_18, %c0_i32_20, %c0_i32_21] : memref<7x1024x128xbf16, #tpu.memory_space<any>> -> memref<1x1024x128xbf16, #tpu.memory_space<any>>
    %21 = tpu.memref_squeeze %20 : memref<1x1024x128xbf16, #tpu.memory_space<any>> -> memref<1024x128xbf16, #tpu.memory_space<any>>
    %c0_i32_22 = arith.constant 0 : i32
    %c0_i32_23 = arith.constant 0 : i32
    %22 = tpu.memref_slice %arg9[%c3_i32_19, %c0_i32_22, %c0_i32_23] : memref<7x1024x128xbf16, #tpu.memory_space<vmem>> -> memref<1x1024x128xbf16, #tpu.memory_space<vmem>>
    %23 = tpu.memref_squeeze %22 : memref<1x1024x128xbf16, #tpu.memory_space<vmem>> -> memref<1024x128xbf16, #tpu.memory_space<vmem>>
    %24 = tpu.memref_slice %arg10[%c4_i32] : memref<8x!tpu.dma_semaphore, #tpu.memory_space<semaphore_mem>> -> memref<1x!tpu.dma_semaphore, #tpu.memory_space<semaphore_mem>>
    %25 = tpu.memref_squeeze %24 : memref<1x!tpu.dma_semaphore, #tpu.memory_space<semaphore_mem>> -> memref<!tpu.dma_semaphore, #tpu.memory_space<semaphore_mem>>
    tpu.enqueue_dma source(%21 : memref<1024x128xbf16, #tpu.memory_space<any>>) target(%23 : memref<1024x128xbf16, #tpu.memory_space<vmem>>) target_semaphore(%25 : memref<!tpu.dma_semaphore, #tpu.memory_space<semaphore_mem>>)
    %c4_i32_24 = arith.constant 4 : i32
    %c4_i32_25 = arith.constant 4 : i32
    %c5_i32 = arith.constant 5 : i32
    %c0_i32_26 = arith.constant 0 : i32
    %c0_i32_27 = arith.constant 0 : i32
    %26 = tpu.memref_slice %arg6[%c4_i32_24, %c0_i32_26, %c0_i32_27] : memref<7x1024x128xbf16, #tpu.memory_space<any>> -> memref<1x1024x128xbf16, #tpu.memory_space<any>>
    %27 = tpu.memref_squeeze %26 : memref<1x1024x128xbf16, #tpu.memory_space<any>> -> memref<1024x128xbf16, #tpu.memory_space<any>>
    %c0_i32_28 = arith.constant 0 : i32
    %c0_i32_29 = arith.constant 0 : i32
    %28 = tpu.memref_slice %arg9[%c4_i32_25, %c0_i32_28, %c0_i32_29] : memref<7x1024x128xbf16, #tpu.memory_space<vmem>> -> memref<1x1024x128xbf16, #tpu.memory_space<vmem>>
    %29 = tpu.memref_squeeze %28 : memref<1x1024x128xbf16, #tpu.memory_space<vmem>> -> memref<1024x128xbf16, #tpu.memory_space<vmem>>
    %30 = tpu.memref_slice %arg10[%c5_i32] : memref<8x!tpu.dma_semaphore, #tpu.memory_space<semaphore_mem>> -> memref<1x!tpu.dma_semaphore, #tpu.memory_space<semaphore_mem>>
    %31 = tpu.memref_squeeze %30 : memref<1x!tpu.dma_semaphore, #tpu.memory_space<semaphore_mem>> -> memref<!tpu.dma_semaphore, #tpu.memory_space<semaphore_mem>>
    tpu.enqueue_dma source(%27 : memref<1024x128xbf16, #tpu.memory_space<any>>) target(%29 : memref<1024x128xbf16, #tpu.memory_space<vmem>>) target_semaphore(%31 : memref<!tpu.dma_semaphore, #tpu.memory_space<semaphore_mem>>)
    %c5_i32_30 = arith.constant 5 : i32
    %c5_i32_31 = arith.constant 5 : i32
    %c6_i32 = arith.constant 6 : i32
    %c0_i32_32 = arith.constant 0 : i32
    %c0_i32_33 = arith.constant 0 : i32
    %32 = tpu.memref_slice %arg6[%c5_i32_30, %c0_i32_32, %c0_i32_33] : memref<7x1024x128xbf16, #tpu.memory_space<any>> -> memref<1x1024x128xbf16, #tpu.memory_space<any>>
    %33 = tpu.memref_squeeze %32 : memref<1x1024x128xbf16, #tpu.memory_space<any>> -> memref<1024x128xbf16, #tpu.memory_space<any>>
    %c0_i32_34 = arith.constant 0 : i32
    %c0_i32_35 = arith.constant 0 : i32
    %34 = tpu.memref_slice %arg9[%c5_i32_31, %c0_i32_34, %c0_i32_35] : memref<7x1024x128xbf16, #tpu.memory_space<vmem>> -> memref<1x1024x128xbf16, #tpu.memory_space<vmem>>
    %35 = tpu.memref_squeeze %34 : memref<1x1024x128xbf16, #tpu.memory_space<vmem>> -> memref<1024x128xbf16, #tpu.memory_space<vmem>>
    %36 = tpu.memref_slice %arg10[%c6_i32] : memref<8x!tpu.dma_semaphore, #tpu.memory_space<semaphore_mem>> -> memref<1x!tpu.dma_semaphore, #tpu.memory_space<semaphore_mem>>
    %37 = tpu.memref_squeeze %36 : memref<1x!tpu.dma_semaphore, #tpu.memory_space<semaphore_mem>> -> memref<!tpu.dma_semaphore, #tpu.memory_space<semaphore_mem>>
    tpu.enqueue_dma source(%33 : memref<1024x128xbf16, #tpu.memory_space<any>>) target(%35 : memref<1024x128xbf16, #tpu.memory_space<vmem>>) target_semaphore(%37 : memref<!tpu.dma_semaphore, #tpu.memory_space<semaphore_mem>>)
    %c6_i32_36 = arith.constant 6 : i32
    %c6_i32_37 = arith.constant 6 : i32
    %c7_i32 = arith.constant 7 : i32
    %c0_i32_38 = arith.constant 0 : i32
    %c0_i32_39 = arith.constant 0 : i32
    %38 = tpu.memref_slice %arg6[%c6_i32_36, %c0_i32_38, %c0_i32_39] : memref<7x1024x128xbf16, #tpu.memory_space<any>> -> memref<1x1024x128xbf16, #tpu.memory_space<any>>
    %39 = tpu.memref_squeeze %38 : memref<1x1024x128xbf16, #tpu.memory_space<any>> -> memref<1024x128xbf16, #tpu.memory_space<any>>
    %c0_i32_40 = arith.constant 0 : i32
    %c0_i32_41 = arith.constant 0 : i32
    %40 = tpu.memref_slice %arg9[%c6_i32_37, %c0_i32_40, %c0_i32_41] : memref<7x1024x128xbf16, #tpu.memory_space<vmem>> -> memref<1x1024x128xbf16, #tpu.memory_space<vmem>>
    %41 = tpu.memref_squeeze %40 : memref<1x1024x128xbf16, #tpu.memory_space<vmem>> -> memref<1024x128xbf16, #tpu.memory_space<vmem>>
    %42 = tpu.memref_slice %arg10[%c7_i32] : memref<8x!tpu.dma_semaphore, #tpu.memory_space<semaphore_mem>> -> memref<1x!tpu.dma_semaphore, #tpu.memory_space<semaphore_mem>>
    %43 = tpu.memref_squeeze %42 : memref<1x!tpu.dma_semaphore, #tpu.memory_space<semaphore_mem>> -> memref<!tpu.dma_semaphore, #tpu.memory_space<semaphore_mem>>
    tpu.enqueue_dma source(%39 : memref<1024x128xbf16, #tpu.memory_space<any>>) target(%41 : memref<1024x128xbf16, #tpu.memory_space<vmem>>) target_semaphore(%43 : memref<!tpu.dma_semaphore, #tpu.memory_space<semaphore_mem>>)
    %c0 = arith.constant 0 : index
    %c0_42 = arith.constant 0 : index
    %44 = vector.load %arg0[%c0, %c0_42] : memref<8x128xf32, #tpu.memory_space<vmem>>, vector<8x128xf32>
    %45 = arith.truncf %44 : vector<8x128xf32> to vector<8x128xbf16>
    %c0_43 = arith.constant 0 : index
    %c0_44 = arith.constant 0 : index
    %46 = vector.load %arg2[%c0_43, %c0_44] : memref<128x128xbf16, #tpu.memory_space<vmem>>, vector<128x128xbf16>
    %cst = arith.constant dense<0.000000e+00> : vector<8x128xf32>
    %47 = tpu.matmul %45, %46, %cst {dimension_numbers = #tpu.dot_dimension_numbers<[1], [0], [0], [1], [0, 0, 1, 1], [], []>} : vector<8x128xbf16>, vector<128x128xbf16>, vector<8x128xf32> -> vector<8x128xf32>
    %c0_45 = arith.constant 0 : index
    %c0_46 = arith.constant 0 : index
    %48 = vector.load %arg1[%c0_45, %c0_46] : memref<1x6400xf32, #tpu.memory_space<vmem>>, vector<1x128xf32>
    %49 = vector.broadcast %48 : vector<1x128xf32> to vector<8x128xf32>
    %50 = arith.addf %47, %49 : vector<8x128xf32>
    %cst_47 = arith.constant 0.000000e+00 : f32
    %51 = vector.broadcast %cst_47 : f32 to vector<8x128xf32>
    %52 = arith.cmpf ogt, %50, %51 : vector<8x128xf32>
    %cst_48 = arith.constant 2.000000e-01 : f32
    %53 = vector.broadcast %cst_48 : f32 to vector<8x128xf32>
    %54 = arith.mulf %53, %50 : vector<8x128xf32>
    %55 = arith.select %52, %50, %54 : vector<8x128xi1>, vector<8x128xf32>
    %56 = arith.truncf %55 : vector<8x128xf32> to vector<8x128xbf16>
    %c0_49 = arith.constant 0 : index
    %c0_50 = arith.constant 0 : index
    %57 = vector.load %arg3[%c0_49, %c0_50] : memref<128x256xbf16, #tpu.memory_space<vmem>>, vector<128x256xbf16>
    %cst_51 = arith.constant dense<0.000000e+00> : vector<8x256xf32>
    %58 = tpu.matmul %56, %57, %cst_51 {dimension_numbers = #tpu.dot_dimension_numbers<[1], [0], [0], [1], [0, 0, 1, 1], [], []>} : vector<8x128xbf16>, vector<128x256xbf16>, vector<8x256xf32> -> vector<8x256xf32>
    %c0_52 = arith.constant 0 : index
    %c128 = arith.constant 128 : index
    %59 = vector.load %arg1[%c0_52, %c128] : memref<1x6400xf32, #tpu.memory_space<vmem>>, vector<1x256xf32>
    %60 = vector.broadcast %59 : vector<1x256xf32> to vector<8x256xf32>
    %61 = arith.addf %58, %60 : vector<8x256xf32>
    %c0_53 = arith.constant 0 : index
    %c384 = arith.constant 384 : index
    %62 = vector.load %arg1[%c0_53, %c384] : memref<1x6400xf32, #tpu.memory_space<vmem>>, vector<1x256xf32>
    %c0_54 = arith.constant 0 : index
    %c640 = arith.constant 640 : index
    %63 = vector.load %arg1[%c0_54, %c640] : memref<1x6400xf32, #tpu.memory_space<vmem>>, vector<1x256xf32>
    %cst_55 = arith.constant dense<0.000000e+00> : vector<256xf32>
    %64 = vector.multi_reduction <add>, %61, %cst_55 [0] : vector<8x256xf32> to vector<256xf32>
    %65 = vector.shape_cast %64 : vector<256xf32> to vector<1x256xf32>
    %cst_56 = arith.constant 8.000000e+00 : f32
    %66 = vector.broadcast %cst_56 : f32 to vector<1x256xf32>
    %67 = arith.divf %65, %66 : vector<1x256xf32>
    %68 = vector.broadcast %67 : vector<1x256xf32> to vector<8x256xf32>
    %69 = arith.subf %61, %68 : vector<8x256xf32>
    %70 = arith.mulf %69, %69 : vector<8x256xf32>
    %cst_57 = arith.constant dense<0.000000e+00> : vector<256xf32>
    %71 = vector.multi_reduction <add>, %70, %cst_57 [0] : vector<8x256xf32> to vector<256xf32>
    %72 = vector.shape_cast %71 : vector<256xf32> to vector<1x256xf32>
    %cst_58 = arith.constant 8.000000e+00 : f32
    %73 = vector.broadcast %cst_58 : f32 to vector<1x256xf32>
    %74 = arith.divf %72, %73 : vector<1x256xf32>
    %cst_59 = arith.constant 8.000000e-01 : f32
    %75 = vector.broadcast %cst_59 : f32 to vector<1x256xf32>
    %76 = arith.addf %74, %75 : vector<1x256xf32>
    %77 = math.rsqrt %76 : vector<1x256xf32>
    %78 = arith.mulf %62, %77 : vector<1x256xf32>
    %79 = arith.mulf %67, %78 : vector<1x256xf32>
    %80 = arith.subf %63, %79 : vector<1x256xf32>
    %81 = vector.broadcast %78 : vector<1x256xf32> to vector<8x256xf32>
    %82 = arith.mulf %61, %81 : vector<8x256xf32>
    %83 = vector.broadcast %80 : vector<1x256xf32> to vector<8x256xf32>
    %84 = arith.addf %82, %83 : vector<8x256xf32>
    %cst_60 = arith.constant 0.000000e+00 : f32
    %85 = vector.broadcast %cst_60 : f32 to vector<8x256xf32>
    %86 = arith.cmpf ogt, %84, %85 : vector<8x256xf32>
    %cst_61 = arith.constant 2.000000e-01 : f32
    %87 = vector.broadcast %cst_61 : f32 to vector<8x256xf32>
    %88 = arith.mulf %87, %84 : vector<8x256xf32>
    %89 = arith.select %86, %84, %88 : vector<8x256xi1>, vector<8x256xf32>
    %90 = arith.truncf %89 : vector<8x256xf32> to vector<8x256xbf16>
    %c0_62 = arith.constant 0 : index
    %c0_63 = arith.constant 0 : index
    %91 = vector.load %arg4[%c0_62, %c0_63] : memref<256x512xbf16, #tpu.memory_space<vmem>>, vector<256x512xbf16>
    %cst_64 = arith.constant dense<0.000000e+00> : vector<8x512xf32>
    %92 = tpu.matmul %90, %91, %cst_64 {dimension_numbers = #tpu.dot_dimension_numbers<[1], [0], [0], [1], [0, 0, 1, 1], [], []>} : vector<8x256xbf16>, vector<256x512xbf16>, vector<8x512xf32> -> vector<8x512xf32>
    %c0_65 = arith.constant 0 : index
    %c896 = arith.constant 896 : index
    %93 = vector.load %arg1[%c0_65, %c896] : memref<1x6400xf32, #tpu.memory_space<vmem>>, vector<1x512xf32>
    %94 = vector.broadcast %93 : vector<1x512xf32> to vector<8x512xf32>
    %95 = arith.addf %92, %94 : vector<8x512xf32>
    %c0_66 = arith.constant 0 : index
    %c1408 = arith.constant 1408 : index
    %96 = vector.load %arg1[%c0_66, %c1408] : memref<1x6400xf32, #tpu.memory_space<vmem>>, vector<1x512xf32>
    %c0_67 = arith.constant 0 : index
    %c1920 = arith.constant 1920 : index
    %97 = vector.load %arg1[%c0_67, %c1920] : memref<1x6400xf32, #tpu.memory_space<vmem>>, vector<1x512xf32>
    %cst_68 = arith.constant dense<0.000000e+00> : vector<512xf32>
    %98 = vector.multi_reduction <add>, %95, %cst_68 [0] : vector<8x512xf32> to vector<512xf32>
    %99 = vector.shape_cast %98 : vector<512xf32> to vector<1x512xf32>
    %cst_69 = arith.constant 8.000000e+00 : f32
    %100 = vector.broadcast %cst_69 : f32 to vector<1x512xf32>
    %101 = arith.divf %99, %100 : vector<1x512xf32>
    %102 = vector.broadcast %101 : vector<1x512xf32> to vector<8x512xf32>
    %103 = arith.subf %95, %102 : vector<8x512xf32>
    %104 = arith.mulf %103, %103 : vector<8x512xf32>
    %cst_70 = arith.constant dense<0.000000e+00> : vector<512xf32>
    %105 = vector.multi_reduction <add>, %104, %cst_70 [0] : vector<8x512xf32> to vector<512xf32>
    %106 = vector.shape_cast %105 : vector<512xf32> to vector<1x512xf32>
    %cst_71 = arith.constant 8.000000e+00 : f32
    %107 = vector.broadcast %cst_71 : f32 to vector<1x512xf32>
    %108 = arith.divf %106, %107 : vector<1x512xf32>
    %cst_72 = arith.constant 8.000000e-01 : f32
    %109 = vector.broadcast %cst_72 : f32 to vector<1x512xf32>
    %110 = arith.addf %108, %109 : vector<1x512xf32>
    %111 = math.rsqrt %110 : vector<1x512xf32>
    %112 = arith.mulf %96, %111 : vector<1x512xf32>
    %113 = arith.mulf %101, %112 : vector<1x512xf32>
    %114 = arith.subf %97, %113 : vector<1x512xf32>
    %115 = vector.broadcast %112 : vector<1x512xf32> to vector<8x512xf32>
    %116 = arith.mulf %95, %115 : vector<8x512xf32>
    %117 = vector.broadcast %114 : vector<1x512xf32> to vector<8x512xf32>
    %118 = arith.addf %116, %117 : vector<8x512xf32>
    %cst_73 = arith.constant 0.000000e+00 : f32
    %119 = vector.broadcast %cst_73 : f32 to vector<8x512xf32>
    %120 = arith.cmpf ogt, %118, %119 : vector<8x512xf32>
    %cst_74 = arith.constant 2.000000e-01 : f32
    %121 = vector.broadcast %cst_74 : f32 to vector<8x512xf32>
    %122 = arith.mulf %121, %118 : vector<8x512xf32>
    %123 = arith.select %120, %118, %122 : vector<8x512xi1>, vector<8x512xf32>
    %c0_i32_75 = arith.constant 0 : i32
    %124 = tpu.memref_slice %arg10[%c0_i32_75] : memref<8x!tpu.dma_semaphore, #tpu.memory_space<semaphore_mem>> -> memref<1x!tpu.dma_semaphore, #tpu.memory_space<semaphore_mem>>
    %125 = tpu.memref_squeeze %124 : memref<1x!tpu.dma_semaphore, #tpu.memory_space<semaphore_mem>> -> memref<!tpu.dma_semaphore, #tpu.memory_space<semaphore_mem>>
    tpu.wait_dma2 semaphore(%125 : memref<!tpu.dma_semaphore, #tpu.memory_space<semaphore_mem>>) src(%arg5 : memref<512x1024xbf16, #tpu.memory_space<any>>) dst(%arg8 : memref<512x1024xbf16, #tpu.memory_space<vmem>>)
    %126 = arith.truncf %123 : vector<8x512xf32> to vector<8x512xbf16>
    %c0_76 = arith.constant 0 : index
    %c0_77 = arith.constant 0 : index
    %127 = vector.load %arg8[%c0_76, %c0_77] : memref<512x1024xbf16, #tpu.memory_space<vmem>>, vector<512x1024xbf16>
    %cst_78 = arith.constant dense<0.000000e+00> : vector<8x1024xf32>
    %128 = tpu.matmul %126, %127, %cst_78 {dimension_numbers = #tpu.dot_dimension_numbers<[1], [0], [0], [1], [0, 0, 1, 1], [], []>} : vector<8x512xbf16>, vector<512x1024xbf16>, vector<8x1024xf32> -> vector<8x1024xf32>
    %c0_79 = arith.constant 0 : index
    %c2432 = arith.constant 2432 : index
    %129 = vector.load %arg1[%c0_79, %c2432] : memref<1x6400xf32, #tpu.memory_space<vmem>>, vector<1x1024xf32>
    %130 = vector.broadcast %129 : vector<1x1024xf32> to vector<8x1024xf32>
    %131 = arith.addf %128, %130 : vector<8x1024xf32>
    %c0_80 = arith.constant 0 : index
    %c3456 = arith.constant 3456 : index
    %132 = vector.load %arg1[%c0_80, %c3456] : memref<1x6400xf32, #tpu.memory_space<vmem>>, vector<1x1024xf32>
    %c0_81 = arith.constant 0 : index
    %c4480 = arith.constant 4480 : index
    %133 = vector.load %arg1[%c0_81, %c4480] : memref<1x6400xf32, #tpu.memory_space<vmem>>, vector<1x1024xf32>
    %cst_82 = arith.constant dense<0.000000e+00> : vector<1024xf32>
    %134 = vector.multi_reduction <add>, %131, %cst_82 [0] : vector<8x1024xf32> to vector<1024xf32>
    %135 = vector.shape_cast %134 : vector<1024xf32> to vector<1x1024xf32>
    %cst_83 = arith.constant 8.000000e+00 : f32
    %136 = vector.broadcast %cst_83 : f32 to vector<1x1024xf32>
    %137 = arith.divf %135, %136 : vector<1x1024xf32>
    %138 = vector.broadcast %137 : vector<1x1024xf32> to vector<8x1024xf32>
    %139 = arith.subf %131, %138 : vector<8x1024xf32>
    %140 = arith.mulf %139, %139 : vector<8x1024xf32>
    %cst_84 = arith.constant dense<0.000000e+00> : vector<1024xf32>
    %141 = vector.multi_reduction <add>, %140, %cst_84 [0] : vector<8x1024xf32> to vector<1024xf32>
    %142 = vector.shape_cast %141 : vector<1024xf32> to vector<1x1024xf32>
    %cst_85 = arith.constant 8.000000e+00 : f32
    %143 = vector.broadcast %cst_85 : f32 to vector<1x1024xf32>
    %144 = arith.divf %142, %143 : vector<1x1024xf32>
    %cst_86 = arith.constant 8.000000e-01 : f32
    %145 = vector.broadcast %cst_86 : f32 to vector<1x1024xf32>
    %146 = arith.addf %144, %145 : vector<1x1024xf32>
    %147 = math.rsqrt %146 : vector<1x1024xf32>
    %148 = arith.mulf %132, %147 : vector<1x1024xf32>
    %149 = arith.mulf %137, %148 : vector<1x1024xf32>
    %150 = arith.subf %133, %149 : vector<1x1024xf32>
    %151 = vector.broadcast %148 : vector<1x1024xf32> to vector<8x1024xf32>
    %152 = arith.mulf %131, %151 : vector<8x1024xf32>
    %153 = vector.broadcast %150 : vector<1x1024xf32> to vector<8x1024xf32>
    %154 = arith.addf %152, %153 : vector<8x1024xf32>
    %cst_87 = arith.constant 0.000000e+00 : f32
    %155 = vector.broadcast %cst_87 : f32 to vector<8x1024xf32>
    %156 = arith.cmpf ogt, %154, %155 : vector<8x1024xf32>
    %cst_88 = arith.constant 2.000000e-01 : f32
    %157 = vector.broadcast %cst_88 : f32 to vector<8x1024xf32>
    %158 = arith.mulf %157, %154 : vector<8x1024xf32>
    %159 = arith.select %156, %154, %158 : vector<8x1024xi1>, vector<8x1024xf32>
    %160 = arith.truncf %159 : vector<8x1024xf32> to vector<8x1024xbf16>
    %c0_i32_89 = arith.constant 0 : i32
    %c0_i32_90 = arith.constant 0 : i32
    %c1_i32_91 = arith.constant 1 : i32
    %c0_i32_92 = arith.constant 0 : i32
    %c0_i32_93 = arith.constant 0 : i32
    %161 = tpu.memref_slice %arg6[%c0_i32_89, %c0_i32_92, %c0_i32_93] : memref<7x1024x128xbf16, #tpu.memory_space<any>> -> memref<1x1024x128xbf16, #tpu.memory_space<any>>
    %162 = tpu.memref_squeeze %161 : memref<1x1024x128xbf16, #tpu.memory_space<any>> -> memref<1024x128xbf16, #tpu.memory_space<any>>
    %c0_i32_94 = arith.constant 0 : i32
    %c0_i32_95 = arith.constant 0 : i32
    %163 = tpu.memref_slice %arg9[%c0_i32_90, %c0_i32_94, %c0_i32_95] : memref<7x1024x128xbf16, #tpu.memory_space<vmem>> -> memref<1x1024x128xbf16, #tpu.memory_space<vmem>>
    %164 = tpu.memref_squeeze %163 : memref<1x1024x128xbf16, #tpu.memory_space<vmem>> -> memref<1024x128xbf16, #tpu.memory_space<vmem>>
    %165 = tpu.memref_slice %arg10[%c1_i32_91] : memref<8x!tpu.dma_semaphore, #tpu.memory_space<semaphore_mem>> -> memref<1x!tpu.dma_semaphore, #tpu.memory_space<semaphore_mem>>
    %166 = tpu.memref_squeeze %165 : memref<1x!tpu.dma_semaphore, #tpu.memory_space<semaphore_mem>> -> memref<!tpu.dma_semaphore, #tpu.memory_space<semaphore_mem>>
    tpu.wait_dma2 semaphore(%166 : memref<!tpu.dma_semaphore, #tpu.memory_space<semaphore_mem>>) src(%162 : memref<1024x128xbf16, #tpu.memory_space<any>>) dst(%164 : memref<1024x128xbf16, #tpu.memory_space<vmem>>)
    %c0_96 = arith.constant 0 : index
    %c0_97 = arith.constant 0 : index
    %c0_98 = arith.constant 0 : index
    %167 = vector.load %arg9[%c0_96, %c0_97, %c0_98] : memref<7x1024x128xbf16, #tpu.memory_space<vmem>>, vector<1x1024x128xbf16>
    %168 = vector.shape_cast %167 : vector<1x1024x128xbf16> to vector<1024x128xbf16>
    %cst_99 = arith.constant dense<0.000000e+00> : vector<8x128xf32>
    %169 = tpu.matmul %160, %168, %cst_99 {dimension_numbers = #tpu.dot_dimension_numbers<[1], [0], [0], [1], [0, 0, 1, 1], [], []>} : vector<8x1024xbf16>, vector<1024x128xbf16>, vector<8x128xf32> -> vector<8x128xf32>
    %c0_100 = arith.constant 0 : index
    %c5504 = arith.constant 5504 : index
    %170 = vector.load %arg1[%c0_100, %c5504] : memref<1x6400xf32, #tpu.memory_space<vmem>>, vector<1x128xf32>
    %171 = vector.broadcast %170 : vector<1x128xf32> to vector<8x128xf32>
    %172 = arith.addf %169, %171 : vector<8x128xf32>
    %173 = math.tanh %172 : vector<8x128xf32>
    %c0_101 = arith.constant 0 : index
    %c0_102 = arith.constant 0 : index
    %174 = vector.load %arg7[%c0_101, %c0_102] : memref<8x896xf32, #tpu.memory_space<vmem>>, vector<8x128xf32>
    tpu.vector_store %arg7[%c0_101, %c0_102], %173 {strides = array<i32>} : memref<8x896xf32, #tpu.memory_space<vmem>>, vector<8x128xf32>,
    %c1_i32_103 = arith.constant 1 : i32
    %c1_i32_104 = arith.constant 1 : i32
    %c2_i32_105 = arith.constant 2 : i32
    %c0_i32_106 = arith.constant 0 : i32
    %c0_i32_107 = arith.constant 0 : i32
    %175 = tpu.memref_slice %arg6[%c1_i32_103, %c0_i32_106, %c0_i32_107] : memref<7x1024x128xbf16, #tpu.memory_space<any>> -> memref<1x1024x128xbf16, #tpu.memory_space<any>>
    %176 = tpu.memref_squeeze %175 : memref<1x1024x128xbf16, #tpu.memory_space<any>> -> memref<1024x128xbf16, #tpu.memory_space<any>>
    %c0_i32_108 = arith.constant 0 : i32
    %c0_i32_109 = arith.constant 0 : i32
    %177 = tpu.memref_slice %arg9[%c1_i32_104, %c0_i32_108, %c0_i32_109] : memref<7x1024x128xbf16, #tpu.memory_space<vmem>> -> memref<1x1024x128xbf16, #tpu.memory_space<vmem>>
    %178 = tpu.memref_squeeze %177 : memref<1x1024x128xbf16, #tpu.memory_space<vmem>> -> memref<1024x128xbf16, #tpu.memory_space<vmem>>
    %179 = tpu.memref_slice %arg10[%c2_i32_105] : memref<8x!tpu.dma_semaphore, #tpu.memory_space<semaphore_mem>> -> memref<1x!tpu.dma_semaphore, #tpu.memory_space<semaphore_mem>>
    %180 = tpu.memref_squeeze %179 : memref<1x!tpu.dma_semaphore, #tpu.memory_space<semaphore_mem>> -> memref<!tpu.dma_semaphore, #tpu.memory_space<semaphore_mem>>
    tpu.wait_dma2 semaphore(%180 : memref<!tpu.dma_semaphore, #tpu.memory_space<semaphore_mem>>) src(%176 : memref<1024x128xbf16, #tpu.memory_space<any>>) dst(%178 : memref<1024x128xbf16, #tpu.memory_space<vmem>>)
    %c1 = arith.constant 1 : index
    %c0_110 = arith.constant 0 : index
    %c0_111 = arith.constant 0 : index
    %181 = vector.load %arg9[%c1, %c0_110, %c0_111] : memref<7x1024x128xbf16, #tpu.memory_space<vmem>>, vector<1x1024x128xbf16>
    %182 = vector.shape_cast %181 : vector<1x1024x128xbf16> to vector<1024x128xbf16>
    %cst_112 = arith.constant dense<0.000000e+00> : vector<8x128xf32>
    %183 = tpu.matmul %160, %182, %cst_112 {dimension_numbers = #tpu.dot_dimension_numbers<[1], [0], [0], [1], [0, 0, 1, 1], [], []>} : vector<8x1024xbf16>, vector<1024x128xbf16>, vector<8x128xf32> -> vector<8x128xf32>
    %c0_113 = arith.constant 0 : index
    %c5632 = arith.constant 5632 : index
    %184 = vector.load %arg1[%c0_113, %c5632] : memref<1x6400xf32, #tpu.memory_space<vmem>>, vector<1x128xf32>
    %185 = vector.broadcast %184 : vector<1x128xf32> to vector<8x128xf32>
    %186 = arith.addf %183, %185 : vector<8x128xf32>
    %187 = math.tanh %186 : vector<8x128xf32>
    %c0_114 = arith.constant 0 : index
    %c128_115 = arith.constant 128 : index
    %188 = vector.load %arg7[%c0_114, %c128_115] : memref<8x896xf32, #tpu.memory_space<vmem>>, vector<8x128xf32>
    tpu.vector_store %arg7[%c0_114, %c128_115], %187 {strides = array<i32>} : memref<8x896xf32, #tpu.memory_space<vmem>>, vector<8x128xf32>,
    %c2_i32_116 = arith.constant 2 : i32
    %c2_i32_117 = arith.constant 2 : i32
    %c3_i32_118 = arith.constant 3 : i32
    %c0_i32_119 = arith.constant 0 : i32
    %c0_i32_120 = arith.constant 0 : i32
    %189 = tpu.memref_slice %arg6[%c2_i32_116, %c0_i32_119, %c0_i32_120] : memref<7x1024x128xbf16, #tpu.memory_space<any>> -> memref<1x1024x128xbf16, #tpu.memory_space<any>>
    %190 = tpu.memref_squeeze %189 : memref<1x1024x128xbf16, #tpu.memory_space<any>> -> memref<1024x128xbf16, #tpu.memory_space<any>>
    %c0_i32_121 = arith.constant 0 : i32
    %c0_i32_122 = arith.constant 0 : i32
    %191 = tpu.memref_slice %arg9[%c2_i32_117, %c0_i32_121, %c0_i32_122] : memref<7x1024x128xbf16, #tpu.memory_space<vmem>> -> memref<1x1024x128xbf16, #tpu.memory_space<vmem>>
    %192 = tpu.memref_squeeze %191 : memref<1x1024x128xbf16, #tpu.memory_space<vmem>> -> memref<1024x128xbf16, #tpu.memory_space<vmem>>
    %193 = tpu.memref_slice %arg10[%c3_i32_118] : memref<8x!tpu.dma_semaphore, #tpu.memory_space<semaphore_mem>> -> memref<1x!tpu.dma_semaphore, #tpu.memory_space<semaphore_mem>>
    %194 = tpu.memref_squeeze %193 : memref<1x!tpu.dma_semaphore, #tpu.memory_space<semaphore_mem>> -> memref<!tpu.dma_semaphore, #tpu.memory_space<semaphore_mem>>
    tpu.wait_dma2 semaphore(%194 : memref<!tpu.dma_semaphore, #tpu.memory_space<semaphore_mem>>) src(%190 : memref<1024x128xbf16, #tpu.memory_space<any>>) dst(%192 : memref<1024x128xbf16, #tpu.memory_space<vmem>>)
    %c2 = arith.constant 2 : index
    %c0_123 = arith.constant 0 : index
    %c0_124 = arith.constant 0 : index
    %195 = vector.load %arg9[%c2, %c0_123, %c0_124] : memref<7x1024x128xbf16, #tpu.memory_space<vmem>>, vector<1x1024x128xbf16>
    %196 = vector.shape_cast %195 : vector<1x1024x128xbf16> to vector<1024x128xbf16>
    %cst_125 = arith.constant dense<0.000000e+00> : vector<8x128xf32>
    %197 = tpu.matmul %160, %196, %cst_125 {dimension_numbers = #tpu.dot_dimension_numbers<[1], [0], [0], [1], [0, 0, 1, 1], [], []>} : vector<8x1024xbf16>, vector<1024x128xbf16>, vector<8x128xf32> -> vector<8x128xf32>
    %c0_126 = arith.constant 0 : index
    %c5760 = arith.constant 5760 : index
    %198 = vector.load %arg1[%c0_126, %c5760] : memref<1x6400xf32, #tpu.memory_space<vmem>>, vector<1x128xf32>
    %199 = vector.broadcast %198 : vector<1x128xf32> to vector<8x128xf32>
    %200 = arith.addf %197, %199 : vector<8x128xf32>
    %201 = math.tanh %200 : vector<8x128xf32>
    %c0_127 = arith.constant 0 : index
    %c256 = arith.constant 256 : index
    %202 = vector.load %arg7[%c0_127, %c256] : memref<8x896xf32, #tpu.memory_space<vmem>>, vector<8x128xf32>
    tpu.vector_store %arg7[%c0_127, %c256], %201 {strides = array<i32>} : memref<8x896xf32, #tpu.memory_space<vmem>>, vector<8x128xf32>,
    %c3_i32_128 = arith.constant 3 : i32
    %c3_i32_129 = arith.constant 3 : i32
    %c4_i32_130 = arith.constant 4 : i32
    %c0_i32_131 = arith.constant 0 : i32
    %c0_i32_132 = arith.constant 0 : i32
    %203 = tpu.memref_slice %arg6[%c3_i32_128, %c0_i32_131, %c0_i32_132] : memref<7x1024x128xbf16, #tpu.memory_space<any>> -> memref<1x1024x128xbf16, #tpu.memory_space<any>>
    %204 = tpu.memref_squeeze %203 : memref<1x1024x128xbf16, #tpu.memory_space<any>> -> memref<1024x128xbf16, #tpu.memory_space<any>>
    %c0_i32_133 = arith.constant 0 : i32
    %c0_i32_134 = arith.constant 0 : i32
    %205 = tpu.memref_slice %arg9[%c3_i32_129, %c0_i32_133, %c0_i32_134] : memref<7x1024x128xbf16, #tpu.memory_space<vmem>> -> memref<1x1024x128xbf16, #tpu.memory_space<vmem>>
    %206 = tpu.memref_squeeze %205 : memref<1x1024x128xbf16, #tpu.memory_space<vmem>> -> memref<1024x128xbf16, #tpu.memory_space<vmem>>
    %207 = tpu.memref_slice %arg10[%c4_i32_130] : memref<8x!tpu.dma_semaphore, #tpu.memory_space<semaphore_mem>> -> memref<1x!tpu.dma_semaphore, #tpu.memory_space<semaphore_mem>>
    %208 = tpu.memref_squeeze %207 : memref<1x!tpu.dma_semaphore, #tpu.memory_space<semaphore_mem>> -> memref<!tpu.dma_semaphore, #tpu.memory_space<semaphore_mem>>
    tpu.wait_dma2 semaphore(%208 : memref<!tpu.dma_semaphore, #tpu.memory_space<semaphore_mem>>) src(%204 : memref<1024x128xbf16, #tpu.memory_space<any>>) dst(%206 : memref<1024x128xbf16, #tpu.memory_space<vmem>>)
    %c3 = arith.constant 3 : index
    %c0_135 = arith.constant 0 : index
    %c0_136 = arith.constant 0 : index
    %209 = vector.load %arg9[%c3, %c0_135, %c0_136] : memref<7x1024x128xbf16, #tpu.memory_space<vmem>>, vector<1x1024x128xbf16>
    %210 = vector.shape_cast %209 : vector<1x1024x128xbf16> to vector<1024x128xbf16>
    %cst_137 = arith.constant dense<0.000000e+00> : vector<8x128xf32>
    %211 = tpu.matmul %160, %210, %cst_137 {dimension_numbers = #tpu.dot_dimension_numbers<[1], [0], [0], [1], [0, 0, 1, 1], [], []>} : vector<8x1024xbf16>, vector<1024x128xbf16>, vector<8x128xf32> -> vector<8x128xf32>
    %c0_138 = arith.constant 0 : index
    %c5888 = arith.constant 5888 : index
    %212 = vector.load %arg1[%c0_138, %c5888] : memref<1x6400xf32, #tpu.memory_space<vmem>>, vector<1x128xf32>
    %213 = vector.broadcast %212 : vector<1x128xf32> to vector<8x128xf32>
    %214 = arith.addf %211, %213 : vector<8x128xf32>
    %215 = math.tanh %214 : vector<8x128xf32>
    %c0_139 = arith.constant 0 : index
    %c384_140 = arith.constant 384 : index
    %216 = vector.load %arg7[%c0_139, %c384_140] : memref<8x896xf32, #tpu.memory_space<vmem>>, vector<8x128xf32>
    tpu.vector_store %arg7[%c0_139, %c384_140], %215 {strides = array<i32>} : memref<8x896xf32, #tpu.memory_space<vmem>>, vector<8x128xf32>,
    %c4_i32_141 = arith.constant 4 : i32
    %c4_i32_142 = arith.constant 4 : i32
    %c5_i32_143 = arith.constant 5 : i32
    %c0_i32_144 = arith.constant 0 : i32
    %c0_i32_145 = arith.constant 0 : i32
    %217 = tpu.memref_slice %arg6[%c4_i32_141, %c0_i32_144, %c0_i32_145] : memref<7x1024x128xbf16, #tpu.memory_space<any>> -> memref<1x1024x128xbf16, #tpu.memory_space<any>>
    %218 = tpu.memref_squeeze %217 : memref<1x1024x128xbf16, #tpu.memory_space<any>> -> memref<1024x128xbf16, #tpu.memory_space<any>>
    %c0_i32_146 = arith.constant 0 : i32
    %c0_i32_147 = arith.constant 0 : i32
    %219 = tpu.memref_slice %arg9[%c4_i32_142, %c0_i32_146, %c0_i32_147] : memref<7x1024x128xbf16, #tpu.memory_space<vmem>> -> memref<1x1024x128xbf16, #tpu.memory_space<vmem>>
    %220 = tpu.memref_squeeze %219 : memref<1x1024x128xbf16, #tpu.memory_space<vmem>> -> memref<1024x128xbf16, #tpu.memory_space<vmem>>
    %221 = tpu.memref_slice %arg10[%c5_i32_143] : memref<8x!tpu.dma_semaphore, #tpu.memory_space<semaphore_mem>> -> memref<1x!tpu.dma_semaphore, #tpu.memory_space<semaphore_mem>>
    %222 = tpu.memref_squeeze %221 : memref<1x!tpu.dma_semaphore, #tpu.memory_space<semaphore_mem>> -> memref<!tpu.dma_semaphore, #tpu.memory_space<semaphore_mem>>
    tpu.wait_dma2 semaphore(%222 : memref<!tpu.dma_semaphore, #tpu.memory_space<semaphore_mem>>) src(%218 : memref<1024x128xbf16, #tpu.memory_space<any>>) dst(%220 : memref<1024x128xbf16, #tpu.memory_space<vmem>>)
    %c4 = arith.constant 4 : index
    %c0_148 = arith.constant 0 : index
    %c0_149 = arith.constant 0 : index
    %223 = vector.load %arg9[%c4, %c0_148, %c0_149] : memref<7x1024x128xbf16, #tpu.memory_space<vmem>>, vector<1x1024x128xbf16>
    %224 = vector.shape_cast %223 : vector<1x1024x128xbf16> to vector<1024x128xbf16>
    %cst_150 = arith.constant dense<0.000000e+00> : vector<8x128xf32>
    %225 = tpu.matmul %160, %224, %cst_150 {dimension_numbers = #tpu.dot_dimension_numbers<[1], [0], [0], [1], [0, 0, 1, 1], [], []>} : vector<8x1024xbf16>, vector<1024x128xbf16>, vector<8x128xf32> -> vector<8x128xf32>
    %c0_151 = arith.constant 0 : index
    %c6016 = arith.constant 6016 : index
    %226 = vector.load %arg1[%c0_151, %c6016] : memref<1x6400xf32, #tpu.memory_space<vmem>>, vector<1x128xf32>
    %227 = vector.broadcast %226 : vector<1x128xf32> to vector<8x128xf32>
    %228 = arith.addf %225, %227 : vector<8x128xf32>
    %229 = math.tanh %228 : vector<8x128xf32>
    %c0_152 = arith.constant 0 : index
    %c512 = arith.constant 512 : index
    %230 = vector.load %arg7[%c0_152, %c512] : memref<8x896xf32, #tpu.memory_space<vmem>>, vector<8x128xf32>
    tpu.vector_store %arg7[%c0_152, %c512], %229 {strides = array<i32>} : memref<8x896xf32, #tpu.memory_space<vmem>>, vector<8x128xf32>,
    %c5_i32_153 = arith.constant 5 : i32
    %c5_i32_154 = arith.constant 5 : i32
    %c6_i32_155 = arith.constant 6 : i32
    %c0_i32_156 = arith.constant 0 : i32
    %c0_i32_157 = arith.constant 0 : i32
    %231 = tpu.memref_slice %arg6[%c5_i32_153, %c0_i32_156, %c0_i32_157] : memref<7x1024x128xbf16, #tpu.memory_space<any>> -> memref<1x1024x128xbf16, #tpu.memory_space<any>>
    %232 = tpu.memref_squeeze %231 : memref<1x1024x128xbf16, #tpu.memory_space<any>> -> memref<1024x128xbf16, #tpu.memory_space<any>>
    %c0_i32_158 = arith.constant 0 : i32
    %c0_i32_159 = arith.constant 0 : i32
    %233 = tpu.memref_slice %arg9[%c5_i32_154, %c0_i32_158, %c0_i32_159] : memref<7x1024x128xbf16, #tpu.memory_space<vmem>> -> memref<1x1024x128xbf16, #tpu.memory_space<vmem>>
    %234 = tpu.memref_squeeze %233 : memref<1x1024x128xbf16, #tpu.memory_space<vmem>> -> memref<1024x128xbf16, #tpu.memory_space<vmem>>
    %235 = tpu.memref_slice %arg10[%c6_i32_155] : memref<8x!tpu.dma_semaphore, #tpu.memory_space<semaphore_mem>> -> memref<1x!tpu.dma_semaphore, #tpu.memory_space<semaphore_mem>>
    %236 = tpu.memref_squeeze %235 : memref<1x!tpu.dma_semaphore, #tpu.memory_space<semaphore_mem>> -> memref<!tpu.dma_semaphore, #tpu.memory_space<semaphore_mem>>
    tpu.wait_dma2 semaphore(%236 : memref<!tpu.dma_semaphore, #tpu.memory_space<semaphore_mem>>) src(%232 : memref<1024x128xbf16, #tpu.memory_space<any>>) dst(%234 : memref<1024x128xbf16, #tpu.memory_space<vmem>>)
    %c5 = arith.constant 5 : index
    %c0_160 = arith.constant 0 : index
    %c0_161 = arith.constant 0 : index
    %237 = vector.load %arg9[%c5, %c0_160, %c0_161] : memref<7x1024x128xbf16, #tpu.memory_space<vmem>>, vector<1x1024x128xbf16>
    %238 = vector.shape_cast %237 : vector<1x1024x128xbf16> to vector<1024x128xbf16>
    %cst_162 = arith.constant dense<0.000000e+00> : vector<8x128xf32>
    %239 = tpu.matmul %160, %238, %cst_162 {dimension_numbers = #tpu.dot_dimension_numbers<[1], [0], [0], [1], [0, 0, 1, 1], [], []>} : vector<8x1024xbf16>, vector<1024x128xbf16>, vector<8x128xf32> -> vector<8x128xf32>
    %c0_163 = arith.constant 0 : index
    %c6144 = arith.constant 6144 : index
    %240 = vector.load %arg1[%c0_163, %c6144] : memref<1x6400xf32, #tpu.memory_space<vmem>>, vector<1x128xf32>
    %241 = vector.broadcast %240 : vector<1x128xf32> to vector<8x128xf32>
    %242 = arith.addf %239, %241 : vector<8x128xf32>
    %243 = math.tanh %242 : vector<8x128xf32>
    %c0_164 = arith.constant 0 : index
    %c640_165 = arith.constant 640 : index
    %244 = vector.load %arg7[%c0_164, %c640_165] : memref<8x896xf32, #tpu.memory_space<vmem>>, vector<8x128xf32>
    tpu.vector_store %arg7[%c0_164, %c640_165], %243 {strides = array<i32>} : memref<8x896xf32, #tpu.memory_space<vmem>>, vector<8x128xf32>,
    %c6_i32_166 = arith.constant 6 : i32
    %c6_i32_167 = arith.constant 6 : i32
    %c7_i32_168 = arith.constant 7 : i32
    %c0_i32_169 = arith.constant 0 : i32
    %c0_i32_170 = arith.constant 0 : i32
    %245 = tpu.memref_slice %arg6[%c6_i32_166, %c0_i32_169, %c0_i32_170] : memref<7x1024x128xbf16, #tpu.memory_space<any>> -> memref<1x1024x128xbf16, #tpu.memory_space<any>>
    %246 = tpu.memref_squeeze %245 : memref<1x1024x128xbf16, #tpu.memory_space<any>> -> memref<1024x128xbf16, #tpu.memory_space<any>>
    %c0_i32_171 = arith.constant 0 : i32
    %c0_i32_172 = arith.constant 0 : i32
    %247 = tpu.memref_slice %arg9[%c6_i32_167, %c0_i32_171, %c0_i32_172] : memref<7x1024x128xbf16, #tpu.memory_space<vmem>> -> memref<1x1024x128xbf16, #tpu.memory_space<vmem>>
    %248 = tpu.memref_squeeze %247 : memref<1x1024x128xbf16, #tpu.memory_space<vmem>> -> memref<1024x128xbf16, #tpu.memory_space<vmem>>
    %249 = tpu.memref_slice %arg10[%c7_i32_168] : memref<8x!tpu.dma_semaphore, #tpu.memory_space<semaphore_mem>> -> memref<1x!tpu.dma_semaphore, #tpu.memory_space<semaphore_mem>>
    %250 = tpu.memref_squeeze %249 : memref<1x!tpu.dma_semaphore, #tpu.memory_space<semaphore_mem>> -> memref<!tpu.dma_semaphore, #tpu.memory_space<semaphore_mem>>
    tpu.wait_dma2 semaphore(%250 : memref<!tpu.dma_semaphore, #tpu.memory_space<semaphore_mem>>) src(%246 : memref<1024x128xbf16, #tpu.memory_space<any>>) dst(%248 : memref<1024x128xbf16, #tpu.memory_space<vmem>>)
    %c6 = arith.constant 6 : index
    %c0_173 = arith.constant 0 : index
    %c0_174 = arith.constant 0 : index
    %251 = vector.load %arg9[%c6, %c0_173, %c0_174] : memref<7x1024x128xbf16, #tpu.memory_space<vmem>>, vector<1x1024x128xbf16>
    %252 = vector.shape_cast %251 : vector<1x1024x128xbf16> to vector<1024x128xbf16>
    %cst_175 = arith.constant dense<0.000000e+00> : vector<8x128xf32>
    %253 = tpu.matmul %160, %252, %cst_175 {dimension_numbers = #tpu.dot_dimension_numbers<[1], [0], [0], [1], [0, 0, 1, 1], [], []>} : vector<8x1024xbf16>, vector<1024x128xbf16>, vector<8x128xf32> -> vector<8x128xf32>
    %c0_176 = arith.constant 0 : index
    %c6272 = arith.constant 6272 : index
    %254 = vector.load %arg1[%c0_176, %c6272] : memref<1x6400xf32, #tpu.memory_space<vmem>>, vector<1x128xf32>
    %255 = vector.broadcast %254 : vector<1x128xf32> to vector<8x128xf32>
    %256 = arith.addf %253, %255 : vector<8x128xf32>
    %257 = math.tanh %256 : vector<8x128xf32>
    %c0_177 = arith.constant 0 : index
    %c768 = arith.constant 768 : index
    %258 = vector.load %arg7[%c0_177, %c768] : memref<8x896xf32, #tpu.memory_space<vmem>>, vector<8x128xf32>
    tpu.vector_store %arg7[%c0_177, %c768], %257 {strides = array<i32>} : memref<8x896xf32, #tpu.memory_space<vmem>>, vector<8x128xf32>,
    return
  }
}

</mosaic_0001>

<llo_original>
// kernel: generator_forward.1
$region0: #{generator_forward.1}
  #allocation0 [shape = 'u32[]', space=smem, size = 0x4, offset = 0x4, fixed_abs, tag = 'smem constant byte address 0x4 - core index']
  #allocation1 [shape = 'u32[144,128]{1,0:T(1,128)}', space=vmem, size = 0x12000, scoped, tag = 'internal scratch']
  #allocation2 [shape = 'bf16[512,1024]{1,0:T(16,128)(2,1)}', space=vmem, size = 0x100000, scoped, tag = 'scratch operand']
  #allocation3 [shape = 'bf16[7,1024,128]{2,1,0:T(16,128)(2,1)}', space=vmem, size = 0x1c0000, scoped, tag = 'scratch operand']
  #allocation4 [shape = 's32[8]{0}', space=sflag, size = 0x20, scoped, tag = 'scratch operand']
  #allocation12 [shape = 's32[]', space=sflag, size = 0x4, offset = 0, fixed_abs, tag = 'sflag constant byte address 0x0 - dummy sync flag']
  #allocation14 [shape = 's32[]', space=sflag, size = 0x4, offset = 0, fixed_abs, tag = 'sflag constant byte address 0x0 - dummy sync flag']
  #allocation15 [shape = 's32[]', space=sflag, size = 0x4, offset = 0, fixed_abs, tag = 'sflag constant byte address 0x0 - dummy sync flag']
  #allocation16 [shape = 'u32[]', space=smem, size = 0x4, offset = 0x44, fixed_abs, tag = 'smem constant byte address 0x44 - assertion arg 0']
  #allocation17 [shape = 'u32[]', space=smem, size = 0x4, offset = 0x48, fixed_abs, tag = 'smem constant byte address 0x48 - assertion arg 1']
  #allocation18 [shape = 's32[]', space=sflag, size = 0x4, offset = 0, fixed_abs, tag = 'sflag constant byte address 0x0 - dummy sync flag']
  #allocation19 [shape = 's32[]', space=sflag, size = 0x4, offset = 0, fixed_abs, tag = 'sflag constant byte address 0x0 - dummy sync flag']
  #allocation20 [shape = 's32[]', space=sflag, size = 0x4, offset = 0, fixed_abs, tag = 'sflag constant byte address 0x0 - dummy sync flag']
  #allocation21 [shape = 's32[]', space=sflag, size = 0x4, offset = 0, fixed_abs, tag = 'sflag constant byte address 0x0 - dummy sync flag']
  #allocation22 [shape = 's32[]', space=sflag, size = 0x4, offset = 0, fixed_abs, tag = 'sflag constant byte address 0x0 - dummy sync flag']
  #allocation23 [shape = 's32[]', space=sflag, size = 0x4, offset = 0, fixed_abs, tag = 'sflag constant byte address 0x0 - dummy sync flag']
  #allocation24 [shape = 's32[]', space=sflag, size = 0x4, offset = 0, fixed_abs, tag = 'sflag constant byte address 0x0 - dummy sync flag']
  #allocation25 [shape = 's32[]', space=sflag, size = 0x4, offset = 0, fixed_abs, tag = 'sflag constant byte address 0x0 - dummy sync flag']
  #allocation26 [shape = 's32[]', space=sflag, size = 0x4, offset = 0, fixed_abs, tag = 'sflag constant byte address 0x0 - dummy sync flag']
  #allocation27 [shape = 's32[]', space=sflag, size = 0x4, offset = 0, fixed_abs, tag = 'sflag constant byte address 0x0 - dummy sync flag']
  #allocation28 [shape = 's32[]', space=sflag, size = 0x4, offset = 0, fixed_abs, tag = 'sflag constant byte address 0x0 - dummy sync flag']
  #allocation29 [shape = 's32[]', space=sflag, size = 0x4, offset = 0, fixed_abs, tag = 'sflag constant byte address 0x0 - dummy sync flag']
  %s0 = inlined_call_operand.vmem [shape: f32[8,128], index: 0, kind: input, shape index: {}]
  %s1 = inlined_call_operand.hbm [shape: f32[1,6400], index: 1, kind: input, shape index: {}]
  %s2 = inlined_call_operand.hbm [shape: bf16[128,128], index: 2, kind: input, shape index: {}]
  %s3 = inlined_call_operand.hbm [shape: bf16[128,256], index: 3, kind: input, shape index: {}]
  %s4 = inlined_call_operand.hbm [shape: bf16[256,512], index: 4, kind: input, shape index: {}]
  %s5 = inlined_call_operand.hbm [shape: bf16[512,1024], index: 5, kind: input, shape index: {}]
  %s6 = inlined_call_operand.hbm [shape: bf16[7,1024,128], index: 6, kind: input, shape index: {}]
  %s7 = inlined_call_operand.vmem [shape: f32[8,896], index: 7, kind: output, shape index: {}]
  %s8 = sld [smem:[#allocation0]]
  $region74: #{generator_forward.1} parent=0
    _
  %s10 = ssub.s32 1, %s8
  %s11 = scalar_select 0, %s10, %s8
  $region1: #{generator_forward.1} parent=0
    #allocation5 [shape = 'u8[25600]{0}', space=vmem, size = 0x6400, scoped, tag = 'input window, operand 1, single buffered']
    #allocation6 [shape = 's32[1]{0}', space=sflag, size = 0x4, scoped, tag = 'scoped memory for generator_forward.1']
    #allocation7 [shape = 'u8[32768]{0}', space=vmem, size = 0x8000, scoped, tag = 'input window, operand 2, single buffered']
    #allocation8 [shape = 's32[1]{0}', space=sflag, size = 0x4, scoped, tag = 'scoped memory for generator_forward.1']
    #allocation9 [shape = 'u8[65536]{0}', space=vmem, size = 0x10000, scoped, tag = 'input window, operand 3, single buffered']
    #allocation10 [shape = 'u8[262144]{0}', space=vmem, size = 0x40000, scoped, tag = 'input window, operand 4, single buffered']
    #allocation11 [shape = 's32[1]{0}', space=sflag, size = 0x4, scoped, tag = 'scoped memory for generator_forward.1']
    #allocation13 [shape = 'u32[9]{0}', space=smem, size = 0x24, scoped, tag = 'DMA stride descriptor']
    %12 = vsyncpa [#allocation6], 0
    %13 = vsyncpa [#allocation8], 0
    %14 = vsyncpa [#allocation11], 0
    // Predicated region
    $region2: #{generator_forward.1} parent=1 // pred_check
      _
    $region3: #{generator_forward.1} parent=1 // pred_check_branch
      %16 = sbr.rel (0) target = $region5
    $region4: #{generator_forward.1} parent=1 // pred_region
      _
    $region5: #{generator_forward.1} parent=1 // pred_fallthru
      _
    // Predicated region
    $region6: #{generator_forward.1} parent=1 // pred_check
      _
    $region7: #{generator_forward.1} parent=1 // pred_check_branch
      %18 = sbr.rel (0) target = $region9
    $region8: #{generator_forward.1} parent=1 // pred_region
      %s20 = ssub.s32 800, 800
      %21 = vsyncadd [#allocation6], %s20
      %s23 = sshll.u32 [#allocation5], 4
      %s24 = int_to_ptr.vmem [resolvable:$true] %s23
      %26 = dma.hbm_to_vmem [thread:$0]  %s1, 800, %s24, [#allocation6]
    $region9: #{generator_forward.1} parent=1 // pred_fallthru
      _
    // Predicated region
    $region10: #{generator_forward.1} parent=1 // pred_check
      _
    $region11: #{generator_forward.1} parent=1 // pred_check_branch
      %28 = sbr.rel (0) target = $region13
    $region12: #{generator_forward.1} parent=1 // pred_region
      %s30 = ssub.s32 1024, 1024
      %31 = vsyncadd [#allocation8], %s30
      %s32 = sshll.u32 [#allocation7], 4
      %s33 = int_to_ptr.vmem [resolvable:$true] %s32
      %38 = dma.hbm_to_vmem [thread:$0]  %s2, 1024, %s33, [#allocation8], 64, 64, 4
    $region13: #{generator_forward.1} parent=1 // pred_fallthru
      _
    // Predicated region
    $region14: #{generator_forward.1} parent=1 // pred_check
      _
    $region15: #{generator_forward.1} parent=1 // pred_check_branch
      %40 = sbr.rel (0) target = $region17
    $region16: #{generator_forward.1} parent=1 // pred_region
      %s42 = ssub.s32 2048, 2048
      %43 = vsyncadd [#allocation8], %s42
      %s44 = sshll.u32 [#allocation9], 4
      %s45 = int_to_ptr.vmem [resolvable:$true] %s44
      %50 = dma.hbm_to_vmem [thread:$0]  %s3, 2048, %s45, [#allocation8], 128, 128, 8
    $region17: #{generator_forward.1} parent=1 // pred_fallthru
      _
    // Predicated region
    $region18: #{generator_forward.1} parent=1 // pred_check
      _
    $region19: #{generator_forward.1} parent=1 // pred_check_branch
      %52 = sbr.rel (0) target = $region21
    $region20: #{generator_forward.1} parent=1 // pred_region
      %s54 = ssub.s32 8192, 8192
      %55 = vsyncadd [#allocation11], %s54
      %s56 = sshll.u32 [#allocation10], 4
      %s57 = int_to_ptr.vmem [resolvable:$true] %s56
      %62 = dma.hbm_to_vmem [thread:$0]  %s4, 8192, %s57, [#allocation11], 256, 256, 16
    $region21: #{generator_forward.1} parent=1 // pred_fallthru
      _
    // Predicated region
    $region22: #{generator_forward.1} parent=1 // pred_check
      _
    $region23: #{generator_forward.1} parent=1 // pred_check_branch
      %64 = sbr.rel (0) target = $region25
    $region24: #{generator_forward.1} parent=1 // pred_region
      %65 = dma.done [#allocation6], 800
    $region25: #{generator_forward.1} parent=1 // pred_fallthru
      _
    // Predicated region
    $region26: #{generator_forward.1} parent=1 // pred_check
      _
    $region27: #{generator_forward.1} parent=1 // pred_check_branch
      %67 = sbr.rel (0) target = $region29
    $region28: #{generator_forward.1} parent=1 // pred_region
      %68 = dma.done [#allocation8], 1024
    $region29: #{generator_forward.1} parent=1 // pred_fallthru
      _
    // Predicated region
    $region30: #{generator_forward.1} parent=1 // pred_check
      _
    $region31: #{generator_forward.1} parent=1 // pred_check_branch
      %70 = sbr.rel (0) target = $region33
    $region32: #{generator_forward.1} parent=1 // pred_region
      %71 = dma.done [#allocation8], 2048
    $region33: #{generator_forward.1} parent=1 // pred_fallthru
      _
    // Predicated region
    $region34: #{generator_forward.1} parent=1 // pred_check
      _
    $region35: #{generator_forward.1} parent=1 // pred_check_branch
      %73 = sbr.rel (0) target = $region37
    $region36: #{generator_forward.1} parent=1 // pred_region
      %74 = dma.done [#allocation11], 8192
    $region37: #{generator_forward.1} parent=1 // pred_fallthru
      _
    %s77 = sshll.u32 1, 14
    %s78 = sxor.u32 4294967295, %s77
    %s80 = sld [smem:[#allocation0]]
    %s81 = sadd.s32 2, %s80
    %s83 = sshll.u32 7, 26
    %s84 = sxor.u32 4294967295, %s83
    %s85 = sand.u32 0, %s84
    %s86 = sshll.u32 %s81, 26
    %s87 = sor.u32 %s85, %s86
    %s88 = sshll.u32 [#allocation2], 4
    %s89 = int_to_ptr.vmem [resolvable:$true] %s88
    %92 = sst [smem:[#allocation13]] 1024
    %s93 = scalar_lea.smem [#allocation13], 1
    %94 = sst [smem:[%s93]] 1024
    %s95 = scalar_lea.smem [#allocation13], 2
    %96 = sst [smem:[%s95]] 8
    %s97 = scalar_lea.smem [#allocation13], 3
    %98 = sst [smem:[%s97]] 64
    %s99 = scalar_lea.smem [#allocation13], 4
    %100 = sst [smem:[%s99]] 128
    %s101 = scalar_lea.smem [#allocation13], 5
    %102 = sst [smem:[%s101]] 2
    %s103 = scalar_lea.smem [#allocation13], 6
    %104 = sst [smem:[%s103]] 512
    %s105 = scalar_lea.smem [#allocation13], 7
    %106 = sst [smem:[%s105]] 64
    %s107 = scalar_lea.smem [#allocation13], 8
    %108 = sst [smem:[%s107]] 4
    %110 = dma.general %s5, 32768, %s89, [#allocation4], [#allocation12], [#allocation13], %s87, 0
    %s111 = scalar_lea.sflag [#allocation4], 1
    // Predicated region
    $region38: #{generator_forward.1} parent=1 // pred_check
      _
    $region39: #{generator_forward.1} parent=1 // pred_check_branch
      %113 = sbr.rel target = $region41
    $region40: #{generator_forward.1} parent=1 // pred_region
      %114 = sst [smem:[#allocation16]] [#allocation15]
      %115 = sst [smem:[#allocation17]] [#allocation14]
    $region41: #{generator_forward.1} parent=1 // pred_fallthru
      _
    %117 = shalt.err (0)
    %s119 = sshll.u32 [#allocation3], 4
    %s120 = int_to_ptr.vmem [resolvable:$true] %s119
    %122 = dma.hbm_to_vmem [thread:$0]  %s6, 8192, %s120, %s111
    %s123 = scalar_lea.hbm %s6, 8192
    %s124 = scalar_lea.vmem [#allocation3], 512
    %s125 = scalar_lea.sflag [#allocation4], 2
    // Predicated region
    $region42: #{generator_forward.1} parent=1 // pred_check
      _
    $region43: #{generator_forward.1} parent=1 // pred_check_branch
      %127 = sbr.rel target = $region45
    $region44: #{generator_forward.1} parent=1 // pred_region
      %128 = sst [smem:[#allocation16]] [#allocation19]
      %129 = sst [smem:[#allocation17]] [#allocation18]
    $region45: #{generator_forward.1} parent=1 // pred_fallthru
      _
    %131 = shalt.err (0)
    %s133 = sshll.u32 %s124, 4
    %s134 = int_to_ptr.vmem [resolvable:$true] %s133
    %136 = dma.hbm_to_vmem [thread:$0]  %s123, 8192, %s134, %s125
    %s137 = scalar_lea.hbm %s6, 16384
    %s138 = scalar_lea.vmem [#allocation3], 1024
    %s139 = scalar_lea.sflag [#allocation4], 3
    // Predicated region
    $region46: #{generator_forward.1} parent=1 // pred_check
      _
    $region47: #{generator_forward.1} parent=1 // pred_check_branch
      %141 = sbr.rel target = $region49
    $region48: #{generator_forward.1} parent=1 // pred_region
      %142 = sst [smem:[#allocation16]] [#allocation21]
      %143 = sst [smem:[#allocation17]] [#allocation20]
    $region49: #{generator_forward.1} parent=1 // pred_fallthru
      _
    %145 = shalt.err (0)
    %s147 = sshll.u32 %s138, 4
    %s148 = int_to_ptr.vmem [resolvable:$true] %s147
    %150 = dma.hbm_to_vmem [thread:$0]  %s137, 8192, %s148, %s139
    %s151 = scalar_lea.hbm %s6, 24576
    %s152 = scalar_lea.vmem [#allocation3], 1536
    %s153 = scalar_lea.sflag [#allocation4], 4
    // Predicated region
    $region50: #{generator_forward.1} parent=1 // pred_check
      _
    $region51: #{generator_forward.1} parent=1 // pred_check_branch
      %155 = sbr.rel target = $region53
    $region52: #{generator_forward.1} parent=1 // pred_region
      %156 = sst [smem:[#allocation16]] [#allocation23]
      %157 = sst [smem:[#allocation17]] [#allocation22]
    $region53: #{generator_forward.1} parent=1 // pred_fallthru
      _
    %159 = shalt.err (0)
    %s161 = sshll.u32 %s152, 4
    %s162 = int_to_ptr.vmem [resolvable:$true] %s161
    %164 = dma.hbm_to_vmem [thread:$0]  %s151, 8192, %s162, %s153
    %s165 = scalar_lea.hbm %s6, 32768
    %s166 = scalar_lea.vmem [#allocation3], 2048
    %s167 = scalar_lea.sflag [#allocation4], 5
    // Predicated region
    $region54: #{generator_forward.1} parent=1 // pred_check
      _
    $region55: #{generator_forward.1} parent=1 // pred_check_branch
      %169 = sbr.rel target = $region57
    $region56: #{generator_forward.1} parent=1 // pred_region
      %170 = sst [smem:[#allocation16]] [#allocation25]
      %171 = sst [smem:[#allocation17]] [#allocation24]
    $region57: #{generator_forward.1} parent=1 // pred_fallthru
      _
    %173 = shalt.err (0)
    %s175 = sshll.u32 %s166, 4
    %s176 = int_to_ptr.vmem [resolvable:$true] %s175
    %178 = dma.hbm_to_vmem [thread:$0]  %s165, 8192, %s176, %s167
    %s179 = scalar_lea.hbm %s6, 40960
    %s180 = scalar_lea.vmem [#allocation3], 2560
    %s181 = scalar_lea.sflag [#allocation4], 6
    // Predicated region
    $region58: #{generator_forward.1} parent=1 // pred_check
      _
    $region59: #{generator_forward.1} parent=1 // pred_check_branch
      %183 = sbr.rel target = $region61
    $region60: #{generator_forward.1} parent=1 // pred_region
      %184 = sst [smem:[#allocation16]] [#allocation27]
      %185 = sst [smem:[#allocation17]] [#allocation26]
    $region61: #{generator_forward.1} parent=1 // pred_fallthru
      _
    %187 = shalt.err (0)
    %s189 = sshll.u32 %s180, 4
    %s190 = int_to_ptr.vmem [resolvable:$true] %s189
    %192 = dma.hbm_to_vmem [thread:$0]  %s179, 8192, %s190, %s181
    %s193 = scalar_lea.hbm %s6, 49152
    %s194 = scalar_lea.vmem [#allocation3], 3072
    %s195 = scalar_lea.sflag [#allocation4], 7
    // Predicated region
    $region62: #{generator_forward.1} parent=1 // pred_check
      _
    $region63: #{generator_forward.1} parent=1 // pred_check_branch
      %197 = sbr.rel target = $region65
    $region64: #{generator_forward.1} parent=1 // pred_region
      %198 = sst [smem:[#allocation16]] [#allocation29]
      %199 = sst [smem:[#allocation17]] [#allocation28]
    $region65: #{generator_forward.1} parent=1 // pred_fallthru
      _
    %201 = shalt.err (0)
    %s203 = sshll.u32 %s194, 4
    %s204 = int_to_ptr.vmem [resolvable:$true] %s203
    %206 = dma.hbm_to_vmem [thread:$0]  %s193, 8192, %s204, %s195
    %v207 = vld [vmem:[%s0] sm:$0xff]
    %v208 = vpack.c.bf16 %v207, %v207
    %v209 = vld [vmem:[#allocation7] sm:$0xf]
    %v210 = vld [vmem:[#allocation7 + $0x4] sm:$0xf]
    %v211 = vld [vmem:[#allocation7 + $0x8] sm:$0xf]
    %v212 = vld [vmem:[#allocation7 + $0xc] sm:$0xf]
    %v213 = vld [vmem:[#allocation7 + $0x10] sm:$0xf]
    %v214 = vld [vmem:[#allocation7 + $0x14] sm:$0xf]
    %v215 = vld [vmem:[#allocation7 + $0x18] sm:$0xf]
    %v216 = vld [vmem:[#allocation7 + $0x1c] sm:$0xf]
    %v217 = vld [vmem:[#allocation7 + $0x20] sm:$0xf]
    %v218 = vld [vmem:[#allocation7 + $0x24] sm:$0xf]
    %v219 = vld [vmem:[#allocation7 + $0x28] sm:$0xf]
    %v220 = vld [vmem:[#allocation7 + $0x2c] sm:$0xf]
    %v221 = vld [vmem:[#allocation7 + $0x30] sm:$0xf]
    %v222 = vld [vmem:[#allocation7 + $0x34] sm:$0xf]
    %v223 = vld [vmem:[#allocation7 + $0x38] sm:$0xf]
    %v224 = vld [vmem:[#allocation7 + $0x3c] sm:$0xf]
    %v225 = vld [vmem:[#allocation5] sm:$0x1]
    %v227 = vlaneseq
    %v228 = vshrl.u32 %v227, 7
    %v229 = vsub.s32 0, %v228
    %v230 = vrot.slane %v225, %v229
    %v248 = vunpack.c.l.b16 %v209
    %v249 = vunpack.c.l.b16 %v210
    %v250 = vunpack.c.l.b16 %v211
    %v251 = vunpack.c.l.b16 %v212
    %v252 = vunpack.c.l.b16 %v213
    %v253 = vunpack.c.l.b16 %v214
    %v254 = vunpack.c.l.b16 %v215
    %v255 = vunpack.c.l.b16 %v216
    %v256 = vunpack.c.l.b16 %v217
    %v257 = vunpack.c.l.b16 %v218
    %v258 = vunpack.c.l.b16 %v219
    %v259 = vunpack.c.l.b16 %v220
    %v260 = vunpack.c.l.b16 %v221
    %v261 = vunpack.c.l.b16 %v222
    %v262 = vunpack.c.l.b16 %v223
    %v263 = vunpack.c.l.b16 %v224
    %v264 = vpack.c.b16 %v249, %v248
    %v265 = vpack.c.b16 %v251, %v250
    %v266 = vpack.c.b16 %v253, %v252
    %v267 = vpack.c.b16 %v255, %v254
    %v268 = vpack.c.b16 %v257, %v256
    %v269 = vpack.c.b16 %v259, %v258
    %v270 = vpack.c.b16 %v261, %v260
    %v271 = vpack.c.b16 %v263, %v262
    %280 = vmatprep.subr.bf16.mxu0 0
    %281 = vmatpush1.bf16.msra.mxu0 %v264
    %282 = vmatprep.subr.bf16.mxu0 0
    %283 = vmatpush1.bf16.msra.mxu0 %v265
    %284 = vmatprep.subr.bf16.mxu0 0
    %285 = vmatpush1.bf16.msra.mxu0 %v266
    %286 = vmatprep.subr.bf16.mxu0 0
    %287 = vmatpush1.bf16.msra.mxu0 %v267
    %288 = vmatprep.subr.bf16.mxu0 0
    %289 = vmatpush1.bf16.msra.mxu0 %v268
    %290 = vmatprep.subr.bf16.mxu0 0
    %291 = vmatpush1.bf16.msra.mxu0 %v269
    %292 = vmatprep.subr.bf16.mxu0 0
    %293 = vmatpush1.bf16.msra.mxu0 %v270
    %294 = vmatprep.subr.bf16.mxu0 0
    %295 = vmatpush1.bf16.msra.mxu0 %v271
    %296 = vmatprep.subr.bf16.mxu0 0
    %297 = vmatpush1.bf16.msra.mxu0 0
    %298 = vmatprep.subr.bf16.mxu0 0
    %299 = vmatpush1.bf16.msra.mxu0 0
    %300 = vmatprep.subr.bf16.mxu0 0
    %301 = vmatpush1.bf16.msra.mxu0 0
    %302 = vmatprep.subr.bf16.mxu0 0
    %303 = vmatpush1.bf16.msra.mxu0 0
    %304 = vmatprep.subr.bf16.mxu0 0
    %305 = vmatpush1.bf16.msra.mxu0 0
    %306 = vmatprep.subr.bf16.mxu0 0
    %307 = vmatpush1.bf16.msra.mxu0 0
    %308 = vmatprep.subr.bf16.mxu0 0
    %309 = vmatpush1.bf16.msra.mxu0 0
    %310 = vmatprep.subr.bf16.mxu0 0
    %311 = vmatpush1.bf16.msra.mxu0 0
    %312 = vmatprep.mubr.bf16.mxu0 0
    %313 = vmatmul.mubr.bf16.gmra.mrb[0].mxu0 %v208
    %v314 = vpop.f32.mrb[0].mxu0
    %v315 = vadd.f32 %v230, %v314
    %v316 = vpop.f32.mrb[0].mxu0
    %v317 = vpop.f32.mrb[0].mxu0
    %v318 = vpop.f32.mrb[0].mxu0
    %319 = vdwg.mxu0
    %vm320 = vcmp.gt.f32.partialorder %v315, 0.0
    %v321 = vmul.f32 %v315, 0.2
    %v322 = vsel %vm320, %v315, %v321
    %v323 = vpack.c.bf16 %v322, %v322
    %v324 = vld [vmem:[#allocation9] sm:$0xff]
    %v325 = vld [vmem:[#allocation9 + $0x8] sm:$0xff]
    %v326 = vld [vmem:[#allocation9 + $0x10] sm:$0xff]
    %v327 = vld [vmem:[#allocation9 + $0x18] sm:$0xff]
    %v328 = vld [vmem:[#allocation9 + $0x20] sm:$0xff]
    %v329 = vld [vmem:[#allocation9 + $0x28] sm:$0xff]
    %v330 = vld [vmem:[#allocation9 + $0x30] sm:$0xff]
    %v331 = vld [vmem:[#allocation9 + $0x38] sm:$0xff]
    %v332 = vld [vmem:[#allocation9 + $0x40] sm:$0xff]
    %v333 = vld [vmem:[#allocation9 + $0x48] sm:$0xff]
    %v334 = vld [vmem:[#allocation9 + $0x50] sm:$0xff]
    %v335 = vld [vmem:[#allocation9 + $0x58] sm:$0xff]
    %v336 = vld [vmem:[#allocation9 + $0x60] sm:$0xff]
    %v337 = vld [vmem:[#allocation9 + $0x68] sm:$0xff]
    %v338 = vld [vmem:[#allocation9 + $0x70] sm:$0xff]
    %v339 = vld [vmem:[#allocation9 + $0x78] sm:$0xff]
    %v340 = vld [vmem:[#allocation5 + $0x1] sm:$0x3]
    %v342 = vlaneseq
    %v343 = vshrl.u32 %v342, 7
    %v344 = vsub.s32 0, %v343
    %v345 = vrot.slane %v340, %v344
    %v346 = vlaneseq
    %v347 = vshrl.u32 %v346, 7
    %v348 = vsub.s32 1, %v347
    %v349 = vrot.slane %v340, %v348
    %v368 = vunpack.c.l.b16 %v324
    %v369 = vunpack.c.h.b16 %v324
    %v370 = vunpack.c.l.b16 %v325
    %v371 = vunpack.c.h.b16 %v325
    %v372 = vunpack.c.l.b16 %v326
    %v373 = vunpack.c.h.b16 %v326
    %v374 = vunpack.c.l.b16 %v327
    %v375 = vunpack.c.h.b16 %v327
    %v376 = vunpack.c.l.b16 %v328
    %v377 = vunpack.c.h.b16 %v328
    %v378 = vunpack.c.l.b16 %v329
    %v379 = vunpack.c.h.b16 %v329
    %v380 = vunpack.c.l.b16 %v330
    %v381 = vunpack.c.h.b16 %v330
    %v382 = vunpack.c.l.b16 %v331
    %v383 = vunpack.c.h.b16 %v331
    %v384 = vunpack.c.l.b16 %v332
    %v385 = vunpack.c.h.b16 %v332
    %v386 = vunpack.c.l.b16 %v333
    %v387 = vunpack.c.h.b16 %v333
    %v388 = vunpack.c.l.b16 %v334
    %v389 = vunpack.c.h.b16 %v334
    %v390 = vunpack.c.l.b16 %v335
    %v391 = vunpack.c.h.b16 %v335
    %v392 = vunpack.c.l.b16 %v336
    %v393 = vunpack.c.h.b16 %v336
    %v394 = vunpack.c.l.b16 %v337
    %v395 = vunpack.c.h.b16 %v337
    %v396 = vunpack.c.l.b16 %v338
    %v397 = vunpack.c.h.b16 %v338
    %v398 = vunpack.c.l.b16 %v339
    %v399 = vunpack.c.h.b16 %v339
    %v400 = vpack.c.b16 %v370, %v368
    %v401 = vpack.c.b16 %v371, %v369
    %v402 = vpack.c.b16 %v374, %v372
    %v403 = vpack.c.b16 %v375, %v373
    %v404 = vpack.c.b16 %v378, %v376
    %v405 = vpack.c.b16 %v379, %v377
    %v406 = vpack.c.b16 %v382, %v380
    %v407 = vpack.c.b16 %v383, %v381
    %v408 = vpack.c.b16 %v386, %v384
    %v409 = vpack.c.b16 %v387, %v385
    %v410 = vpack.c.b16 %v390, %v388
    %v411 = vpack.c.b16 %v391, %v389
    %v412 = vpack.c.b16 %v394, %v392
    %v413 = vpack.c.b16 %v395, %v393
    %v414 = vpack.c.b16 %v398, %v396
    %v415 = vpack.c.b16 %v399, %v397
    %432 = vmatprep.subr.bf16.mxu0 %v401
    %433 = vmatpush1.bf16.msra.mxu0 %v400
    %434 = vmatprep.subr.bf16.mxu0 %v403
    %435 = vmatpush1.bf16.msra.mxu0 %v402
    %436 = vmatprep.subr.bf16.mxu0 %v405
    %437 = vmatpush1.bf16.msra.mxu0 %v404
    %438 = vmatprep.subr.bf16.mxu0 %v407
    %439 = vmatpush1.bf16.msra.mxu0 %v406
    %440 = vmatprep.subr.bf16.mxu0 %v409
    %441 = vmatpush1.bf16.msra.mxu0 %v408
    %442 = vmatprep.subr.bf16.mxu0 %v411
    %443 = vmatpush1.bf16.msra.mxu0 %v410
    %444 = vmatprep.subr.bf16.mxu0 %v413
    %445 = vmatpush1.bf16.msra.mxu0 %v412
    %446 = vmatprep.subr.bf16.mxu0 %v415
    %447 = vmatpush1.bf16.msra.mxu0 %v414
    %448 = vmatprep.subr.bf16.mxu0 0
    %449 = vmatpush1.bf16.msra.mxu0 0
    %450 = vmatprep.subr.bf16.mxu0 0
    %451 = vmatpush1.bf16.msra.mxu0 0
    %452 = vmatprep.subr.bf16.mxu0 0
    %453 = vmatpush1.bf16.msra.mxu0 0
    %454 = vmatprep.subr.bf16.mxu0 0
    %455 = vmatpush1.bf16.msra.mxu0 0
    %456 = vmatprep.subr.bf16.mxu0 0
    %457 = vmatpush1.bf16.msra.mxu0 0
    %458 = vmatprep.subr.bf16.mxu0 0
    %459 = vmatpush1.bf16.msra.mxu0 0
    %460 = vmatprep.subr.bf16.mxu0 0
    %461 = vmatpush1.bf16.msra.mxu0 0
    %462 = vmatprep.subr.bf16.mxu0 0
    %463 = vmatpush1.bf16.msra.mxu0 0
    %464 = vmatprep.mubr.bf16.mxu0 0
    %465 = vmatmul.mubr.bf16.gmra.mrb[0].mxu0 %v323
    %v466 = vpop.f32.mrb[0].mxu0
    %v467 = vadd.f32 %v345, %v466
    %v468 = vpop.f32.mrb[0].mxu0
    %v469 = vadd.f32 %v349, %v468
    %v470 = vpop.f32.mrb[0].mxu0
    %v471 = vpop.f32.mrb[0].mxu0
    %472 = vdwg.mxu0
    %v473 = vld [vmem:[#allocation5 + $0x3] sm:$0x3]
    %v474 = vld [vmem:[#allocation5 + $0x5] sm:$0x3]
    %v475 = vrot.slane %v467, 4
    %v476 = vadd.f32 %v467, %v475
    %v477 = vrot.slane %v476, 2
    %v478 = vadd.f32 %v476, %v477
    %v479 = vrot.slane %v478, 1
    %v480 = vadd.f32 %v478, %v479
    %v481 = vrot.slane %v469, 4
    %v482 = vadd.f32 %v469, %v481
    %v483 = vrot.slane %v482, 2
    %v484 = vadd.f32 %v482, %v483
    %v485 = vrot.slane %v484, 1
    %v486 = vadd.f32 %v484, %v485
    %v487 = vrcp.pop 8.0
    %v488 = vmul.f32 %v480, %v487
    %v489 = vmul.f32 %v486, %v487
    %v490 = vsub.f32 %v467, %v488
    %v491 = vsub.f32 %v469, %v489
    %v492 = vmul.f32 %v490, %v490
    %v493 = vmul.f32 %v491, %v491
    %v494 = vrot.slane %v492, 4
    %v495 = vadd.f32 %v492, %v494
    %v496 = vrot.slane %v495, 2
    %v497 = vadd.f32 %v495, %v496
    %v498 = vrot.slane %v497, 1
    %v499 = vadd.f32 %v497, %v498
    %v500 = vrot.slane %v493, 4
    %v501 = vadd.f32 %v493, %v500
    %v502 = vrot.slane %v501, 2
    %v503 = vadd.f32 %v501, %v502
    %v504 = vrot.slane %v503, 1
    %v505 = vadd.f32 %v503, %v504
    %v506 = vmul.f32 %v499, %v487
    %v507 = vmul.f32 %v505, %v487
    %v508 = vadd.f32 %v506, 0.8
    %v509 = vadd.f32 %v507, 0.8
    %v510 = vrsqrt.pop %v508
    %v511 = vrsqrt.pop %v509
    %v514 = vcombine.low %v510, %v511
    %v516 = vunpack.c.l.s4 1966171168
    %v517 = vunpack.c.0.s8 %v516
    %v518 = vlaneseq
    %v519 = vshrl.u32 %v518, 7
    %v520 = vsub.s32 %v517, %v519
    %v521 = vrot.slane %v514, %v520
    %v523 = vunpack.c.l.s4 1966171168
    %v524 = vunpack.c.0.s8 %v523
    %v525 = vlaneseq
    %v526 = vshrl.u32 %v525, 7
    %v527 = vsub.s32 %v524, %v526
    %v528 = vrot.slane %v521, %v527
    %v530 = vmul.f32 %v473, %v528
    %v532 = vlaneseq
    %v533 = vshrl.u32 %v532, 7
    %v534 = vsub.s32 0, %v533
    %v535 = vrot.slane %v530, %v534
    %v536 = vlaneseq
    %v537 = vshrl.u32 %v536, 7
    %v538 = vsub.s32 1, %v537
    %v539 = vrot.slane %v530, %v538
    %v542 = vmul.f32 %v488, %v535
    %v543 = vmul.f32 %v489, %v539
    %v546 = vcombine.low %v542, %v543
    %v548 = vunpack.c.l.s4 1966171168
    %v549 = vunpack.c.0.s8 %v548
    %v550 = vlaneseq
    %v551 = vshrl.u32 %v550, 7
    %v552 = vsub.s32 %v549, %v551
    %v553 = vrot.slane %v546, %v552
    %v555 = vunpack.c.l.s4 1966171168
    %v556 = vunpack.c.0.s8 %v555
    %v557 = vlaneseq
    %v558 = vshrl.u32 %v557, 7
    %v559 = vsub.s32 %v556, %v558
    %v560 = vrot.slane %v553, %v559
    %v562 = vsub.f32 %v474, %v560
    %v563 = vmul.f32 %v467, %v535
    %v564 = vmul.f32 %v469, %v539
    %v566 = vlaneseq
    %v567 = vshrl.u32 %v566, 7
    %v568 = vsub.s32 0, %v567
    %v569 = vrot.slane %v562, %v568
    %v570 = vlaneseq
    %v571 = vshrl.u32 %v570, 7
    %v572 = vsub.s32 1, %v571
    %v573 = vrot.slane %v562, %v572
    %v576 = vadd.f32 %v563, %v569
    %v577 = vadd.f32 %v564, %v573
    %vm578 = vcmp.gt.f32.partialorder %v576, 0.0
    %vm579 = vcmp.gt.f32.partialorder %v577, 0.0
    %v580 = vmul.f32 %v576, 0.2
    %v581 = vmul.f32 %v577, 0.2
    %v582 = vsel %vm578, %v576, %v580
    %v583 = vsel %vm579, %v577, %v581
    %v584 = vpack.c.bf16 %v582, %v582
    %v585 = vpack.c.bf16 %v583, %v583
    %v586 = vld [vmem:[#allocation10] sm:$0xff]
    %v587 = vld [vmem:[#allocation10 + $0x8] sm:$0xff]
    %v588 = vld [vmem:[#allocation10 + $0x10] sm:$0xff]
    %v589 = vld [vmem:[#allocation10 + $0x18] sm:$0xff]
    %v590 = vld [vmem:[#allocation10 + $0x20] sm:$0xff]
    %v591 = vld [vmem:[#allocation10 + $0x28] sm:$0xff]
    %v592 = vld [vmem:[#allocation10 + $0x30] sm:$0xff]
    %v593 = vld [vmem:[#allocation10 + $0x38] sm:$0xff]
    %v594 = vld [vmem:[#allocation10 + $0x40] sm:$0xff]
    %v595 = vld [vmem:[#allocation10 + $0x48] sm:$0xff]
    %v596 = vld [vmem:[#allocation10 + $0x50] sm:$0xff]
    %v597 = vld [vmem:[#allocation10 + $0x58] sm:$0xff]
    %v598 = vld [vmem:[#allocation10 + $0x60] sm:$0xff]
    %v599 = vld [vmem:[#allocation10 + $0x68] sm:$0xff]
    %v600 = vld [vmem:[#allocation10 + $0x70] sm:$0xff]
    %v601 = vld [vmem:[#allocation10 + $0x78] sm:$0xff]
    %v602 = vld [vmem:[#allocation10 + $0x80] sm:$0xff]
    %v603 = vld [vmem:[#allocation10 + $0x88] sm:$0xff]
    %v604 = vld [vmem:[#allocation10 + $0x90] sm:$0xff]
    %v605 = vld [vmem:[#allocation10 + $0x98] sm:$0xff]
    %v606 = vld [vmem:[#allocation10 + $0xa0] sm:$0xff]
    %v607 = vld [vmem:[#allocation10 + $0xa8] sm:$0xff]
    %v608 = vld [vmem:[#allocation10 + $0xb0] sm:$0xff]
    %v609 = vld [vmem:[#allocation10 + $0xb8] sm:$0xff]
    %v610 = vld [vmem:[#allocation10 + $0xc0] sm:$0xff]
    %v611 = vld [vmem:[#allocation10 + $0xc8] sm:$0xff]
    %v612 = vld [vmem:[#allocation10 + $0xd0] sm:$0xff]
    %v613 = vld [vmem:[#allocation10 + $0xd8] sm:$0xff]
    %v614 = vld [vmem:[#allocation10 + $0xe0] sm:$0xff]
    %v615 = vld [vmem:[#allocation10 + $0xe8] sm:$0xff]
    %v616 = vld [vmem:[#allocation10 + $0xf0] sm:$0xff]
    %v617 = vld [vmem:[#allocation10 + $0xf8] sm:$0xff]
    %v618 = vld [vmem:[#allocation10 + $0x100] sm:$0xff]
    %v619 = vld [vmem:[#allocation10 + $0x108] sm:$0xff]
    %v620 = vld [vmem:[#allocation10 + $0x110] sm:$0xff]
    %v621 = vld [vmem:[#allocation10 + $0x118] sm:$0xff]
    %v622 = vld [vmem:[#allocation10 + $0x120] sm:$0xff]
    %v623 = vld [vmem:[#allocation10 + $0x128] sm:$0xff]
    %v624 = vld [vmem:[#allocation10 + $0x130] sm:$0xff]
    %v625 = vld [vmem:[#allocation10 + $0x138] sm:$0xff]
    %v626 = vld [vmem:[#allocation10 + $0x140] sm:$0xff]
    %v627 = vld [vmem:[#allocation10 + $0x148] sm:$0xff]
    %v628 = vld [vmem:[#allocation10 + $0x150] sm:$0xff]
    %v629 = vld [vmem:[#allocation10 + $0x158] sm:$0xff]
    %v630 = vld [vmem:[#allocation10 + $0x160] sm:$0xff]
    %v631 = vld [vmem:[#allocation10 + $0x168] sm:$0xff]
    %v632 = vld [vmem:[#allocation10 + $0x170] sm:$0xff]
    %v633 = vld [vmem:[#allocation10 + $0x178] sm:$0xff]
    %v634 = vld [vmem:[#allocation10 + $0x180] sm:$0xff]
    %v635 = vld [vmem:[#allocation10 + $0x188] sm:$0xff]
    %v636 = vld [vmem:[#allocation10 + $0x190] sm:$0xff]
    %v637 = vld [vmem:[#allocation10 + $0x198] sm:$0xff]
    %v638 = vld [vmem:[#allocation10 + $0x1a0] sm:$0xff]
    %v639 = vld [vmem:[#allocation10 + $0x1a8] sm:$0xff]
    %v640 = vld [vmem:[#allocation10 + $0x1b0] sm:$0xff]
    %v641 = vld [vmem:[#allocation10 + $0x1b8] sm:$0xff]
    %v642 = vld [vmem:[#allocation10 + $0x1c0] sm:$0xff]
    %v643 = vld [vmem:[#allocation10 + $0x1c8] sm:$0xff]
    %v644 = vld [vmem:[#allocation10 + $0x1d0] sm:$0xff]
    %v645 = vld [vmem:[#allocation10 + $0x1d8] sm:$0xff]
    %v646 = vld [vmem:[#allocation10 + $0x1e0] sm:$0xff]
    %v647 = vld [vmem:[#allocation10 + $0x1e8] sm:$0xff]
    %v648 = vld [vmem:[#allocation10 + $0x1f0] sm:$0xff]
    %v649 = vld [vmem:[#allocation10 + $0x1f8] sm:$0xff]
    %v650 = vld [vmem:[#allocation5 + $0x7] sm:$0xf]
    %v652 = vlaneseq
    %v653 = vshrl.u32 %v652, 7
    %v654 = vsub.s32 0, %v653
    %v655 = vrot.slane %v650, %v654
    %v656 = vlaneseq
    %v657 = vshrl.u32 %v656, 7
    %v658 = vsub.s32 1, %v657
    %v659 = vrot.slane %v650, %v658
    %v660 = vlaneseq
    %v661 = vshrl.u32 %v660, 7
    %v662 = vsub.s32 2, %v661
    %v663 = vrot.slane %v650, %v662
    %v664 = vlaneseq
    %v665 = vshrl.u32 %v664, 7
    %v666 = vsub.s32 3, %v665
    %v667 = vrot.slane %v650, %v666
    %v736 = vunpack.c.l.b16 %v586
    %v737 = vunpack.c.h.b16 %v586
    %v738 = vunpack.c.l.b16 %v587
    %v739 = vunpack.c.h.b16 %v587
    %v740 = vunpack.c.l.b16 %v588
    %v741 = vunpack.c.h.b16 %v588
    %v742 = vunpack.c.l.b16 %v589
    %v743 = vunpack.c.h.b16 %v589
    %v744 = vunpack.c.l.b16 %v590
    %v745 = vunpack.c.h.b16 %v590
    %v746 = vunpack.c.l.b16 %v591
    %v747 = vunpack.c.h.b16 %v591
    %v748 = vunpack.c.l.b16 %v592
    %v749 = vunpack.c.h.b16 %v592
    %v750 = vunpack.c.l.b16 %v593
    %v751 = vunpack.c.h.b16 %v593
    %v752 = vunpack.c.l.b16 %v594
    %v753 = vunpack.c.h.b16 %v594
    %v754 = vunpack.c.l.b16 %v595
    %v755 = vunpack.c.h.b16 %v595
    %v756 = vunpack.c.l.b16 %v596
    %v757 = vunpack.c.h.b16 %v596
    %v758 = vunpack.c.l.b16 %v597
    %v759 = vunpack.c.h.b16 %v597
    %v760 = vunpack.c.l.b16 %v598
    %v761 = vunpack.c.h.b16 %v598
    %v762 = vunpack.c.l.b16 %v599
    %v763 = vunpack.c.h.b16 %v599
    %v764 = vunpack.c.l.b16 %v600
    %v765 = vunpack.c.h.b16 %v600
    %v766 = vunpack.c.l.b16 %v601
    %v767 = vunpack.c.h.b16 %v601
    %v768 = vunpack.c.l.b16 %v602
    %v769 = vunpack.c.h.b16 %v602
    %v770 = vunpack.c.l.b16 %v603
    %v771 = vunpack.c.h.b16 %v603
    %v772 = vunpack.c.l.b16 %v604
    %v773 = vunpack.c.h.b16 %v604
    %v774 = vunpack.c.l.b16 %v605
    %v775 = vunpack.c.h.b16 %v605
    %v776 = vunpack.c.l.b16 %v606
    %v777 = vunpack.c.h.b16 %v606
    %v778 = vunpack.c.l.b16 %v607
    %v779 = vunpack.c.h.b16 %v607
    %v780 = vunpack.c.l.b16 %v608
    %v781 = vunpack.c.h.b16 %v608
    %v782 = vunpack.c.l.b16 %v609
    %v783 = vunpack.c.h.b16 %v609
    %v784 = vunpack.c.l.b16 %v610
    %v785 = vunpack.c.h.b16 %v610
    %v786 = vunpack.c.l.b16 %v611
    %v787 = vunpack.c.h.b16 %v611
    %v788 = vunpack.c.l.b16 %v612
    %v789 = vunpack.c.h.b16 %v612
    %v790 = vunpack.c.l.b16 %v613
    %v791 = vunpack.c.h.b16 %v613
    %v792 = vunpack.c.l.b16 %v614
    %v793 = vunpack.c.h.b16 %v614
    %v794 = vunpack.c.l.b16 %v615
    %v795 = vunpack.c.h.b16 %v615
    %v796 = vunpack.c.l.b16 %v616
    %v797 = vunpack.c.h.b16 %v616
    %v798 = vunpack.c.l.b16 %v617
    %v799 = vunpack.c.h.b16 %v617
    %v800 = vunpack.c.l.b16 %v618
    %v801 = vunpack.c.h.b16 %v618
    %v802 = vunpack.c.l.b16 %v619
    %v803 = vunpack.c.h.b16 %v619
    %v804 = vunpack.c.l.b16 %v620
    %v805 = vunpack.c.h.b16 %v620
    %v806 = vunpack.c.l.b16 %v621
    %v807 = vunpack.c.h.b16 %v621
    %v808 = vunpack.c.l.b16 %v622
    %v809 = vunpack.c.h.b16 %v622
    %v810 = vunpack.c.l.b16 %v623
    %v811 = vunpack.c.h.b16 %v623
    %v812 = vunpack.c.l.b16 %v624
    %v813 = vunpack.c.h.b16 %v624
    %v814 = vunpack.c.l.b16 %v625
    %v815 = vunpack.c.h.b16 %v625
    %v816 = vunpack.c.l.b16 %v626
    %v817 = vunpack.c.h.b16 %v626
    %v818 = vunpack.c.l.b16 %v627
    %v819 = vunpack.c.h.b16 %v627
    %v820 = vunpack.c.l.b16 %v628
    %v821 = vunpack.c.h.b16 %v628
    %v822 = vunpack.c.l.b16 %v629
    %v823 = vunpack.c.h.b16 %v629
    %v824 = vunpack.c.l.b16 %v630
    %v825 = vunpack.c.h.b16 %v630
    %v826 = vunpack.c.l.b16 %v631
    %v827 = vunpack.c.h.b16 %v631
    %v828 = vunpack.c.l.b16 %v632
    %v829 = vunpack.c.h.b16 %v632
    %v830 = vunpack.c.l.b16 %v633
    %v831 = vunpack.c.h.b16 %v633
    %v832 = vunpack.c.l.b16 %v634
    %v833 = vunpack.c.h.b16 %v634
    %v834 = vunpack.c.l.b16 %v635
    %v835 = vunpack.c.h.b16 %v635
    %v836 = vunpack.c.l.b16 %v636
    %v837 = vunpack.c.h.b16 %v636
    %v838 = vunpack.c.l.b16 %v637
    %v839 = vunpack.c.h.b16 %v637
    %v840 = vunpack.c.l.b16 %v638
    %v841 = vunpack.c.h.b16 %v638
    %v842 = vunpack.c.l.b16 %v639
    %v843 = vunpack.c.h.b16 %v639
    %v844 = vunpack.c.l.b16 %v640
    %v845 = vunpack.c.h.b16 %v640
    %v846 = vunpack.c.l.b16 %v641
    %v847 = vunpack.c.h.b16 %v641
    %v848 = vunpack.c.l.b16 %v642
    %v849 = vunpack.c.h.b16 %v642
    %v850 = vunpack.c.l.b16 %v643
    %v851 = vunpack.c.h.b16 %v643
    %v852 = vunpack.c.l.b16 %v644
    %v853 = vunpack.c.h.b16 %v644
    %v854 = vunpack.c.l.b16 %v645
    %v855 = vunpack.c.h.b16 %v645
    %v856 = vunpack.c.l.b16 %v646
    %v857 = vunpack.c.h.b16 %v646
    %v858 = vunpack.c.l.b16 %v647
    %v859 = vunpack.c.h.b16 %v647
    %v860 = vunpack.c.l.b16 %v648
    %v861 = vunpack.c.h.b16 %v648
    %v862 = vunpack.c.l.b16 %v649
    %v863 = vunpack.c.h.b16 %v649
    %v864 = vpack.c.b16 %v740, %v736
    %v865 = vpack.c.b16 %v741, %v737
    %v866 = vpack.c.b16 %v742, %v738
    %v867 = vpack.c.b16 %v743, %v739
    %v868 = vpack.c.b16 %v748, %v744
    %v869 = vpack.c.b16 %v749, %v745
    %v870 = vpack.c.b16 %v750, %v746
    %v871 = vpack.c.b16 %v751, %v747
    %v872 = vpack.c.b16 %v756, %v752
    %v873 = vpack.c.b16 %v757, %v753
    %v874 = vpack.c.b16 %v758, %v754
    %v875 = vpack.c.b16 %v759, %v755
    %v876 = vpack.c.b16 %v764, %v760
    %v877 = vpack.c.b16 %v765, %v761
    %v878 = vpack.c.b16 %v766, %v762
    %v879 = vpack.c.b16 %v767, %v763
    %v880 = vpack.c.b16 %v772, %v768
    %v881 = vpack.c.b16 %v773, %v769
    %v882 = vpack.c.b16 %v774, %v770
    %v883 = vpack.c.b16 %v775, %v771
    %v884 = vpack.c.b16 %v780, %v776
    %v885 = vpack.c.b16 %v781, %v777
    %v886 = vpack.c.b16 %v782, %v778
    %v887 = vpack.c.b16 %v783, %v779
    %v888 = vpack.c.b16 %v788, %v784
    %v889 = vpack.c.b16 %v789, %v785
    %v890 = vpack.c.b16 %v790, %v786
    %v891 = vpack.c.b16 %v791, %v787
    %v892 = vpack.c.b16 %v796, %v792
    %v893 = vpack.c.b16 %v797, %v793
    %v894 = vpack.c.b16 %v798, %v794
    %v895 = vpack.c.b16 %v799, %v795
    %v896 = vpack.c.b16 %v804, %v800
    %v897 = vpack.c.b16 %v805, %v801
    %v898 = vpack.c.b16 %v806, %v802
    %v899 = vpack.c.b16 %v807, %v803
    %v900 = vpack.c.b16 %v812, %v808
    %v901 = vpack.c.b16 %v813, %v809
    %v902 = vpack.c.b16 %v814, %v810
    %v903 = vpack.c.b16 %v815, %v811
    %v904 = vpack.c.b16 %v820, %v816
    %v905 = vpack.c.b16 %v821, %v817
    %v906 = vpack.c.b16 %v822, %v818
    %v907 = vpack.c.b16 %v823, %v819
    %v908 = vpack.c.b16 %v828, %v824
    %v909 = vpack.c.b16 %v829, %v825
    %v910 = vpack.c.b16 %v830, %v826
    %v911 = vpack.c.b16 %v831, %v827
    %v912 = vpack.c.b16 %v836, %v832
    %v913 = vpack.c.b16 %v837, %v833
    %v914 = vpack.c.b16 %v838, %v834
    %v915 = vpack.c.b16 %v839, %v835
    %v916 = vpack.c.b16 %v844, %v840
    %v917 = vpack.c.b16 %v845, %v841
    %v918 = vpack.c.b16 %v846, %v842
    %v919 = vpack.c.b16 %v847, %v843
    %v920 = vpack.c.b16 %v852, %v848
    %v921 = vpack.c.b16 %v853, %v849
    %v922 = vpack.c.b16 %v854, %v850
    %v923 = vpack.c.b16 %v855, %v851
    %v924 = vpack.c.b16 %v860, %v856
    %v925 = vpack.c.b16 %v861, %v857
    %v926 = vpack.c.b16 %v862, %v858
    %v927 = vpack.c.b16 %v863, %v859
    %992 = vmatprep.subr.bf16.mxu0 %v865
    %993 = vmatpush1.bf16.msra.mxu0 %v864
    %994 = vmatprep.subr.bf16.mxu0 %v869
    %995 = vmatpush1.bf16.msra.mxu0 %v868
    %996 = vmatprep.subr.bf16.mxu0 %v873
    %997 = vmatpush1.bf16.msra.mxu0 %v872
    %998 = vmatprep.subr.bf16.mxu0 %v877
    %999 = vmatpush1.bf16.msra.mxu0 %v876
    %1000 = vmatprep.subr.bf16.mxu0 %v881
    %1001 = vmatpush1.bf16.msra.mxu0 %v880
    %1002 = vmatprep.subr.bf16.mxu0 %v885
    %1003 = vmatpush1.bf16.msra.mxu0 %v884
    %1004 = vmatprep.subr.bf16.mxu0 %v889
    %1005 = vmatpush1.bf16.msra.mxu0 %v888
    %1006 = vmatprep.subr.bf16.mxu0 %v893
    %1007 = vmatpush1.bf16.msra.mxu0 %v892
    %1008 = vmatprep.subr.bf16.mxu0 %v897
    %1009 = vmatpush1.bf16.msra.mxu0 %v896
    %1010 = vmatprep.subr.bf16.mxu0 %v901
    %1011 = vmatpush1.bf16.msra.mxu0 %v900
    %1012 = vmatprep.subr.bf16.mxu0 %v905
    %1013 = vmatpush1.bf16.msra.mxu0 %v904
    %1014 = vmatprep.subr.bf16.mxu0 %v909
    %1015 = vmatpush1.bf16.msra.mxu0 %v908
    %1016 = vmatprep.subr.bf16.mxu0 %v913
    %1017 = vmatpush1.bf16.msra.mxu0 %v912
    %1018 = vmatprep.subr.bf16.mxu0 %v917
    %1019 = vmatpush1.bf16.msra.mxu0 %v916
    %1020 = vmatprep.subr.bf16.mxu0 %v921
    %1021 = vmatpush1.bf16.msra.mxu0 %v920
    %1022 = vmatprep.subr.bf16.mxu0 %v925
    %1023 = vmatpush1.bf16.msra.mxu0 %v924
    %1024 = vmatprep.mubr.bf16.mxu0 %v585
    %1025 = vmatmul.mubr.bf16.gmra.mrb[0].mxu0 %v584
    %v1026 = vpop.f32.mrb[0].mxu0
    %v1027 = vadd.f32 %v655, %v1026
    %v1028 = vpop.f32.mrb[0].mxu0
    %v1029 = vadd.f32 %v659, %v1028
    %v1030 = vpop.f32.mrb[0].mxu0
    %v1031 = vpop.f32.mrb[0].mxu0
    %1032 = vdwg.mxu0
    %1033 = vmatprep.subr.bf16.mxu0 %v867
    %1034 = vmatpush1.bf16.msra.mxu0 %v866
    %1035 = vmatprep.subr.bf16.mxu0 %v871
    %1036 = vmatpush1.bf16.msra.mxu0 %v870
    %1037 = vmatprep.subr.bf16.mxu0 %v875
    %1038 = vmatpush1.bf16.msra.mxu0 %v874
    %1039 = vmatprep.subr.bf16.mxu0 %v879
    %1040 = vmatpush1.bf16.msra.mxu0 %v878
    %1041 = vmatprep.subr.bf16.mxu0 %v883
    %1042 = vmatpush1.bf16.msra.mxu0 %v882
    %1043 = vmatprep.subr.bf16.mxu0 %v887
    %1044 = vmatpush1.bf16.msra.mxu0 %v886
    %1045 = vmatprep.subr.bf16.mxu0 %v891
    %1046 = vmatpush1.bf16.msra.mxu0 %v890
    %1047 = vmatprep.subr.bf16.mxu0 %v895
    %1048 = vmatpush1.bf16.msra.mxu0 %v894
    %1049 = vmatprep.subr.bf16.mxu0 %v899
    %1050 = vmatpush1.bf16.msra.mxu0 %v898
    %1051 = vmatprep.subr.bf16.mxu0 %v903
    %1052 = vmatpush1.bf16.msra.mxu0 %v902
    %1053 = vmatprep.subr.bf16.mxu0 %v907
    %1054 = vmatpush1.bf16.msra.mxu0 %v906
    %1055 = vmatprep.subr.bf16.mxu0 %v911
    %1056 = vmatpush1.bf16.msra.mxu0 %v910
    %1057 = vmatprep.subr.bf16.mxu0 %v915
    %1058 = vmatpush1.bf16.msra.mxu0 %v914
    %1059 = vmatprep.subr.bf16.mxu0 %v919
    %1060 = vmatpush1.bf16.msra.mxu0 %v918
    %1061 = vmatprep.subr.bf16.mxu0 %v923
    %1062 = vmatpush1.bf16.msra.mxu0 %v922
    %1063 = vmatprep.subr.bf16.mxu0 %v927
    %1064 = vmatpush1.bf16.msra.mxu0 %v926
    %1065 = vmatprep.mubr.bf16.mxu0 %v585
    %1066 = vmatmul.mubr.bf16.gmra.mrb[0].mxu0 %v584
    %v1067 = vpop.f32.mrb[0].mxu0
    %v1068 = vadd.f32 %v663, %v1067
    %v1069 = vpop.f32.mrb[0].mxu0
    %v1070 = vadd.f32 %v667, %v1069
    %v1071 = vpop.f32.mrb[0].mxu0
    %v1072 = vpop.f32.mrb[0].mxu0
    %1073 = vdwg.mxu0
    %v1074 = vld [vmem:[#allocation5 + $0xb] sm:$0xf]
    %v1075 = vld [vmem:[#allocation5 + $0xf] sm:$0xf]
    %v1076 = vrot.slane %v1027, 4
    %v1077 = vadd.f32 %v1027, %v1076
    %v1078 = vrot.slane %v1077, 2
    %v1079 = vadd.f32 %v1077, %v1078
    %v1080 = vrot.slane %v1079, 1
    %v1081 = vadd.f32 %v1079, %v1080
    %v1082 = vrot.slane %v1029, 4
    %v1083 = vadd.f32 %v1029, %v1082
    %v1084 = vrot.slane %v1083, 2
    %v1085 = vadd.f32 %v1083, %v1084
    %v1086 = vrot.slane %v1085, 1
    %v1087 = vadd.f32 %v1085, %v1086
    %v1088 = vrot.slane %v1068, 4
    %v1089 = vadd.f32 %v1068, %v1088
    %v1090 = vrot.slane %v1089, 2
    %v1091 = vadd.f32 %v1089, %v1090
    %v1092 = vrot.slane %v1091, 1
    %v1093 = vadd.f32 %v1091, %v1092
    %v1094 = vrot.slane %v1070, 4
    %v1095 = vadd.f32 %v1070, %v1094
    %v1096 = vrot.slane %v1095, 2
    %v1097 = vadd.f32 %v1095, %v1096
    %v1098 = vrot.slane %v1097, 1
    %v1099 = vadd.f32 %v1097, %v1098
    %v1100 = vmul.f32 %v1081, %v487
    %v1101 = vmul.f32 %v1087, %v487
    %v1102 = vmul.f32 %v1093, %v487
    %v1103 = vmul.f32 %v1099, %v487
    %v1104 = vsub.f32 %v1027, %v1100
    %v1105 = vsub.f32 %v1029, %v1101
    %v1106 = vsub.f32 %v1068, %v1102
    %v1107 = vsub.f32 %v1070, %v1103
    %v1108 = vmul.f32 %v1104, %v1104
    %v1109 = vmul.f32 %v1105, %v1105
    %v1110 = vmul.f32 %v1106, %v1106
    %v1111 = vmul.f32 %v1107, %v1107
    %v1112 = vrot.slane %v1108, 4
    %v1113 = vadd.f32 %v1108, %v1112
    %v1114 = vrot.slane %v1113, 2
    %v1115 = vadd.f32 %v1113, %v1114
    %v1116 = vrot.slane %v1115, 1
    %v1117 = vadd.f32 %v1115, %v1116
    %v1118 = vrot.slane %v1109, 4
    %v1119 = vadd.f32 %v1109, %v1118
    %v1120 = vrot.slane %v1119, 2
    %v1121 = vadd.f32 %v1119, %v1120
    %v1122 = vrot.slane %v1121, 1
    %v1123 = vadd.f32 %v1121, %v1122
    %v1124 = vrot.slane %v1110, 4
    %v1125 = vadd.f32 %v1110, %v1124
    %v1126 = vrot.slane %v1125, 2
    %v1127 = vadd.f32 %v1125, %v1126
    %v1128 = vrot.slane %v1127, 1
    %v1129 = vadd.f32 %v1127, %v1128
    %v1130 = vrot.slane %v1111, 4
    %v1131 = vadd.f32 %v1111, %v1130
    %v1132 = vrot.slane %v1131, 2
    %v1133 = vadd.f32 %v1131, %v1132
    %v1134 = vrot.slane %v1133, 1
    %v1135 = vadd.f32 %v1133, %v1134
    %v1136 = vmul.f32 %v1117, %v487
    %v1137 = vmul.f32 %v1123, %v487
    %v1138 = vmul.f32 %v1129, %v487
    %v1139 = vmul.f32 %v1135, %v487
    %v1140 = vadd.f32 %v1136, 0.8
    %v1141 = vadd.f32 %v1137, 0.8
    %v1142 = vadd.f32 %v1138, 0.8
    %v1143 = vadd.f32 %v1139, 0.8
    %v1144 = vrsqrt.pop %v1140
    %v1145 = vrsqrt.pop %v1141
    %v1146 = vrsqrt.pop %v1142
    %v1147 = vrsqrt.pop %v1143
    %v1152 = vcombine.low %v1144, %v1145
    %v1153 = vcombine.low %v1146, %v1147
    %v1155 = vunpack.c.l.s4 1966171168
    %v1156 = vunpack.c.0.s8 %v1155
    %v1157 = vlaneseq
    %v1158 = vshrl.u32 %v1157, 7
    %v1159 = vsub.s32 %v1156, %v1158
    %v1160 = vrot.slane %v1152, %v1159
    %v1162 = vunpack.c.l.s4 1966171168
    %v1163 = vunpack.c.0.s8 %v1162
    %v1164 = vlaneseq
    %v1165 = vshrl.u32 %v1164, 7
    %v1166 = vsub.s32 %v1163, %v1165
    %v1167 = vrot.slane %v1153, %v1166
    %v1168 = vcombine.low %v1160, %v1167
    %v1170 = vunpack.c.l.s4 1966171168
    %v1171 = vunpack.c.0.s8 %v1170
    %v1172 = vlaneseq
    %v1173 = vshrl.u32 %v1172, 7
    %v1174 = vsub.s32 %v1171, %v1173
    %v1175 = vrot.slane %v1168, %v1174
    %v1177 = vmul.f32 %v1074, %v1175
    %v1179 = vlaneseq
    %v1180 = vshrl.u32 %v1179, 7
    %v1181 = vsub.s32 0, %v1180
    %v1182 = vrot.slane %v1177, %v1181
    %v1183 = vlaneseq
    %v1184 = vshrl.u32 %v1183, 7
    %v1185 = vsub.s32 1, %v1184
    %v1186 = vrot.slane %v1177, %v1185
    %v1187 = vlaneseq
    %v1188 = vshrl.u32 %v1187, 7
    %v1189 = vsub.s32 2, %v1188
    %v1190 = vrot.slane %v1177, %v1189
    %v1191 = vlaneseq
    %v1192 = vshrl.u32 %v1191, 7
    %v1193 = vsub.s32 3, %v1192
    %v1194 = vrot.slane %v1177, %v1193
    %v1199 = vmul.f32 %v1100, %v1182
    %v1200 = vmul.f32 %v1101, %v1186
    %v1201 = vmul.f32 %v1102, %v1190
    %v1202 = vmul.f32 %v1103, %v1194
    %v1207 = vcombine.low %v1199, %v1200
    %v1208 = vcombine.low %v1201, %v1202
    %v1210 = vunpack.c.l.s4 1966171168
    %v1211 = vunpack.c.0.s8 %v1210
    %v1212 = vlaneseq
    %v1213 = vshrl.u32 %v1212, 7
    %v1214 = vsub.s32 %v1211, %v1213
    %v1215 = vrot.slane %v1207, %v1214
    %v1217 = vunpack.c.l.s4 1966171168
    %v1218 = vunpack.c.0.s8 %v1217
    %v1219 = vlaneseq
    %v1220 = vshrl.u32 %v1219, 7
    %v1221 = vsub.s32 %v1218, %v1220
    %v1222 = vrot.slane %v1208, %v1221
    %v1223 = vcombine.low %v1215, %v1222
    %v1225 = vunpack.c.l.s4 1966171168
    %v1226 = vunpack.c.0.s8 %v1225
    %v1227 = vlaneseq
    %v1228 = vshrl.u32 %v1227, 7
    %v1229 = vsub.s32 %v1226, %v1228
    %v1230 = vrot.slane %v1223, %v1229
    %v1232 = vsub.f32 %v1075, %v1230
    %v1233 = vmul.f32 %v1027, %v1182
    %v1234 = vmul.f32 %v1029, %v1186
    %v1235 = vmul.f32 %v1068, %v1190
    %v1236 = vmul.f32 %v1070, %v1194
    %v1238 = vlaneseq
    %v1239 = vshrl.u32 %v1238, 7
    %v1240 = vsub.s32 0, %v1239
    %v1241 = vrot.slane %v1232, %v1240
    %v1242 = vlaneseq
    %v1243 = vshrl.u32 %v1242, 7
    %v1244 = vsub.s32 1, %v1243
    %v1245 = vrot.slane %v1232, %v1244
    %v1246 = vlaneseq
    %v1247 = vshrl.u32 %v1246, 7
    %v1248 = vsub.s32 2, %v1247
    %v1249 = vrot.slane %v1232, %v1248
    %v1250 = vlaneseq
    %v1251 = vshrl.u32 %v1250, 7
    %v1252 = vsub.s32 3, %v1251
    %v1253 = vrot.slane %v1232, %v1252
    %v1258 = vadd.f32 %v1233, %v1241
    %v1259 = vadd.f32 %v1234, %v1245
    %v1260 = vadd.f32 %v1235, %v1249
    %v1261 = vadd.f32 %v1236, %v1253
    %vm1262 = vcmp.gt.f32.partialorder %v1258, 0.0
    %vm1263 = vcmp.gt.f32.partialorder %v1259, 0.0
    %vm1264 = vcmp.gt.f32.partialorder %v1260, 0.0
    %vm1265 = vcmp.gt.f32.partialorder %v1261, 0.0
    %v1266 = vmul.f32 %v1258, 0.2
    %v1267 = vmul.f32 %v1259, 0.2
    %v1268 = vmul.f32 %v1260, 0.2
    %v1269 = vmul.f32 %v1261, 0.2
    %v1270 = vsel %vm1262, %v1258, %v1266
    %v1271 = vsel %vm1263, %v1259, %v1267
    %v1272 = vsel %vm1264, %v1260, %v1268
    %v1273 = vsel %vm1265, %v1261, %v1269
    %s1274 = smul.u32 4, 64
    %s1275 = smul.u32 %s1274, 8
    %s1276 = sshll.u32 %s1275, 4
    %1277 = dma.done [#allocation4], %s1276
    %v1278 = vpack.c.bf16 %v1270, %v1270
    %v1279 = vpack.c.bf16 %v1271, %v1271
    %v1280 = vpack.c.bf16 %v1272, %v1272
    %v1281 = vpack.c.bf16 %v1273, %v1273
    %v1282 = vld [vmem:[#allocation2] sm:$0xff]
    %v1283 = vld [vmem:[#allocation2 + $0x8] sm:$0xff]
    %v1284 = vld [vmem:[#allocation2 + $0x10] sm:$0xff]
    %v1285 = vld [vmem:[#allocation2 + $0x18] sm:$0xff]
    %v1286 = vld [vmem:[#allocation2 + $0x20] sm:$0xff]
    %v1287 = vld [vmem:[#allocation2 + $0x28] sm:$0xff]
    %v1288 = vld [vmem:[#allocation2 + $0x30] sm:$0xff]
    %v1289 = vld [vmem:[#allocation2 + $0x38] sm:$0xff]
    %v1290 = vld [vmem:[#allocation2 + $0x40] sm:$0xff]
    %v1291 = vld [vmem:[#allocation2 + $0x48] sm:$0xff]
    %v1292 = vld [vmem:[#allocation2 + $0x50] sm:$0xff]
    %v1293 = vld [vmem:[#allocation2 + $0x58] sm:$0xff]
    %v1294 = vld [vmem:[#allocation2 + $0x60] sm:$0xff]
    %v1295 = vld [vmem:[#allocation2 + $0x68] sm:$0xff]
    %v1296 = vld [vmem:[#allocation2 + $0x70] sm:$0xff]
    %v1297 = vld [vmem:[#allocation2 + $0x78] sm:$0xff]
    %v1298 = vld [vmem:[#allocation2 + $0x80] sm:$0xff]
    %v1299 = vld [vmem:[#allocation2 + $0x88] sm:$0xff]
    %v1300 = vld [vmem:[#allocation2 + $0x90] sm:$0xff]
    %v1301 = vld [vmem:[#allocation2 + $0x98] sm:$0xff]
    %v1302 = vld [vmem:[#allocation2 + $0xa0] sm:$0xff]
    %v1303 = vld [vmem:[#allocation2 + $0xa8] sm:$0xff]
    %v1304 = vld [vmem:[#allocation2 + $0xb0] sm:$0xff]
    %v1305 = vld [vmem:[#allocation2 + $0xb8] sm:$0xff]
    %v1306 = vld [vmem:[#allocation2 + $0xc0] sm:$0xff]
    %v1307 = vld [vmem:[#allocation2 + $0xc8] sm:$0xff]
    %v1308 = vld [vmem:[#allocation2 + $0xd0] sm:$0xff]
    %v1309 = vld [vmem:[#allocation2 + $0xd8] sm:$0xff]
    %v1310 = vld [vmem:[#allocation2 + $0xe0] sm:$0xff]
    %v1311 = vld [vmem:[#allocation2 + $0xe8] sm:$0xff]
    %v1312 = vld [vmem:[#allocation2 + $0xf0] sm:$0xff]
    %v1313 = vld [vmem:[#allocation2 + $0xf8] sm:$0xff]
    %v1314 = vld [vmem:[#allocation2 + $0x100] sm:$0xff]
    %v1315 = vld [vmem:[#allocation2 + $0x108] sm:$0xff]
    %v1316 = vld [vmem:[#allocation2 + $0x110] sm:$0xff]
    %v1317 = vld [vmem:[#allocation2 + $0x118] sm:$0xff]
    %v1318 = vld [vmem:[#allocation2 + $0x120] sm:$0xff]
    %v1319 = vld [vmem:[#allocation2 + $0x128] sm:$0xff]
    %v1320 = vld [vmem:[#allocation2 + $0x130] sm:$0xff]
    %v1321 = vld [vmem:[#allocation2 + $0x138] sm:$0xff]
    %v1322 = vld [vmem:[#allocation2 + $0x140] sm:$0xff]
    %v1323 = vld [vmem:[#allocation2 + $0x148] sm:$0xff]
    %v1324 = vld [vmem:[#allocation2 + $0x150] sm:$0xff]
    %v1325 = vld [vmem:[#allocation2 + $0x158] sm:$0xff]
    %v1326 = vld [vmem:[#allocation2 + $0x160] sm:$0xff]
    %v1327 = vld [vmem:[#allocation2 + $0x168] sm:$0xff]
    %v1328 = vld [vmem:[#allocation2 + $0x170] sm:$0xff]
    %v1329 = vld [vmem:[#allocation2 + $0x178] sm:$0xff]
    %v1330 = vld [vmem:[#allocation2 + $0x180] sm:$0xff]
    %v1331 = vld [vmem:[#allocation2 + $0x188] sm:$0xff]
    %v1332 = vld [vmem:[#allocation2 + $0x190] sm:$0xff]
    %v1333 = vld [vmem:[#allocation2 + $0x198] sm:$0xff]
    %v1334 = vld [vmem:[#allocation2 + $0x1a0] sm:$0xff]
    %v1335 = vld [vmem:[#allocation2 + $0x1a8] sm:$0xff]
    %v1336 = vld [vmem:[#allocation2 + $0x1b0] sm:$0xff]
    %v1337 = vld [vmem:[#allocation2 + $0x1b8] sm:$0xff]
    %v1338 = vld [vmem:[#allocation2 + $0x1c0] sm:$0xff]
    %v1339 = vld [vmem:[#allocation2 + $0x1c8] sm:$0xff]
    %v1340 = vld [vmem:[#allocation2 + $0x1d0] sm:$0xff]
    %v1341 = vld [vmem:[#allocation2 + $0x1d8] sm:$0xff]
    %v1342 = vld [vmem:[#allocation2 + $0x1e0] sm:$0xff]
    %v1343 = vld [vmem:[#allocation2 + $0x1e8] sm:$0xff]
    %v1344 = vld [vmem:[#allocation2 + $0x1f0] sm:$0xff]
    %v1345 = vld [vmem:[#allocation2 + $0x1f8] sm:$0xff]
    %v1346 = vld [vmem:[#allocation2 + $0x200] sm:$0xff]
    %v1347 = vld [vmem:[#allocation2 + $0x208] sm:$0xff]
    %v1348 = vld [vmem:[#allocation2 + $0x210] sm:$0xff]
    %v1349 = vld [vmem:[#allocation2 + $0x218] sm:$0xff]
    %v1350 = vld [vmem:[#allocation2 + $0x220] sm:$0xff]
    %v1351 = vld [vmem:[#allocation2 + $0x228] sm:$0xff]
    %v1352 = vld [vmem:[#allocation2 + $0x230] sm:$0xff]
    %v1353 = vld [vmem:[#allocation2 + $0x238] sm:$0xff]
    %v1354 = vld [vmem:[#allocation2 + $0x240] sm:$0xff]
    %v1355 = vld [vmem:[#allocation2 + $0x248] sm:$0xff]
    %v1356 = vld [vmem:[#allocation2 + $0x250] sm:$0xff]
    %v1357 = vld [vmem:[#allocation2 + $0x258] sm:$0xff]
    %v1358 = vld [vmem:[#allocation2 + $0x260] sm:$0xff]
    %v1359 = vld [vmem:[#allocation2 + $0x268] sm:$0xff]
    %v1360 = vld [vmem:[#allocation2 + $0x270] sm:$0xff]
    %v1361 = vld [vmem:[#allocation2 + $0x278] sm:$0xff]
    %v1362 = vld [vmem:[#allocation2 + $0x280] sm:$0xff]
    %v1363 = vld [vmem:[#allocation2 + $0x288] sm:$0xff]
    %v1364 = vld [vmem:[#allocation2 + $0x290] sm:$0xff]
    %v1365 = vld [vmem:[#allocation2 + $0x298] sm:$0xff]
    %v1366 = vld [vmem:[#allocation2 + $0x2a0] sm:$0xff]
    %v1367 = vld [vmem:[#allocation2 + $0x2a8] sm:$0xff]
    %v1368 = vld [vmem:[#allocation2 + $0x2b0] sm:$0xff]
    %v1369 = vld [vmem:[#allocation2 + $0x2b8] sm:$0xff]
    %v1370 = vld [vmem:[#allocation2 + $0x2c0] sm:$0xff]
    %v1371 = vld [vmem:[#allocation2 + $0x2c8] sm:$0xff]
    %v1372 = vld [vmem:[#allocation2 + $0x2d0] sm:$0xff]
    %v1373 = vld [vmem:[#allocation2 + $0x2d8] sm:$0xff]
    %v1374 = vld [vmem:[#allocation2 + $0x2e0] sm:$0xff]
    %v1375 = vld [vmem:[#allocation2 + $0x2e8] sm:$0xff]
    %v1376 = vld [vmem:[#allocation2 + $0x2f0] sm:$0xff]
    %v1377 = vld [vmem:[#allocation2 + $0x2f8] sm:$0xff]
    %v1378 = vld [vmem:[#allocation2 + $0x300] sm:$0xff]
    %v1379 = vld [vmem:[#allocation2 + $0x308] sm:$0xff]
    %v1380 = vld [vmem:[#allocation2 + $0x310] sm:$0xff]
    %v1381 = vld [vmem:[#allocation2 + $0x318] sm:$0xff]
    %v1382 = vld [vmem:[#allocation2 + $0x320] sm:$0xff]
    %v1383 = vld [vmem:[#allocation2 + $0x328] sm:$0xff]
    %v1384 = vld [vmem:[#allocation2 + $0x330] sm:$0xff]
    %v1385 = vld [vmem:[#allocation2 + $0x338] sm:$0xff]
    %v1386 = vld [vmem:[#allocation2 + $0x340] sm:$0xff]
    %v1387 = vld [vmem:[#allocation2 + $0x348] sm:$0xff]
    %v1388 = vld [vmem:[#allocation2 + $0x350] sm:$0xff]
    %v1389 = vld [vmem:[#allocation2 + $0x358] sm:$0xff]
    %v1390 = vld [vmem:[#allocation2 + $0x360] sm:$0xff]
    %v1391 = vld [vmem:[#allocation2 + $0x368] sm:$0xff]
    %v1392 = vld [vmem:[#allocation2 + $0x370] sm:$0xff]
    %v1393 = vld [vmem:[#allocation2 + $0x378] sm:$0xff]
    %v1394 = vld [vmem:[#allocation2 + $0x380] sm:$0xff]
    %v1395 = vld [vmem:[#allocation2 + $0x388] sm:$0xff]
    %v1396 = vld [vmem:[#allocation2 + $0x390] sm:$0xff]
    %v1397 = vld [vmem:[#allocation2 + $0x398] sm:$0xff]
    %v1398 = vld [vmem:[#allocation2 + $0x3a0] sm:$0xff]
    %v1399 = vld [vmem:[#allocation2 + $0x3a8] sm:$0xff]
    %v1400 = vld [vmem:[#allocation2 + $0x3b0] sm:$0xff]
    %v1401 = vld [vmem:[#allocation2 + $0x3b8] sm:$0xff]
    %v1402 = vld [vmem:[#allocation2 + $0x3c0] sm:$0xff]
    %v1403 = vld [vmem:[#allocation2 + $0x3c8] sm:$0xff]
    %v1404 = vld [vmem:[#allocation2 + $0x3d0] sm:$0xff]
    %v1405 = vld [vmem:[#allocation2 + $0x3d8] sm:$0xff]
    %v1406 = vld [vmem:[#allocation2 + $0x3e0] sm:$0xff]
    %v1407 = vld [vmem:[#allocation2 + $0x3e8] sm:$0xff]
    %v1408 = vld [vmem:[#allocation2 + $0x3f0] sm:$0xff]
    %v1409 = vld [vmem:[#allocation2 + $0x3f8] sm:$0xff]
    %v1410 = vld [vmem:[#allocation2 + $0x400] sm:$0xff]
    %v1411 = vld [vmem:[#allocation2 + $0x408] sm:$0xff]
    %v1412 = vld [vmem:[#allocation2 + $0x410] sm:$0xff]
    %v1413 = vld [vmem:[#allocation2 + $0x418] sm:$0xff]
    %v1414 = vld [vmem:[#allocation2 + $0x420] sm:$0xff]
    %v1415 = vld [vmem:[#allocation2 + $0x428] sm:$0xff]
    %v1416 = vld [vmem:[#allocation2 + $0x430] sm:$0xff]
    %v1417 = vld [vmem:[#allocation2 + $0x438] sm:$0xff]
    %v1418 = vld [vmem:[#allocation2 + $0x440] sm:$0xff]
    %v1419 = vld [vmem:[#allocation2 + $0x448] sm:$0xff]
    %v1420 = vld [vmem:[#allocation2 + $0x450] sm:$0xff]
    %v1421 = vld [vmem:[#allocation2 + $0x458] sm:$0xff]
    %v1422 = vld [vmem:[#allocation2 + $0x460] sm:$0xff]
    %v1423 = vld [vmem:[#allocation2 + $0x468] sm:$0xff]
    %v1424 = vld [vmem:[#allocation2 + $0x470] sm:$0xff]
    %v1425 = vld [vmem:[#allocation2 + $0x478] sm:$0xff]
    %v1426 = vld [vmem:[#allocation2 + $0x480] sm:$0xff]
    %v1427 = vld [vmem:[#allocation2 + $0x488] sm:$0xff]
    %v1428 = vld [vmem:[#allocation2 + $0x490] sm:$0xff]
    %v1429 = vld [vmem:[#allocation2 + $0x498] sm:$0xff]
    %v1430 = vld [vmem:[#allocation2 + $0x4a0] sm:$0xff]
    %v1431 = vld [vmem:[#allocation2 + $0x4a8] sm:$0xff]
    %v1432 = vld [vmem:[#allocation2 + $0x4b0] sm:$0xff]
    %v1433 = vld [vmem:[#allocation2 + $0x4b8] sm:$0xff]
    %v1434 = vld [vmem:[#allocation2 + $0x4c0] sm:$0xff]
    %v1435 = vld [vmem:[#allocation2 + $0x4c8] sm:$0xff]
    %v1436 = vld [vmem:[#allocation2 + $0x4d0] sm:$0xff]
    %v1437 = vld [vmem:[#allocation2 + $0x4d8] sm:$0xff]
    %v1438 = vld [vmem:[#allocation2 + $0x4e0] sm:$0xff]
    %v1439 = vld [vmem:[#allocation2 + $0x4e8] sm:$0xff]
    %v1440 = vld [vmem:[#allocation2 + $0x4f0] sm:$0xff]
    %v1441 = vld [vmem:[#allocation2 + $0x4f8] sm:$0xff]
    %v1442 = vld [vmem:[#allocation2 + $0x500] sm:$0xff]
    %v1443 = vld [vmem:[#allocation2 + $0x508] sm:$0xff]
    %v1444 = vld [vmem:[#allocation2 + $0x510] sm:$0xff]
    %v1445 = vld [vmem:[#allocation2 + $0x518] sm:$0xff]
    %v1446 = vld [vmem:[#allocation2 + $0x520] sm:$0xff]
    %v1447 = vld [vmem:[#allocation2 + $0x528] sm:$0xff]
    %v1448 = vld [vmem:[#allocation2 + $0x530] sm:$0xff]
    %v1449 = vld [vmem:[#allocation2 + $0x538] sm:$0xff]
    %v1450 = vld [vmem:[#allocation2 + $0x540] sm:$0xff]
    %v1451 = vld [vmem:[#allocation2 + $0x548] sm:$0xff]
    %v1452 = vld [vmem:[#allocation2 + $0x550] sm:$0xff]
    %v1453 = vld [vmem:[#allocation2 + $0x558] sm:$0xff]
    %v1454 = vld [vmem:[#allocation2 + $0x560] sm:$0xff]
    %v1455 = vld [vmem:[#allocation2 + $0x568] sm:$0xff]
    %v1456 = vld [vmem:[#allocation2 + $0x570] sm:$0xff]
    %v1457 = vld [vmem:[#allocation2 + $0x578] sm:$0xff]
    %v1458 = vld [vmem:[#allocation2 + $0x580] sm:$0xff]
    %v1459 = vld [vmem:[#allocation2 + $0x588] sm:$0xff]
    %v1460 = vld [vmem:[#allocation2 + $0x590] sm:$0xff]
    %v1461 = vld [vmem:[#allocation2 + $0x598] sm:$0xff]
    %v1462 = vld [vmem:[#allocation2 + $0x5a0] sm:$0xff]
    %v1463 = vld [vmem:[#allocation2 + $0x5a8] sm:$0xff]
    %v1464 = vld [vmem:[#allocation2 + $0x5b0] sm:$0xff]
    %v1465 = vld [vmem:[#allocation2 + $0x5b8] sm:$0xff]
    %v1466 = vld [vmem:[#allocation2 + $0x5c0] sm:$0xff]
    %v1467 = vld [vmem:[#allocation2 + $0x5c8] sm:$0xff]
    %v1468 = vld [vmem:[#allocation2 + $0x5d0] sm:$0xff]
    %v1469 = vld [vmem:[#allocation2 + $0x5d8] sm:$0xff]
    %v1470 = vld [vmem:[#allocation2 + $0x5e0] sm:$0xff]
    %v1471 = vld [vmem:[#allocation2 + $0x5e8] sm:$0xff]
    %v1472 = vld [vmem:[#allocation2 + $0x5f0] sm:$0xff]
    %v1473 = vld [vmem:[#allocation2 + $0x5f8] sm:$0xff]
    %v1474 = vld [vmem:[#allocation2 + $0x600] sm:$0xff]
    %v1475 = vld [vmem:[#allocation2 + $0x608] sm:$0xff]
    %v1476 = vld [vmem:[#allocation2 + $0x610] sm:$0xff]
    %v1477 = vld [vmem:[#allocation2 + $0x618] sm:$0xff]
    %v1478 = vld [vmem:[#allocation2 + $0x620] sm:$0xff]
    %v1479 = vld [vmem:[#allocation2 + $0x628] sm:$0xff]
    %v1480 = vld [vmem:[#allocation2 + $0x630] sm:$0xff]
    %v1481 = vld [vmem:[#allocation2 + $0x638] sm:$0xff]
    %v1482 = vld [vmem:[#allocation2 + $0x640] sm:$0xff]
    %v1483 = vld [vmem:[#allocation2 + $0x648] sm:$0xff]
    %v1484 = vld [vmem:[#allocation2 + $0x650] sm:$0xff]
    %v1485 = vld [vmem:[#allocation2 + $0x658] sm:$0xff]
    %v1486 = vld [vmem:[#allocation2 + $0x660] sm:$0xff]
    %v1487 = vld [vmem:[#allocation2 + $0x668] sm:$0xff]
    %v1488 = vld [vmem:[#allocation2 + $0x670] sm:$0xff]
    %v1489 = vld [vmem:[#allocation2 + $0x678] sm:$0xff]
    %v1490 = vld [vmem:[#allocation2 + $0x680] sm:$0xff]
    %v1491 = vld [vmem:[#allocation2 + $0x688] sm:$0xff]
    %v1492 = vld [vmem:[#allocation2 + $0x690] sm:$0xff]
    %v1493 = vld [vmem:[#allocation2 + $0x698] sm:$0xff]
    %v1494 = vld [vmem:[#allocation2 + $0x6a0] sm:$0xff]
    %v1495 = vld [vmem:[#allocation2 + $0x6a8] sm:$0xff]
    %v1496 = vld [vmem:[#allocation2 + $0x6b0] sm:$0xff]
    %v1497 = vld [vmem:[#allocation2 + $0x6b8] sm:$0xff]
    %v1498 = vld [vmem:[#allocation2 + $0x6c0] sm:$0xff]
    %v1499 = vld [vmem:[#allocation2 + $0x6c8] sm:$0xff]
    %v1500 = vld [vmem:[#allocation2 + $0x6d0] sm:$0xff]
    %v1501 = vld [vmem:[#allocation2 + $0x6d8] sm:$0xff]
    %v1502 = vld [vmem:[#allocation2 + $0x6e0] sm:$0xff]
    %v1503 = vld [vmem:[#allocation2 + $0x6e8] sm:$0xff]
    %v1504 = vld [vmem:[#allocation2 + $0x6f0] sm:$0xff]
    %v1505 = vld [vmem:[#allocation2 + $0x6f8] sm:$0xff]
    %v1506 = vld [vmem:[#allocation2 + $0x700] sm:$0xff]
    %v1507 = vld [vmem:[#allocation2 + $0x708] sm:$0xff]
    %v1508 = vld [vmem:[#allocation2 + $0x710] sm:$0xff]
    %v1509 = vld [vmem:[#allocation2 + $0x718] sm:$0xff]
    %v1510 = vld [vmem:[#allocation2 + $0x720] sm:$0xff]
    %v1511 = vld [vmem:[#allocation2 + $0x728] sm:$0xff]
    %v1512 = vld [vmem:[#allocation2 + $0x730] sm:$0xff]
    %v1513 = vld [vmem:[#allocation2 + $0x738] sm:$0xff]
    %v1514 = vld [vmem:[#allocation2 + $0x740] sm:$0xff]
    %v1515 = vld [vmem:[#allocation2 + $0x748] sm:$0xff]
    %v1516 = vld [vmem:[#allocation2 + $0x750] sm:$0xff]
    %v1517 = vld [vmem:[#allocation2 + $0x758] sm:$0xff]
    %v1518 = vld [vmem:[#allocation2 + $0x760] sm:$0xff]
    %v1519 = vld [vmem:[#allocation2 + $0x768] sm:$0xff]
    %v1520 = vld [vmem:[#allocation2 + $0x770] sm:$0xff]
    %v1521 = vld [vmem:[#allocation2 + $0x778] sm:$0xff]
    %v1522 = vld [vmem:[#allocation2 + $0x780] sm:$0xff]
    %v1523 = vld [vmem:[#allocation2 + $0x788] sm:$0xff]
    %v1524 = vld [vmem:[#allocation2 + $0x790] sm:$0xff]
    %v1525 = vld [vmem:[#allocation2 + $0x798] sm:$0xff]
    %v1526 = vld [vmem:[#allocation2 + $0x7a0] sm:$0xff]
    %v1527 = vld [vmem:[#allocation2 + $0x7a8] sm:$0xff]
    %v1528 = vld [vmem:[#allocation2 + $0x7b0] sm:$0xff]
    %v1529 = vld [vmem:[#allocation2 + $0x7b8] sm:$0xff]
    %v1530 = vld [vmem:[#allocation2 + $0x7c0] sm:$0xff]
    %v1531 = vld [vmem:[#allocation2 + $0x7c8] sm:$0xff]
    %v1532 = vld [vmem:[#allocation2 + $0x7d0] sm:$0xff]
    %v1533 = vld [vmem:[#allocation2 + $0x7d8] sm:$0xff]
    %v1534 = vld [vmem:[#allocation2 + $0x7e0] sm:$0xff]
    %v1535 = vld [vmem:[#allocation2 + $0x7e8] sm:$0xff]
    %v1536 = vld [vmem:[#allocation2 + $0x7f0] sm:$0xff]
    %v1537 = vld [vmem:[#allocation2 + $0x7f8] sm:$0xff]
    %v1538 = vld [vmem:[#allocation5 + $0x13] sm:$0xff]
    %v1540 = vlaneseq
    %v1541 = vshrl.u32 %v1540, 7
    %v1542 = vsub.s32 0, %v1541
    %v1543 = vrot.slane %v1538, %v1542
    %v1544 = vlaneseq
    %v1545 = vshrl.u32 %v1544, 7
    %v1546 = vsub.s32 1, %v1545
    %v1547 = vrot.slane %v1538, %v1546
    %v1548 = vlaneseq
    %v1549 = vshrl.u32 %v1548, 7
    %v1550 = vsub.s32 2, %v1549
    %v1551 = vrot.slane %v1538, %v1550
    %v1552 = vlaneseq
    %v1553 = vshrl.u32 %v1552, 7
    %v1554 = vsub.s32 3, %v1553
    %v1555 = vrot.slane %v1538, %v1554
    %v1556 = vlaneseq
    %v1557 = vshrl.u32 %v1556, 7
    %v1558 = vsub.s32 4, %v1557
    %v1559 = vrot.slane %v1538, %v1558
    %v1560 = vlaneseq
    %v1561 = vshrl.u32 %v1560, 7
    %v1562 = vsub.s32 5, %v1561
    %v1563 = vrot.slane %v1538, %v1562
    %v1564 = vlaneseq
    %v1565 = vshrl.u32 %v1564, 7
    %v1566 = vsub.s32 6, %v1565
    %v1567 = vrot.slane %v1538, %v1566
    %v1568 = vlaneseq
    %v1569 = vshrl.u32 %v1568, 7
    %v1570 = vsub.s32 7, %v1569
    %v1571 = vrot.slane %v1538, %v1570
    %1580 = vmatprep.subr.bf16.mxu0 %v1283
    %1581 = vmatpush1.bf16.msra.mxu0 %v1282
    %1582 = vmatprep.subr.bf16.mxu0 %v1291
    %1583 = vmatpush1.bf16.msra.mxu0 %v1290
    %1584 = vmatprep.subr.bf16.mxu0 %v1299
    %1585 = vmatpush1.bf16.msra.mxu0 %v1298
    %1586 = vmatprep.subr.bf16.mxu0 %v1307
    %1587 = vmatpush1.bf16.msra.mxu0 %v1306
    %1588 = vmatprep.subr.bf16.mxu0 %v1315
    %1589 = vmatpush1.bf16.msra.mxu0 %v1314
    %1590 = vmatprep.subr.bf16.mxu0 %v1323
    %1591 = vmatpush1.bf16.msra.mxu0 %v1322
    %1592 = vmatprep.subr.bf16.mxu0 %v1331
    %1593 = vmatpush1.bf16.msra.mxu0 %v1330
    %1594 = vmatprep.subr.bf16.mxu0 %v1339
    %1595 = vmatpush1.bf16.msra.mxu0 %v1338
    %1596 = vmatprep.subr.bf16.mxu0 %v1347
    %1597 = vmatpush1.bf16.msra.mxu0 %v1346
    %1598 = vmatprep.subr.bf16.mxu0 %v1355
    %1599 = vmatpush1.bf16.msra.mxu0 %v1354
    %1600 = vmatprep.subr.bf16.mxu0 %v1363
    %1601 = vmatpush1.bf16.msra.mxu0 %v1362
    %1602 = vmatprep.subr.bf16.mxu0 %v1371
    %1603 = vmatpush1.bf16.msra.mxu0 %v1370
    %1604 = vmatprep.subr.bf16.mxu0 %v1379
    %1605 = vmatpush1.bf16.msra.mxu0 %v1378
    %1606 = vmatprep.subr.bf16.mxu0 %v1387
    %1607 = vmatpush1.bf16.msra.mxu0 %v1386
    %1608 = vmatprep.subr.bf16.mxu0 %v1395
    %1609 = vmatpush1.bf16.msra.mxu0 %v1394
    %1610 = vmatprep.subr.bf16.mxu0 %v1403
    %1611 = vmatpush1.bf16.msra.mxu0 %v1402
    %1612 = vmatprep.mubr.bf16.mxu0 %v1279
    %1613 = vmatmul.mubr.bf16.gmra.mrb[0].mxu0 %v1278
    %v1614 = vpop.f32.mrb[0].mxu0
    %v1615 = vadd.f32 %v1543, %v1614
    %v1616 = vpop.f32.mrb[0].mxu0
    %v1617 = vadd.f32 %v1547, %v1616
    %v1618 = vpop.f32.mrb[0].mxu0
    %v1619 = vpop.f32.mrb[0].mxu0
    %1620 = vdwg.mxu0
    %1621 = vmatprep.subr.bf16.mxu0 %v1411
    %1622 = vmatpush1.bf16.msra.mxu0 %v1410
    %1623 = vmatprep.subr.bf16.mxu0 %v1419
    %1624 = vmatpush1.bf16.msra.mxu0 %v1418
    %1625 = vmatprep.subr.bf16.mxu0 %v1427
    %1626 = vmatpush1.bf16.msra.mxu0 %v1426
    %1627 = vmatprep.subr.bf16.mxu0 %v1435
    %1628 = vmatpush1.bf16.msra.mxu0 %v1434
    %1629 = vmatprep.subr.bf16.mxu0 %v1443
    %1630 = vmatpush1.bf16.msra.mxu0 %v1442
    %1631 = vmatprep.subr.bf16.mxu0 %v1451
    %1632 = vmatpush1.bf16.msra.mxu0 %v1450
    %1633 = vmatprep.subr.bf16.mxu0 %v1459
    %1634 = vmatpush1.bf16.msra.mxu0 %v1458
    %1635 = vmatprep.subr.bf16.mxu0 %v1467
    %1636 = vmatpush1.bf16.msra.mxu0 %v1466
    %1637 = vmatprep.subr.bf16.mxu0 %v1475
    %1638 = vmatpush1.bf16.msra.mxu0 %v1474
    %1639 = vmatprep.subr.bf16.mxu0 %v1483
    %1640 = vmatpush1.bf16.msra.mxu0 %v1482
    %1641 = vmatprep.subr.bf16.mxu0 %v1491
    %1642 = vmatpush1.bf16.msra.mxu0 %v1490
    %1643 = vmatprep.subr.bf16.mxu0 %v1499
    %1644 = vmatpush1.bf16.msra.mxu0 %v1498
    %1645 = vmatprep.subr.bf16.mxu0 %v1507
    %1646 = vmatpush1.bf16.msra.mxu0 %v1506
    %1647 = vmatprep.subr.bf16.mxu0 %v1515
    %1648 = vmatpush1.bf16.msra.mxu0 %v1514
    %1649 = vmatprep.subr.bf16.mxu0 %v1523
    %1650 = vmatpush1.bf16.msra.mxu0 %v1522
    %1651 = vmatprep.subr.bf16.mxu0 %v1531
    %1652 = vmatpush1.bf16.msra.mxu0 %v1530
    %1653 = vmatprep.mubr.bf16.mxu0 %v1281
    %1654 = vmatmul.mubr.bf16.gmra.mrb[0].mxu0 %v1280
    %v1655 = vpop.f32.mrb[0].mxu0
    %v1656 = vadd.f32 %v1615, %v1655
    %v1657 = vpop.f32.mrb[0].mxu0
    %v1658 = vadd.f32 %v1617, %v1657
    %v1659 = vpop.f32.mrb[0].mxu0
    %v1660 = vpop.f32.mrb[0].mxu0
    %1661 = vdwg.mxu0
    %1662 = vmatprep.subr.bf16.mxu0 %v1285
    %1663 = vmatpush1.bf16.msra.mxu0 %v1284
    %1664 = vmatprep.subr.bf16.mxu0 %v1293
    %1665 = vmatpush1.bf16.msra.mxu0 %v1292
    %1666 = vmatprep.subr.bf16.mxu0 %v1301
    %1667 = vmatpush1.bf16.msra.mxu0 %v1300
    %1668 = vmatprep.subr.bf16.mxu0 %v1309
    %1669 = vmatpush1.bf16.msra.mxu0 %v1308
    %1670 = vmatprep.subr.bf16.mxu0 %v1317
    %1671 = vmatpush1.bf16.msra.mxu0 %v1316
    %1672 = vmatprep.subr.bf16.mxu0 %v1325
    %1673 = vmatpush1.bf16.msra.mxu0 %v1324
    %1674 = vmatprep.subr.bf16.mxu0 %v1333
    %1675 = vmatpush1.bf16.msra.mxu0 %v1332
    %1676 = vmatprep.subr.bf16.mxu0 %v1341
    %1677 = vmatpush1.bf16.msra.mxu0 %v1340
    %1678 = vmatprep.subr.bf16.mxu0 %v1349
    %1679 = vmatpush1.bf16.msra.mxu0 %v1348
    %1680 = vmatprep.subr.bf16.mxu0 %v1357
    %1681 = vmatpush1.bf16.msra.mxu0 %v1356
    %1682 = vmatprep.subr.bf16.mxu0 %v1365
    %1683 = vmatpush1.bf16.msra.mxu0 %v1364
    %1684 = vmatprep.subr.bf16.mxu0 %v1373
    %1685 = vmatpush1.bf16.msra.mxu0 %v1372
    %1686 = vmatprep.subr.bf16.mxu0 %v1381
    %1687 = vmatpush1.bf16.msra.mxu0 %v1380
    %1688 = vmatprep.subr.bf16.mxu0 %v1389
    %1689 = vmatpush1.bf16.msra.mxu0 %v1388
    %1690 = vmatprep.subr.bf16.mxu0 %v1397
    %1691 = vmatpush1.bf16.msra.mxu0 %v1396
    %1692 = vmatprep.subr.bf16.mxu0 %v1405
    %1693 = vmatpush1.bf16.msra.mxu0 %v1404
    %1694 = vmatprep.mubr.bf16.mxu0 %v1279
    %1695 = vmatmul.mubr.bf16.gmra.mrb[0].mxu0 %v1278
    %v1696 = vpop.f32.mrb[0].mxu0
    %v1697 = vadd.f32 %v1551, %v1696
    %v1698 = vpop.f32.mrb[0].mxu0
    %v1699 = vadd.f32 %v1555, %v1698
    %v1700 = vpop.f32.mrb[0].mxu0
    %v1701 = vpop.f32.mrb[0].mxu0
    %1702 = vdwg.mxu0
    %1703 = vmatprep.subr.bf16.mxu0 %v1413
    %1704 = vmatpush1.bf16.msra.mxu0 %v1412
    %1705 = vmatprep.subr.bf16.mxu0 %v1421
    %1706 = vmatpush1.bf16.msra.mxu0 %v1420
    %1707 = vmatprep.subr.bf16.mxu0 %v1429
    %1708 = vmatpush1.bf16.msra.mxu0 %v1428
    %1709 = vmatprep.subr.bf16.mxu0 %v1437
    %1710 = vmatpush1.bf16.msra.mxu0 %v1436
    %1711 = vmatprep.subr.bf16.mxu0 %v1445
    %1712 = vmatpush1.bf16.msra.mxu0 %v1444
    %1713 = vmatprep.subr.bf16.mxu0 %v1453
    %1714 = vmatpush1.bf16.msra.mxu0 %v1452
    %1715 = vmatprep.subr.bf16.mxu0 %v1461
    %1716 = vmatpush1.bf16.msra.mxu0 %v1460
    %1717 = vmatprep.subr.bf16.mxu0 %v1469
    %1718 = vmatpush1.bf16.msra.mxu0 %v1468
    %1719 = vmatprep.subr.bf16.mxu0 %v1477
    %1720 = vmatpush1.bf16.msra.mxu0 %v1476
    %1721 = vmatprep.subr.bf16.mxu0 %v1485
    %1722 = vmatpush1.bf16.msra.mxu0 %v1484
    %1723 = vmatprep.subr.bf16.mxu0 %v1493
    %1724 = vmatpush1.bf16.msra.mxu0 %v1492
    %1725 = vmatprep.subr.bf16.mxu0 %v1501
    %1726 = vmatpush1.bf16.msra.mxu0 %v1500
    %1727 = vmatprep.subr.bf16.mxu0 %v1509
    %1728 = vmatpush1.bf16.msra.mxu0 %v1508
    %1729 = vmatprep.subr.bf16.mxu0 %v1517
    %1730 = vmatpush1.bf16.msra.mxu0 %v1516
    %1731 = vmatprep.subr.bf16.mxu0 %v1525
    %1732 = vmatpush1.bf16.msra.mxu0 %v1524
    %1733 = vmatprep.subr.bf16.mxu0 %v1533
    %1734 = vmatpush1.bf16.msra.mxu0 %v1532
    %1735 = vmatprep.mubr.bf16.mxu0 %v1281
    %1736 = vmatmul.mubr.bf16.gmra.mrb[0].mxu0 %v1280
    %v1737 = vpop.f32.mrb[0].mxu0
    %v1738 = vadd.f32 %v1697, %v1737
    %v1739 = vpop.f32.mrb[0].mxu0
    %v1740 = vadd.f32 %v1699, %v1739
    %v1741 = vpop.f32.mrb[0].mxu0
    %v1742 = vpop.f32.mrb[0].mxu0
    %1743 = vdwg.mxu0
    %1744 = vmatprep.subr.bf16.mxu0 %v1287
    %1745 = vmatpush1.bf16.msra.mxu0 %v1286
    %1746 = vmatprep.subr.bf16.mxu0 %v1295
    %1747 = vmatpush1.bf16.msra.mxu0 %v1294
    %1748 = vmatprep.subr.bf16.mxu0 %v1303
    %1749 = vmatpush1.bf16.msra.mxu0 %v1302
    %1750 = vmatprep.subr.bf16.mxu0 %v1311
    %1751 = vmatpush1.bf16.msra.mxu0 %v1310
    %1752 = vmatprep.subr.bf16.mxu0 %v1319
    %1753 = vmatpush1.bf16.msra.mxu0 %v1318
    %1754 = vmatprep.subr.bf16.mxu0 %v1327
    %1755 = vmatpush1.bf16.msra.mxu0 %v1326
    %1756 = vmatprep.subr.bf16.mxu0 %v1335
    %1757 = vmatpush1.bf16.msra.mxu0 %v1334
    %1758 = vmatprep.subr.bf16.mxu0 %v1343
    %1759 = vmatpush1.bf16.msra.mxu0 %v1342
    %1760 = vmatprep.subr.bf16.mxu0 %v1351
    %1761 = vmatpush1.bf16.msra.mxu0 %v1350
    %1762 = vmatprep.subr.bf16.mxu0 %v1359
    %1763 = vmatpush1.bf16.msra.mxu0 %v1358
    %1764 = vmatprep.subr.bf16.mxu0 %v1367
    %1765 = vmatpush1.bf16.msra.mxu0 %v1366
    %1766 = vmatprep.subr.bf16.mxu0 %v1375
    %1767 = vmatpush1.bf16.msra.mxu0 %v1374
    %1768 = vmatprep.subr.bf16.mxu0 %v1383
    %1769 = vmatpush1.bf16.msra.mxu0 %v1382
    %1770 = vmatprep.subr.bf16.mxu0 %v1391
    %1771 = vmatpush1.bf16.msra.mxu0 %v1390
    %1772 = vmatprep.subr.bf16.mxu0 %v1399
    %1773 = vmatpush1.bf16.msra.mxu0 %v1398
    %1774 = vmatprep.subr.bf16.mxu0 %v1407
    %1775 = vmatpush1.bf16.msra.mxu0 %v1406
    %1776 = vmatprep.mubr.bf16.mxu0 %v1279
    %1777 = vmatmul.mubr.bf16.gmra.mrb[0].mxu0 %v1278
    %v1778 = vpop.f32.mrb[0].mxu0
    %v1779 = vadd.f32 %v1559, %v1778
    %v1780 = vpop.f32.mrb[0].mxu0
    %v1781 = vadd.f32 %v1563, %v1780
    %v1782 = vpop.f32.mrb[0].mxu0
    %v1783 = vpop.f32.mrb[0].mxu0
    %1784 = vdwg.mxu0
    %1785 = vmatprep.subr.bf16.mxu0 %v1415
    %1786 = vmatpush1.bf16.msra.mxu0 %v1414
    %1787 = vmatprep.subr.bf16.mxu0 %v1423
    %1788 = vmatpush1.bf16.msra.mxu0 %v1422
    %1789 = vmatprep.subr.bf16.mxu0 %v1431
    %1790 = vmatpush1.bf16.msra.mxu0 %v1430
    %1791 = vmatprep.subr.bf16.mxu0 %v1439
    %1792 = vmatpush1.bf16.msra.mxu0 %v1438
    %1793 = vmatprep.subr.bf16.mxu0 %v1447
    %1794 = vmatpush1.bf16.msra.mxu0 %v1446
    %1795 = vmatprep.subr.bf16.mxu0 %v1455
    %1796 = vmatpush1.bf16.msra.mxu0 %v1454
    %1797 = vmatprep.subr.bf16.mxu0 %v1463
    %1798 = vmatpush1.bf16.msra.mxu0 %v1462
    %1799 = vmatprep.subr.bf16.mxu0 %v1471
    %1800 = vmatpush1.bf16.msra.mxu0 %v1470
    %1801 = vmatprep.subr.bf16.mxu0 %v1479
    %1802 = vmatpush1.bf16.msra.mxu0 %v1478
    %1803 = vmatprep.subr.bf16.mxu0 %v1487
    %1804 = vmatpush1.bf16.msra.mxu0 %v1486
    %1805 = vmatprep.subr.bf16.mxu0 %v1495
    %1806 = vmatpush1.bf16.msra.mxu0 %v1494
    %1807 = vmatprep.subr.bf16.mxu0 %v1503
    %1808 = vmatpush1.bf16.msra.mxu0 %v1502
    %1809 = vmatprep.subr.bf16.mxu0 %v1511
    %1810 = vmatpush1.bf16.msra.mxu0 %v1510
    %1811 = vmatprep.subr.bf16.mxu0 %v1519
    %1812 = vmatpush1.bf16.msra.mxu0 %v1518
    %1813 = vmatprep.subr.bf16.mxu0 %v1527
    %1814 = vmatpush1.bf16.msra.mxu0 %v1526
    %1815 = vmatprep.subr.bf16.mxu0 %v1535
    %1816 = vmatpush1.bf16.msra.mxu0 %v1534
    %1817 = vmatprep.mubr.bf16.mxu0 %v1281
    %1818 = vmatmul.mubr.bf16.gmra.mrb[0].mxu0 %v1280
    %v1819 = vpop.f32.mrb[0].mxu0
    %v1820 = vadd.f32 %v1779, %v1819
    %v1821 = vpop.f32.mrb[0].mxu0
    %v1822 = vadd.f32 %v1781, %v1821
    %v1823 = vpop.f32.mrb[0].mxu0
    %v1824 = vpop.f32.mrb[0].mxu0
    %1825 = vdwg.mxu0
    %1826 = vmatprep.subr.bf16.mxu0 %v1289
    %1827 = vmatpush1.bf16.msra.mxu0 %v1288
    %1828 = vmatprep.subr.bf16.mxu0 %v1297
    %1829 = vmatpush1.bf16.msra.mxu0 %v1296
    %1830 = vmatprep.subr.bf16.mxu0 %v1305
    %1831 = vmatpush1.bf16.msra.mxu0 %v1304
    %1832 = vmatprep.subr.bf16.mxu0 %v1313
    %1833 = vmatpush1.bf16.msra.mxu0 %v1312
    %1834 = vmatprep.subr.bf16.mxu0 %v1321
    %1835 = vmatpush1.bf16.msra.mxu0 %v1320
    %1836 = vmatprep.subr.bf16.mxu0 %v1329
    %1837 = vmatpush1.bf16.msra.mxu0 %v1328
    %1838 = vmatprep.subr.bf16.mxu0 %v1337
    %1839 = vmatpush1.bf16.msra.mxu0 %v1336
    %1840 = vmatprep.subr.bf16.mxu0 %v1345
    %1841 = vmatpush1.bf16.msra.mxu0 %v1344
    %1842 = vmatprep.subr.bf16.mxu0 %v1353
    %1843 = vmatpush1.bf16.msra.mxu0 %v1352
    %1844 = vmatprep.subr.bf16.mxu0 %v1361
    %1845 = vmatpush1.bf16.msra.mxu0 %v1360
    %1846 = vmatprep.subr.bf16.mxu0 %v1369
    %1847 = vmatpush1.bf16.msra.mxu0 %v1368
    %1848 = vmatprep.subr.bf16.mxu0 %v1377
    %1849 = vmatpush1.bf16.msra.mxu0 %v1376
    %1850 = vmatprep.subr.bf16.mxu0 %v1385
    %1851 = vmatpush1.bf16.msra.mxu0 %v1384
    %1852 = vmatprep.subr.bf16.mxu0 %v1393
    %1853 = vmatpush1.bf16.msra.mxu0 %v1392
    %1854 = vmatprep.subr.bf16.mxu0 %v1401
    %1855 = vmatpush1.bf16.msra.mxu0 %v1400
    %1856 = vmatprep.subr.bf16.mxu0 %v1409
    %1857 = vmatpush1.bf16.msra.mxu0 %v1408
    %1858 = vmatprep.mubr.bf16.mxu0 %v1279
    %1859 = vmatmul.mubr.bf16.gmra.mrb[0].mxu0 %v1278
    %v1860 = vpop.f32.mrb[0].mxu0
    %v1861 = vadd.f32 %v1567, %v1860
    %v1862 = vpop.f32.mrb[0].mxu0
    %v1863 = vadd.f32 %v1571, %v1862
    %v1864 = vpop.f32.mrb[0].mxu0
    %v1865 = vpop.f32.mrb[0].mxu0
    %1866 = vdwg.mxu0
    %1867 = vmatprep.subr.bf16.mxu0 %v1417
    %1868 = vmatpush1.bf16.msra.mxu0 %v1416
    %1869 = vmatprep.subr.bf16.mxu0 %v1425
    %1870 = vmatpush1.bf16.msra.mxu0 %v1424
    %1871 = vmatprep.subr.bf16.mxu0 %v1433
    %1872 = vmatpush1.bf16.msra.mxu0 %v1432
    %1873 = vmatprep.subr.bf16.mxu0 %v1441
    %1874 = vmatpush1.bf16.msra.mxu0 %v1440
    %1875 = vmatprep.subr.bf16.mxu0 %v1449
    %1876 = vmatpush1.bf16.msra.mxu0 %v1448
    %1877 = vmatprep.subr.bf16.mxu0 %v1457
    %1878 = vmatpush1.bf16.msra.mxu0 %v1456
    %1879 = vmatprep.subr.bf16.mxu0 %v1465
    %1880 = vmatpush1.bf16.msra.mxu0 %v1464
    %1881 = vmatprep.subr.bf16.mxu0 %v1473
    %1882 = vmatpush1.bf16.msra.mxu0 %v1472
    %1883 = vmatprep.subr.bf16.mxu0 %v1481
    %1884 = vmatpush1.bf16.msra.mxu0 %v1480
    %1885 = vmatprep.subr.bf16.mxu0 %v1489
    %1886 = vmatpush1.bf16.msra.mxu0 %v1488
    %1887 = vmatprep.subr.bf16.mxu0 %v1497
    %1888 = vmatpush1.bf16.msra.mxu0 %v1496
    %1889 = vmatprep.subr.bf16.mxu0 %v1505
    %1890 = vmatpush1.bf16.msra.mxu0 %v1504
    %1891 = vmatprep.subr.bf16.mxu0 %v1513
    %1892 = vmatpush1.bf16.msra.mxu0 %v1512
    %1893 = vmatprep.subr.bf16.mxu0 %v1521
    %1894 = vmatpush1.bf16.msra.mxu0 %v1520
    %1895 = vmatprep.subr.bf16.mxu0 %v1529
    %1896 = vmatpush1.bf16.msra.mxu0 %v1528
    %1897 = vmatprep.subr.bf16.mxu0 %v1537
    %1898 = vmatpush1.bf16.msra.mxu0 %v1536
    %1899 = vmatprep.mubr.bf16.mxu0 %v1281
    %1900 = vmatmul.mubr.bf16.gmra.mrb[0].mxu0 %v1280
    %v1901 = vpop.f32.mrb[0].mxu0
    %v1902 = vadd.f32 %v1861, %v1901
    %v1903 = vpop.f32.mrb[0].mxu0
    %v1904 = vadd.f32 %v1863, %v1903
    %v1905 = vpop.f32.mrb[0].mxu0
    %v1906 = vpop.f32.mrb[0].mxu0
    %1907 = vdwg.mxu0
    %v1908 = vld [vmem:[#allocation5 + $0x1b] sm:$0xff]
    %v1909 = vld [vmem:[#allocation5 + $0x23] sm:$0xff]
    %v1910 = vrot.slane %v1656, 4
    %v1911 = vadd.f32 %v1656, %v1910
    %v1912 = vrot.slane %v1911, 2
    %v1913 = vadd.f32 %v1911, %v1912
    %v1914 = vrot.slane %v1913, 1
    %v1915 = vadd.f32 %v1913, %v1914
    %v1916 = vrot.slane %v1658, 4
    %v1917 = vadd.f32 %v1658, %v1916
    %v1918 = vrot.slane %v1917, 2
    %v1919 = vadd.f32 %v1917, %v1918
    %v1920 = vrot.slane %v1919, 1
    %v1921 = vadd.f32 %v1919, %v1920
    %v1922 = vrot.slane %v1738, 4
    %v1923 = vadd.f32 %v1738, %v1922
    %v1924 = vrot.slane %v1923, 2
    %v1925 = vadd.f32 %v1923, %v1924
    %v1926 = vrot.slane %v1925, 1
    %v1927 = vadd.f32 %v1925, %v1926
    %v1928 = vrot.slane %v1740, 4
    %v1929 = vadd.f32 %v1740, %v1928
    %v1930 = vrot.slane %v1929, 2
    %v1931 = vadd.f32 %v1929, %v1930
    %v1932 = vrot.slane %v1931, 1
    %v1933 = vadd.f32 %v1931, %v1932
    %v1934 = vrot.slane %v1820, 4
    %v1935 = vadd.f32 %v1820, %v1934
    %v1936 = vrot.slane %v1935, 2
    %v1937 = vadd.f32 %v1935, %v1936
    %v1938 = vrot.slane %v1937, 1
    %v1939 = vadd.f32 %v1937, %v1938
    %v1940 = vrot.slane %v1822, 4
    %v1941 = vadd.f32 %v1822, %v1940
    %v1942 = vrot.slane %v1941, 2
    %v1943 = vadd.f32 %v1941, %v1942
    %v1944 = vrot.slane %v1943, 1
    %v1945 = vadd.f32 %v1943, %v1944
    %v1946 = vrot.slane %v1902, 4
    %v1947 = vadd.f32 %v1902, %v1946
    %v1948 = vrot.slane %v1947, 2
    %v1949 = vadd.f32 %v1947, %v1948
    %v1950 = vrot.slane %v1949, 1
    %v1951 = vadd.f32 %v1949, %v1950
    %v1952 = vrot.slane %v1904, 4
    %v1953 = vadd.f32 %v1904, %v1952
    %v1954 = vrot.slane %v1953, 2
    %v1955 = vadd.f32 %v1953, %v1954
    %v1956 = vrot.slane %v1955, 1
    %v1957 = vadd.f32 %v1955, %v1956
    %v1958 = vmul.f32 %v1915, %v487
    %v1959 = vmul.f32 %v1921, %v487
    %v1960 = vmul.f32 %v1927, %v487
    %v1961 = vmul.f32 %v1933, %v487
    %v1962 = vmul.f32 %v1939, %v487
    %v1963 = vmul.f32 %v1945, %v487
    %v1964 = vmul.f32 %v1951, %v487
    %v1965 = vmul.f32 %v1957, %v487
    %v1966 = vsub.f32 %v1656, %v1958
    %v1967 = vsub.f32 %v1658, %v1959
    %v1968 = vsub.f32 %v1738, %v1960
    %v1969 = vsub.f32 %v1740, %v1961
    %v1970 = vsub.f32 %v1820, %v1962
    %v1971 = vsub.f32 %v1822, %v1963
    %v1972 = vsub.f32 %v1902, %v1964
    %v1973 = vsub.f32 %v1904, %v1965
    %v1974 = vmul.f32 %v1966, %v1966
    %v1975 = vmul.f32 %v1967, %v1967
    %v1976 = vmul.f32 %v1968, %v1968
    %v1977 = vmul.f32 %v1969, %v1969
    %v1978 = vmul.f32 %v1970, %v1970
    %v1979 = vmul.f32 %v1971, %v1971
    %v1980 = vmul.f32 %v1972, %v1972
    %v1981 = vmul.f32 %v1973, %v1973
    %v1982 = vrot.slane %v1974, 4
    %v1983 = vadd.f32 %v1974, %v1982
    %v1984 = vrot.slane %v1983, 2
    %v1985 = vadd.f32 %v1983, %v1984
    %v1986 = vrot.slane %v1985, 1
    %v1987 = vadd.f32 %v1985, %v1986
    %v1988 = vrot.slane %v1975, 4
    %v1989 = vadd.f32 %v1975, %v1988
    %v1990 = vrot.slane %v1989, 2
    %v1991 = vadd.f32 %v1989, %v1990
    %v1992 = vrot.slane %v1991, 1
    %v1993 = vadd.f32 %v1991, %v1992
    %v1994 = vrot.slane %v1976, 4
    %v1995 = vadd.f32 %v1976, %v1994
    %v1996 = vrot.slane %v1995, 2
    %v1997 = vadd.f32 %v1995, %v1996
    %v1998 = vrot.slane %v1997, 1
    %v1999 = vadd.f32 %v1997, %v1998
    %v2000 = vrot.slane %v1977, 4
    %v2001 = vadd.f32 %v1977, %v2000
    %v2002 = vrot.slane %v2001, 2
    %v2003 = vadd.f32 %v2001, %v2002
    %v2004 = vrot.slane %v2003, 1
    %v2005 = vadd.f32 %v2003, %v2004
    %v2006 = vrot.slane %v1978, 4
    %v2007 = vadd.f32 %v1978, %v2006
    %v2008 = vrot.slane %v2007, 2
    %v2009 = vadd.f32 %v2007, %v2008
    %v2010 = vrot.slane %v2009, 1
    %v2011 = vadd.f32 %v2009, %v2010
    %v2012 = vrot.slane %v1979, 4
    %v2013 = vadd.f32 %v1979, %v2012
    %v2014 = vrot.slane %v2013, 2
    %v2015 = vadd.f32 %v2013, %v2014
    %v2016 = vrot.slane %v2015, 1
    %v2017 = vadd.f32 %v2015, %v2016
    %v2018 = vrot.slane %v1980, 4
    %v2019 = vadd.f32 %v1980, %v2018
    %v2020 = vrot.slane %v2019, 2
    %v2021 = vadd.f32 %v2019, %v2020
    %v2022 = vrot.slane %v2021, 1
    %v2023 = vadd.f32 %v2021, %v2022
    %v2024 = vrot.slane %v1981, 4
    %v2025 = vadd.f32 %v1981, %v2024
    %v2026 = vrot.slane %v2025, 2
    %v2027 = vadd.f32 %v2025, %v2026
    %v2028 = vrot.slane %v2027, 1
    %v2029 = vadd.f32 %v2027, %v2028
    %v2030 = vmul.f32 %v1987, %v487
    %v2031 = vmul.f32 %v1993, %v487
    %v2032 = vmul.f32 %v1999, %v487
    %v2033 = vmul.f32 %v2005, %v487
    %v2034 = vmul.f32 %v2011, %v487
    %v2035 = vmul.f32 %v2017, %v487
    %v2036 = vmul.f32 %v2023, %v487
    %v2037 = vmul.f32 %v2029, %v487
    %v2038 = vadd.f32 %v2030, 0.8
    %v2039 = vadd.f32 %v2031, 0.8
    %v2040 = vadd.f32 %v2032, 0.8
    %v2041 = vadd.f32 %v2033, 0.8
    %v2042 = vadd.f32 %v2034, 0.8
    %v2043 = vadd.f32 %v2035, 0.8
    %v2044 = vadd.f32 %v2036, 0.8
    %v2045 = vadd.f32 %v2037, 0.8
    %v2046 = vrsqrt.pop %v2038
    %v2047 = vrsqrt.pop %v2039
    %v2048 = vrsqrt.pop %v2040
    %v2049 = vrsqrt.pop %v2041
    %v2050 = vrsqrt.pop %v2042
    %v2051 = vrsqrt.pop %v2043
    %v2052 = vrsqrt.pop %v2044
    %v2053 = vrsqrt.pop %v2045
    %v2062 = vcombine.low %v2046, %v2047
    %v2063 = vcombine.low %v2048, %v2049
    %v2064 = vcombine.low %v2050, %v2051
    %v2065 = vcombine.low %v2052, %v2053
    %v2067 = vunpack.c.l.s4 1966171168
    %v2068 = vunpack.c.0.s8 %v2067
    %v2069 = vlaneseq
    %v2070 = vshrl.u32 %v2069, 7
    %v2071 = vsub.s32 %v2068, %v2070
    %v2072 = vrot.slane %v2062, %v2071
    %v2074 = vunpack.c.l.s4 1966171168
    %v2075 = vunpack.c.0.s8 %v2074
    %v2076 = vlaneseq
    %v2077 = vshrl.u32 %v2076, 7
    %v2078 = vsub.s32 %v2075, %v2077
    %v2079 = vrot.slane %v2063, %v2078
    %v2081 = vunpack.c.l.s4 1966171168
    %v2082 = vunpack.c.0.s8 %v2081
    %v2083 = vlaneseq
    %v2084 = vshrl.u32 %v2083, 7
    %v2085 = vsub.s32 %v2082, %v2084
    %v2086 = vrot.slane %v2064, %v2085
    %v2088 = vunpack.c.l.s4 1966171168
    %v2089 = vunpack.c.0.s8 %v2088
    %v2090 = vlaneseq
    %v2091 = vshrl.u32 %v2090, 7
    %v2092 = vsub.s32 %v2089, %v2091
    %v2093 = vrot.slane %v2065, %v2092
    %v2094 = vcombine.low %v2072, %v2079
    %v2095 = vcombine.low %v2086, %v2093
    %v2097 = vunpack.c.l.s4 1966171168
    %v2098 = vunpack.c.0.s8 %v2097
    %v2099 = vlaneseq
    %v2100 = vshrl.u32 %v2099, 7
    %v2101 = vsub.s32 %v2098, %v2100
    %v2102 = vrot.slane %v2094, %v2101
    %v2104 = vunpack.c.l.s4 1966171168
    %v2105 = vunpack.c.0.s8 %v2104
    %v2106 = vlaneseq
    %v2107 = vshrl.u32 %v2106, 7
    %v2108 = vsub.s32 %v2105, %v2107
    %v2109 = vrot.slane %v2095, %v2108
    %v2110 = vcombine.low %v2102, %v2109
    %v2112 = vmul.f32 %v1908, %v2110
    %v2114 = vlaneseq
    %v2115 = vshrl.u32 %v2114, 7
    %v2116 = vsub.s32 0, %v2115
    %v2117 = vrot.slane %v2112, %v2116
    %v2118 = vlaneseq
    %v2119 = vshrl.u32 %v2118, 7
    %v2120 = vsub.s32 1, %v2119
    %v2121 = vrot.slane %v2112, %v2120
    %v2122 = vlaneseq
    %v2123 = vshrl.u32 %v2122, 7
    %v2124 = vsub.s32 2, %v2123
    %v2125 = vrot.slane %v2112, %v2124
    %v2126 = vlaneseq
    %v2127 = vshrl.u32 %v2126, 7
    %v2128 = vsub.s32 3, %v2127
    %v2129 = vrot.slane %v2112, %v2128
    %v2130 = vlaneseq
    %v2131 = vshrl.u32 %v2130, 7
    %v2132 = vsub.s32 4, %v2131
    %v2133 = vrot.slane %v2112, %v2132
    %v2134 = vlaneseq
    %v2135 = vshrl.u32 %v2134, 7
    %v2136 = vsub.s32 5, %v2135
    %v2137 = vrot.slane %v2112, %v2136
    %v2138 = vlaneseq
    %v2139 = vshrl.u32 %v2138, 7
    %v2140 = vsub.s32 6, %v2139
    %v2141 = vrot.slane %v2112, %v2140
    %v2142 = vlaneseq
    %v2143 = vshrl.u32 %v2142, 7
    %v2144 = vsub.s32 7, %v2143
    %v2145 = vrot.slane %v2112, %v2144
    %v2154 = vmul.f32 %v1958, %v2117
    %v2155 = vmul.f32 %v1959, %v2121
    %v2156 = vmul.f32 %v1960, %v2125
    %v2157 = vmul.f32 %v1961, %v2129
    %v2158 = vmul.f32 %v1962, %v2133
    %v2159 = vmul.f32 %v1963, %v2137
    %v2160 = vmul.f32 %v1964, %v2141
    %v2161 = vmul.f32 %v1965, %v2145
    %v2170 = vcombine.low %v2154, %v2155
    %v2171 = vcombine.low %v2156, %v2157
    %v2172 = vcombine.low %v2158, %v2159
    %v2173 = vcombine.low %v2160, %v2161
    %v2175 = vunpack.c.l.s4 1966171168
    %v2176 = vunpack.c.0.s8 %v2175
    %v2177 = vlaneseq
    %v2178 = vshrl.u32 %v2177, 7
    %v2179 = vsub.s32 %v2176, %v2178
    %v2180 = vrot.slane %v2170, %v2179
    %v2182 = vunpack.c.l.s4 1966171168
    %v2183 = vunpack.c.0.s8 %v2182
    %v2184 = vlaneseq
    %v2185 = vshrl.u32 %v2184, 7
    %v2186 = vsub.s32 %v2183, %v2185
    %v2187 = vrot.slane %v2171, %v2186
    %v2189 = vunpack.c.l.s4 1966171168
    %v2190 = vunpack.c.0.s8 %v2189
    %v2191 = vlaneseq
    %v2192 = vshrl.u32 %v2191, 7
    %v2193 = vsub.s32 %v2190, %v2192
    %v2194 = vrot.slane %v2172, %v2193
    %v2196 = vunpack.c.l.s4 1966171168
    %v2197 = vunpack.c.0.s8 %v2196
    %v2198 = vlaneseq
    %v2199 = vshrl.u32 %v2198, 7
    %v2200 = vsub.s32 %v2197, %v2199
    %v2201 = vrot.slane %v2173, %v2200
    %v2202 = vcombine.low %v2180, %v2187
    %v2203 = vcombine.low %v2194, %v2201
    %v2205 = vunpack.c.l.s4 1966171168
    %v2206 = vunpack.c.0.s8 %v2205
    %v2207 = vlaneseq
    %v2208 = vshrl.u32 %v2207, 7
    %v2209 = vsub.s32 %v2206, %v2208
    %v2210 = vrot.slane %v2202, %v2209
    %v2212 = vunpack.c.l.s4 1966171168
    %v2213 = vunpack.c.0.s8 %v2212
    %v2214 = vlaneseq
    %v2215 = vshrl.u32 %v2214, 7
    %v2216 = vsub.s32 %v2213, %v2215
    %v2217 = vrot.slane %v2203, %v2216
    %v2218 = vcombine.low %v2210, %v2217
    %v2220 = vsub.f32 %v1909, %v2218
    %v2221 = vmul.f32 %v1656, %v2117
    %v2222 = vmul.f32 %v1658, %v2121
    %v2223 = vmul.f32 %v1738, %v2125
    %v2224 = vmul.f32 %v1740, %v2129
    %v2225 = vmul.f32 %v1820, %v2133
    %v2226 = vmul.f32 %v1822, %v2137
    %v2227 = vmul.f32 %v1902, %v2141
    %v2228 = vmul.f32 %v1904, %v2145
    %v2230 = vlaneseq
    %v2231 = vshrl.u32 %v2230, 7
    %v2232 = vsub.s32 0, %v2231
    %v2233 = vrot.slane %v2220, %v2232
    %v2234 = vlaneseq
    %v2235 = vshrl.u32 %v2234, 7
    %v2236 = vsub.s32 1, %v2235
    %v2237 = vrot.slane %v2220, %v2236
    %v2238 = vlaneseq
    %v2239 = vshrl.u32 %v2238, 7
    %v2240 = vsub.s32 2, %v2239
    %v2241 = vrot.slane %v2220, %v2240
    %v2242 = vlaneseq
    %v2243 = vshrl.u32 %v2242, 7
    %v2244 = vsub.s32 3, %v2243
    %v2245 = vrot.slane %v2220, %v2244
    %v2246 = vlaneseq
    %v2247 = vshrl.u32 %v2246, 7
    %v2248 = vsub.s32 4, %v2247
    %v2249 = vrot.slane %v2220, %v2248
    %v2250 = vlaneseq
    %v2251 = vshrl.u32 %v2250, 7
    %v2252 = vsub.s32 5, %v2251
    %v2253 = vrot.slane %v2220, %v2252
    %v2254 = vlaneseq
    %v2255 = vshrl.u32 %v2254, 7
    %v2256 = vsub.s32 6, %v2255
    %v2257 = vrot.slane %v2220, %v2256
    %v2258 = vlaneseq
    %v2259 = vshrl.u32 %v2258, 7
    %v2260 = vsub.s32 7, %v2259
    %v2261 = vrot.slane %v2220, %v2260
    %v2270 = vadd.f32 %v2221, %v2233
    %v2271 = vadd.f32 %v2222, %v2237
    %v2272 = vadd.f32 %v2223, %v2241
    %v2273 = vadd.f32 %v2224, %v2245
    %v2274 = vadd.f32 %v2225, %v2249
    %v2275 = vadd.f32 %v2226, %v2253
    %v2276 = vadd.f32 %v2227, %v2257
    %v2277 = vadd.f32 %v2228, %v2261
    %vm2278 = vcmp.gt.f32.partialorder %v2270, 0.0
    %vm2279 = vcmp.gt.f32.partialorder %v2271, 0.0
    %vm2280 = vcmp.gt.f32.partialorder %v2272, 0.0
    %vm2281 = vcmp.gt.f32.partialorder %v2273, 0.0
    %vm2282 = vcmp.gt.f32.partialorder %v2274, 0.0
    %vm2283 = vcmp.gt.f32.partialorder %v2275, 0.0
    %vm2284 = vcmp.gt.f32.partialorder %v2276, 0.0
    %vm2285 = vcmp.gt.f32.partialorder %v2277, 0.0
    %v2286 = vmul.f32 %v2270, 0.2
    %v2287 = vmul.f32 %v2271, 0.2
    %v2288 = vmul.f32 %v2272, 0.2
    %v2289 = vmul.f32 %v2273, 0.2
    %v2290 = vmul.f32 %v2274, 0.2
    %v2291 = vmul.f32 %v2275, 0.2
    %v2292 = vmul.f32 %v2276, 0.2
    %v2293 = vmul.f32 %v2277, 0.2
    %v2294 = vsel %vm2278, %v2270, %v2286
    %v2295 = vsel %vm2279, %v2271, %v2287
    %v2296 = vsel %vm2280, %v2272, %v2288
    %v2297 = vsel %vm2281, %v2273, %v2289
    %v2298 = vsel %vm2282, %v2274, %v2290
    %v2299 = vsel %vm2283, %v2275, %v2291
    %v2300 = vsel %vm2284, %v2276, %v2292
    %v2301 = vsel %vm2285, %v2277, %v2293
    %v2302 = vpack.c.bf16 %v2294, %v2294
    %v2303 = vpack.c.bf16 %v2295, %v2295
    %v2304 = vpack.c.bf16 %v2296, %v2296
    %v2305 = vpack.c.bf16 %v2297, %v2297
    %v2306 = vpack.c.bf16 %v2298, %v2298
    %v2307 = vpack.c.bf16 %v2299, %v2299
    %v2308 = vpack.c.bf16 %v2300, %v2300
    %v2309 = vpack.c.bf16 %v2301, %v2301
    %s2310 = smul.u32 4, 128
    %s2311 = smul.u32 %s2310, 1
    %s2312 = sshll.u32 %s2311, 4
    %2313 = dma.done %s111, %s2312
    %v2314 = vld [vmem:[#allocation3] sm:$0xff]
    %v2315 = vld [vmem:[#allocation3 + $0x8] sm:$0xff]
    %v2316 = vld [vmem:[#allocation3 + $0x10] sm:$0xff]
    %v2317 = vld [vmem:[#allocation3 + $0x18] sm:$0xff]
    %v2318 = vld [vmem:[#allocation3 + $0x20] sm:$0xff]
    %v2319 = vld [vmem:[#allocation3 + $0x28] sm:$0xff]
    %v2320 = vld [vmem:[#allocation3 + $0x30] sm:$0xff]
    %v2321 = vld [vmem:[#allocation3 + $0x38] sm:$0xff]
    %v2322 = vld [vmem:[#allocation3 + $0x40] sm:$0xff]
    %v2323 = vld [vmem:[#allocation3 + $0x48] sm:$0xff]
    %v2324 = vld [vmem:[#allocation3 + $0x50] sm:$0xff]
    %v2325 = vld [vmem:[#allocation3 + $0x58] sm:$0xff]
    %v2326 = vld [vmem:[#allocation3 + $0x60] sm:$0xff]
    %v2327 = vld [vmem:[#allocation3 + $0x68] sm:$0xff]
    %v2328 = vld [vmem:[#allocation3 + $0x70] sm:$0xff]
    %v2329 = vld [vmem:[#allocation3 + $0x78] sm:$0xff]
    %v2330 = vld [vmem:[#allocation3 + $0x80] sm:$0xff]
    %v2331 = vld [vmem:[#allocation3 + $0x88] sm:$0xff]
    %v2332 = vld [vmem:[#allocation3 + $0x90] sm:$0xff]
    %v2333 = vld [vmem:[#allocation3 + $0x98] sm:$0xff]
    %v2334 = vld [vmem:[#allocation3 + $0xa0] sm:$0xff]
    %v2335 = vld [vmem:[#allocation3 + $0xa8] sm:$0xff]
    %v2336 = vld [vmem:[#allocation3 + $0xb0] sm:$0xff]
    %v2337 = vld [vmem:[#allocation3 + $0xb8] sm:$0xff]
    %v2338 = vld [vmem:[#allocation3 + $0xc0] sm:$0xff]
    %v2339 = vld [vmem:[#allocation3 + $0xc8] sm:$0xff]
    %v2340 = vld [vmem:[#allocation3 + $0xd0] sm:$0xff]
    %v2341 = vld [vmem:[#allocation3 + $0xd8] sm:$0xff]
    %v2342 = vld [vmem:[#allocation3 + $0xe0] sm:$0xff]
    %v2343 = vld [vmem:[#allocation3 + $0xe8] sm:$0xff]
    %v2344 = vld [vmem:[#allocation3 + $0xf0] sm:$0xff]
    %v2345 = vld [vmem:[#allocation3 + $0xf8] sm:$0xff]
    %v2346 = vld [vmem:[#allocation3 + $0x100] sm:$0xff]
    %v2347 = vld [vmem:[#allocation3 + $0x108] sm:$0xff]
    %v2348 = vld [vmem:[#allocation3 + $0x110] sm:$0xff]
    %v2349 = vld [vmem:[#allocation3 + $0x118] sm:$0xff]
    %v2350 = vld [vmem:[#allocation3 + $0x120] sm:$0xff]
    %v2351 = vld [vmem:[#allocation3 + $0x128] sm:$0xff]
    %v2352 = vld [vmem:[#allocation3 + $0x130] sm:$0xff]
    %v2353 = vld [vmem:[#allocation3 + $0x138] sm:$0xff]
    %v2354 = vld [vmem:[#allocation3 + $0x140] sm:$0xff]
    %v2355 = vld [vmem:[#allocation3 + $0x148] sm:$0xff]
    %v2356 = vld [vmem:[#allocation3 + $0x150] sm:$0xff]
    %v2357 = vld [vmem:[#allocation3 + $0x158] sm:$0xff]
    %v2358 = vld [vmem:[#allocation3 + $0x160] sm:$0xff]
    %v2359 = vld [vmem:[#allocation3 + $0x168] sm:$0xff]
    %v2360 = vld [vmem:[#allocation3 + $0x170] sm:$0xff]
    %v2361 = vld [vmem:[#allocation3 + $0x178] sm:$0xff]
    %v2362 = vld [vmem:[#allocation3 + $0x180] sm:$0xff]
    %v2363 = vld [vmem:[#allocation3 + $0x188] sm:$0xff]
    %v2364 = vld [vmem:[#allocation3 + $0x190] sm:$0xff]
    %v2365 = vld [vmem:[#allocation3 + $0x198] sm:$0xff]
    %v2366 = vld [vmem:[#allocation3 + $0x1a0] sm:$0xff]
    %v2367 = vld [vmem:[#allocation3 + $0x1a8] sm:$0xff]
    %v2368 = vld [vmem:[#allocation3 + $0x1b0] sm:$0xff]
    %v2369 = vld [vmem:[#allocation3 + $0x1b8] sm:$0xff]
    %v2370 = vld [vmem:[#allocation3 + $0x1c0] sm:$0xff]
    %v2371 = vld [vmem:[#allocation3 + $0x1c8] sm:$0xff]
    %v2372 = vld [vmem:[#allocation3 + $0x1d0] sm:$0xff]
    %v2373 = vld [vmem:[#allocation3 + $0x1d8] sm:$0xff]
    %v2374 = vld [vmem:[#allocation3 + $0x1e0] sm:$0xff]
    %v2375 = vld [vmem:[#allocation3 + $0x1e8] sm:$0xff]
    %v2376 = vld [vmem:[#allocation3 + $0x1f0] sm:$0xff]
    %v2377 = vld [vmem:[#allocation3 + $0x1f8] sm:$0xff]
    %v2378 = vld [vmem:[#allocation5 + $0x2b] sm:$0x1]
    %v2380 = vlaneseq
    %v2381 = vshrl.u32 %v2380, 7
    %v2382 = vsub.s32 0, %v2381
    %v2383 = vrot.slane %v2378, %v2382
    %2385 = vmatprep.subr.bf16.mxu0 0
    %2386 = vmatpush1.bf16.msra.mxu0 %v2314
    %2387 = vmatprep.subr.bf16.mxu0 0
    %2388 = vmatpush1.bf16.msra.mxu0 %v2315
    %2389 = vmatprep.subr.bf16.mxu0 0
    %2390 = vmatpush1.bf16.msra.mxu0 %v2316
    %2391 = vmatprep.subr.bf16.mxu0 0
    %2392 = vmatpush1.bf16.msra.mxu0 %v2317
    %2393 = vmatprep.subr.bf16.mxu0 0
    %2394 = vmatpush1.bf16.msra.mxu0 %v2318
    %2395 = vmatprep.subr.bf16.mxu0 0
    %2396 = vmatpush1.bf16.msra.mxu0 %v2319
    %2397 = vmatprep.subr.bf16.mxu0 0
    %2398 = vmatpush1.bf16.msra.mxu0 %v2320
    %2399 = vmatprep.subr.bf16.mxu0 0
    %2400 = vmatpush1.bf16.msra.mxu0 %v2321
    %2401 = vmatprep.subr.bf16.mxu0 0
    %2402 = vmatpush1.bf16.msra.mxu0 %v2322
    %2403 = vmatprep.subr.bf16.mxu0 0
    %2404 = vmatpush1.bf16.msra.mxu0 %v2323
    %2405 = vmatprep.subr.bf16.mxu0 0
    %2406 = vmatpush1.bf16.msra.mxu0 %v2324
    %2407 = vmatprep.subr.bf16.mxu0 0
    %2408 = vmatpush1.bf16.msra.mxu0 %v2325
    %2409 = vmatprep.subr.bf16.mxu0 0
    %2410 = vmatpush1.bf16.msra.mxu0 %v2326
    %2411 = vmatprep.subr.bf16.mxu0 0
    %2412 = vmatpush1.bf16.msra.mxu0 %v2327
    %2413 = vmatprep.subr.bf16.mxu0 0
    %2414 = vmatpush1.bf16.msra.mxu0 %v2328
    %2415 = vmatprep.subr.bf16.mxu0 0
    %2416 = vmatpush1.bf16.msra.mxu0 %v2329
    %2417 = vmatprep.mubr.bf16.mxu0 %v2303
    %2418 = vmatmul.mubr.bf16.gmra.mrb[0].mxu0 %v2302
    %v2419 = vpop.f32.mrb[0].mxu0
    %v2420 = vadd.f32 %v2383, %v2419
    %v2421 = vpop.f32.mrb[0].mxu0
    %v2422 = vpop.f32.mrb[0].mxu0
    %v2423 = vpop.f32.mrb[0].mxu0
    %2424 = vdwg.mxu0
    %2425 = vmatprep.subr.bf16.mxu0 0
    %2426 = vmatpush1.bf16.msra.mxu0 %v2330
    %2427 = vmatprep.subr.bf16.mxu0 0
    %2428 = vmatpush1.bf16.msra.mxu0 %v2331
    %2429 = vmatprep.subr.bf16.mxu0 0
    %2430 = vmatpush1.bf16.msra.mxu0 %v2332
    %2431 = vmatprep.subr.bf16.mxu0 0
    %2432 = vmatpush1.bf16.msra.mxu0 %v2333
    %2433 = vmatprep.subr.bf16.mxu0 0
    %2434 = vmatpush1.bf16.msra.mxu0 %v2334
    %2435 = vmatprep.subr.bf16.mxu0 0
    %2436 = vmatpush1.bf16.msra.mxu0 %v2335
    %2437 = vmatprep.subr.bf16.mxu0 0
    %2438 = vmatpush1.bf16.msra.mxu0 %v2336
    %2439 = vmatprep.subr.bf16.mxu0 0
    %2440 = vmatpush1.bf16.msra.mxu0 %v2337
    %2441 = vmatprep.subr.bf16.mxu0 0
    %2442 = vmatpush1.bf16.msra.mxu0 %v2338
    %2443 = vmatprep.subr.bf16.mxu0 0
    %2444 = vmatpush1.bf16.msra.mxu0 %v2339
    %2445 = vmatprep.subr.bf16.mxu0 0
    %2446 = vmatpush1.bf16.msra.mxu0 %v2340
    %2447 = vmatprep.subr.bf16.mxu0 0
    %2448 = vmatpush1.bf16.msra.mxu0 %v2341
    %2449 = vmatprep.subr.bf16.mxu0 0
    %2450 = vmatpush1.bf16.msra.mxu0 %v2342
    %2451 = vmatprep.subr.bf16.mxu0 0
    %2452 = vmatpush1.bf16.msra.mxu0 %v2343
    %2453 = vmatprep.subr.bf16.mxu0 0
    %2454 = vmatpush1.bf16.msra.mxu0 %v2344
    %2455 = vmatprep.subr.bf16.mxu0 0
    %2456 = vmatpush1.bf16.msra.mxu0 %v2345
    %2457 = vmatprep.mubr.bf16.mxu0 %v2305
    %2458 = vmatmul.mubr.bf16.gmra.mrb[0].mxu0 %v2304
    %v2459 = vpop.f32.mrb[0].mxu0
    %v2460 = vadd.f32 %v2420, %v2459
    %v2461 = vpop.f32.mrb[0].mxu0
    %v2462 = vpop.f32.mrb[0].mxu0
    %v2463 = vpop.f32.mrb[0].mxu0
    %2464 = vdwg.mxu0
    %2465 = vmatprep.subr.bf16.mxu0 0
    %2466 = vmatpush1.bf16.msra.mxu0 %v2346
    %2467 = vmatprep.subr.bf16.mxu0 0
    %2468 = vmatpush1.bf16.msra.mxu0 %v2347
    %2469 = vmatprep.subr.bf16.mxu0 0
    %2470 = vmatpush1.bf16.msra.mxu0 %v2348
    %2471 = vmatprep.subr.bf16.mxu0 0
    %2472 = vmatpush1.bf16.msra.mxu0 %v2349
    %2473 = vmatprep.subr.bf16.mxu0 0
    %2474 = vmatpush1.bf16.msra.mxu0 %v2350
    %2475 = vmatprep.subr.bf16.mxu0 0
    %2476 = vmatpush1.bf16.msra.mxu0 %v2351
    %2477 = vmatprep.subr.bf16.mxu0 0
    %2478 = vmatpush1.bf16.msra.mxu0 %v2352
    %2479 = vmatprep.subr.bf16.mxu0 0
    %2480 = vmatpush1.bf16.msra.mxu0 %v2353
    %2481 = vmatprep.subr.bf16.mxu0 0
    %2482 = vmatpush1.bf16.msra.mxu0 %v2354
    %2483 = vmatprep.subr.bf16.mxu0 0
    %2484 = vmatpush1.bf16.msra.mxu0 %v2355
    %2485 = vmatprep.subr.bf16.mxu0 0
    %2486 = vmatpush1.bf16.msra.mxu0 %v2356
    %2487 = vmatprep.subr.bf16.mxu0 0
    %2488 = vmatpush1.bf16.msra.mxu0 %v2357
    %2489 = vmatprep.subr.bf16.mxu0 0
    %2490 = vmatpush1.bf16.msra.mxu0 %v2358
    %2491 = vmatprep.subr.bf16.mxu0 0
    %2492 = vmatpush1.bf16.msra.mxu0 %v2359
    %2493 = vmatprep.subr.bf16.mxu0 0
    %2494 = vmatpush1.bf16.msra.mxu0 %v2360
    %2495 = vmatprep.subr.bf16.mxu0 0
    %2496 = vmatpush1.bf16.msra.mxu0 %v2361
    %2497 = vmatprep.mubr.bf16.mxu0 %v2307
    %2498 = vmatmul.mubr.bf16.gmra.mrb[0].mxu0 %v2306
    %v2499 = vpop.f32.mrb[0].mxu0
    %v2500 = vadd.f32 %v2460, %v2499
    %v2501 = vpop.f32.mrb[0].mxu0
    %v2502 = vpop.f32.mrb[0].mxu0
    %v2503 = vpop.f32.mrb[0].mxu0
    %2504 = vdwg.mxu0
    %2505 = vmatprep.subr.bf16.mxu0 0
    %2506 = vmatpush1.bf16.msra.mxu0 %v2362
    %2507 = vmatprep.subr.bf16.mxu0 0
    %2508 = vmatpush1.bf16.msra.mxu0 %v2363
    %2509 = vmatprep.subr.bf16.mxu0 0
    %2510 = vmatpush1.bf16.msra.mxu0 %v2364
    %2511 = vmatprep.subr.bf16.mxu0 0
    %2512 = vmatpush1.bf16.msra.mxu0 %v2365
    %2513 = vmatprep.subr.bf16.mxu0 0
    %2514 = vmatpush1.bf16.msra.mxu0 %v2366
    %2515 = vmatprep.subr.bf16.mxu0 0
    %2516 = vmatpush1.bf16.msra.mxu0 %v2367
    %2517 = vmatprep.subr.bf16.mxu0 0
    %2518 = vmatpush1.bf16.msra.mxu0 %v2368
    %2519 = vmatprep.subr.bf16.mxu0 0
    %2520 = vmatpush1.bf16.msra.mxu0 %v2369
    %2521 = vmatprep.subr.bf16.mxu0 0
    %2522 = vmatpush1.bf16.msra.mxu0 %v2370
    %2523 = vmatprep.subr.bf16.mxu0 0
    %2524 = vmatpush1.bf16.msra.mxu0 %v2371
    %2525 = vmatprep.subr.bf16.mxu0 0
    %2526 = vmatpush1.bf16.msra.mxu0 %v2372
    %2527 = vmatprep.subr.bf16.mxu0 0
    %2528 = vmatpush1.bf16.msra.mxu0 %v2373
    %2529 = vmatprep.subr.bf16.mxu0 0
    %2530 = vmatpush1.bf16.msra.mxu0 %v2374
    %2531 = vmatprep.subr.bf16.mxu0 0
    %2532 = vmatpush1.bf16.msra.mxu0 %v2375
    %2533 = vmatprep.subr.bf16.mxu0 0
    %2534 = vmatpush1.bf16.msra.mxu0 %v2376
    %2535 = vmatprep.subr.bf16.mxu0 0
    %2536 = vmatpush1.bf16.msra.mxu0 %v2377
    %2537 = vmatprep.mubr.bf16.mxu0 %v2309
    %2538 = vmatmul.mubr.bf16.gmra.mrb[0].mxu0 %v2308
    %v2539 = vpop.f32.mrb[0].mxu0
    %v2540 = vadd.f32 %v2500, %v2539
    %v2541 = vpop.f32.mrb[0].mxu0
    %v2542 = vpop.f32.mrb[0].mxu0
    %v2543 = vpop.f32.mrb[0].mxu0
    %2544 = vdwg.mxu0
    %v2545 = vtanh.pop %v2540
    %2546 = vst [vmem:[%s7] sm:$0xff] %v2545
    %s2547 = sshll.u32 %s2311, 4
    %2548 = dma.done %s125, %s2547
    %v2549 = vld [vmem:[%s124] sm:$0xff]
    %v2550 = vld [vmem:[%s124 + $0x8] sm:$0xff]
    %v2551 = vld [vmem:[%s124 + $0x10] sm:$0xff]
    %v2552 = vld [vmem:[%s124 + $0x18] sm:$0xff]
    %v2553 = vld [vmem:[%s124 + $0x20] sm:$0xff]
    %v2554 = vld [vmem:[%s124 + $0x28] sm:$0xff]
    %v2555 = vld [vmem:[%s124 + $0x30] sm:$0xff]
    %v2556 = vld [vmem:[%s124 + $0x38] sm:$0xff]
    %v2557 = vld [vmem:[%s124 + $0x40] sm:$0xff]
    %v2558 = vld [vmem:[%s124 + $0x48] sm:$0xff]
    %v2559 = vld [vmem:[%s124 + $0x50] sm:$0xff]
    %v2560 = vld [vmem:[%s124 + $0x58] sm:$0xff]
    %v2561 = vld [vmem:[%s124 + $0x60] sm:$0xff]
    %v2562 = vld [vmem:[%s124 + $0x68] sm:$0xff]
    %v2563 = vld [vmem:[%s124 + $0x70] sm:$0xff]
    %v2564 = vld [vmem:[%s124 + $0x78] sm:$0xff]
    %v2565 = vld [vmem:[%s124 + $0x80] sm:$0xff]
    %v2566 = vld [vmem:[%s124 + $0x88] sm:$0xff]
    %v2567 = vld [vmem:[%s124 + $0x90] sm:$0xff]
    %v2568 = vld [vmem:[%s124 + $0x98] sm:$0xff]
    %v2569 = vld [vmem:[%s124 + $0xa0] sm:$0xff]
    %v2570 = vld [vmem:[%s124 + $0xa8] sm:$0xff]
    %v2571 = vld [vmem:[%s124 + $0xb0] sm:$0xff]
    %v2572 = vld [vmem:[%s124 + $0xb8] sm:$0xff]
    %v2573 = vld [vmem:[%s124 + $0xc0] sm:$0xff]
    %v2574 = vld [vmem:[%s124 + $0xc8] sm:$0xff]
    %v2575 = vld [vmem:[%s124 + $0xd0] sm:$0xff]
    %v2576 = vld [vmem:[%s124 + $0xd8] sm:$0xff]
    %v2577 = vld [vmem:[%s124 + $0xe0] sm:$0xff]
    %v2578 = vld [vmem:[%s124 + $0xe8] sm:$0xff]
    %v2579 = vld [vmem:[%s124 + $0xf0] sm:$0xff]
    %v2580 = vld [vmem:[%s124 + $0xf8] sm:$0xff]
    %v2581 = vld [vmem:[%s124 + $0x100] sm:$0xff]
    %v2582 = vld [vmem:[%s124 + $0x108] sm:$0xff]
    %v2583 = vld [vmem:[%s124 + $0x110] sm:$0xff]
    %v2584 = vld [vmem:[%s124 + $0x118] sm:$0xff]
    %v2585 = vld [vmem:[%s124 + $0x120] sm:$0xff]
    %v2586 = vld [vmem:[%s124 + $0x128] sm:$0xff]
    %v2587 = vld [vmem:[%s124 + $0x130] sm:$0xff]
    %v2588 = vld [vmem:[%s124 + $0x138] sm:$0xff]
    %v2589 = vld [vmem:[%s124 + $0x140] sm:$0xff]
    %v2590 = vld [vmem:[%s124 + $0x148] sm:$0xff]
    %v2591 = vld [vmem:[%s124 + $0x150] sm:$0xff]
    %v2592 = vld [vmem:[%s124 + $0x158] sm:$0xff]
    %v2593 = vld [vmem:[%s124 + $0x160] sm:$0xff]
    %v2594 = vld [vmem:[%s124 + $0x168] sm:$0xff]
    %v2595 = vld [vmem:[%s124 + $0x170] sm:$0xff]
    %v2596 = vld [vmem:[%s124 + $0x178] sm:$0xff]
    %v2597 = vld [vmem:[%s124 + $0x180] sm:$0xff]
    %v2598 = vld [vmem:[%s124 + $0x188] sm:$0xff]
    %v2599 = vld [vmem:[%s124 + $0x190] sm:$0xff]
    %v2600 = vld [vmem:[%s124 + $0x198] sm:$0xff]
    %v2601 = vld [vmem:[%s124 + $0x1a0] sm:$0xff]
    %v2602 = vld [vmem:[%s124 + $0x1a8] sm:$0xff]
    %v2603 = vld [vmem:[%s124 + $0x1b0] sm:$0xff]
    %v2604 = vld [vmem:[%s124 + $0x1b8] sm:$0xff]
    %v2605 = vld [vmem:[%s124 + $0x1c0] sm:$0xff]
    %v2606 = vld [vmem:[%s124 + $0x1c8] sm:$0xff]
    %v2607 = vld [vmem:[%s124 + $0x1d0] sm:$0xff]
    %v2608 = vld [vmem:[%s124 + $0x1d8] sm:$0xff]
    %v2609 = vld [vmem:[%s124 + $0x1e0] sm:$0xff]
    %v2610 = vld [vmem:[%s124 + $0x1e8] sm:$0xff]
    %v2611 = vld [vmem:[%s124 + $0x1f0] sm:$0xff]
    %v2612 = vld [vmem:[%s124 + $0x1f8] sm:$0xff]
    %v2613 = vld [vmem:[#allocation5 + $0x2c] sm:$0x1]
    %v2615 = vlaneseq
    %v2616 = vshrl.u32 %v2615, 7
    %v2617 = vsub.s32 0, %v2616
    %v2618 = vrot.slane %v2613, %v2617
    %2620 = vmatprep.subr.bf16.mxu0 0
    %2621 = vmatpush1.bf16.msra.mxu0 %v2549
    %2622 = vmatprep.subr.bf16.mxu0 0
    %2623 = vmatpush1.bf16.msra.mxu0 %v2550
    %2624 = vmatprep.subr.bf16.mxu0 0
    %2625 = vmatpush1.bf16.msra.mxu0 %v2551
    %2626 = vmatprep.subr.bf16.mxu0 0
    %2627 = vmatpush1.bf16.msra.mxu0 %v2552
    %2628 = vmatprep.subr.bf16.mxu0 0
    %2629 = vmatpush1.bf16.msra.mxu0 %v2553
    %2630 = vmatprep.subr.bf16.mxu0 0
    %2631 = vmatpush1.bf16.msra.mxu0 %v2554
    %2632 = vmatprep.subr.bf16.mxu0 0
    %2633 = vmatpush1.bf16.msra.mxu0 %v2555
    %2634 = vmatprep.subr.bf16.mxu0 0
    %2635 = vmatpush1.bf16.msra.mxu0 %v2556
    %2636 = vmatprep.subr.bf16.mxu0 0
    %2637 = vmatpush1.bf16.msra.mxu0 %v2557
    %2638 = vmatprep.subr.bf16.mxu0 0
    %2639 = vmatpush1.bf16.msra.mxu0 %v2558
    %2640 = vmatprep.subr.bf16.mxu0 0
    %2641 = vmatpush1.bf16.msra.mxu0 %v2559
    %2642 = vmatprep.subr.bf16.mxu0 0
    %2643 = vmatpush1.bf16.msra.mxu0 %v2560
    %2644 = vmatprep.subr.bf16.mxu0 0
    %2645 = vmatpush1.bf16.msra.mxu0 %v2561
    %2646 = vmatprep.subr.bf16.mxu0 0
    %2647 = vmatpush1.bf16.msra.mxu0 %v2562
    %2648 = vmatprep.subr.bf16.mxu0 0
    %2649 = vmatpush1.bf16.msra.mxu0 %v2563
    %2650 = vmatprep.subr.bf16.mxu0 0
    %2651 = vmatpush1.bf16.msra.mxu0 %v2564
    %2652 = vmatprep.mubr.bf16.mxu0 %v2303
    %2653 = vmatmul.mubr.bf16.gmra.mrb[0].mxu0 %v2302
    %v2654 = vpop.f32.mrb[0].mxu0
    %v2655 = vadd.f32 %v2618, %v2654
    %v2656 = vpop.f32.mrb[0].mxu0
    %v2657 = vpop.f32.mrb[0].mxu0
    %v2658 = vpop.f32.mrb[0].mxu0
    %2659 = vdwg.mxu0
    %2660 = vmatprep.subr.bf16.mxu0 0
    %2661 = vmatpush1.bf16.msra.mxu0 %v2565
    %2662 = vmatprep.subr.bf16.mxu0 0
    %2663 = vmatpush1.bf16.msra.mxu0 %v2566
    %2664 = vmatprep.subr.bf16.mxu0 0
    %2665 = vmatpush1.bf16.msra.mxu0 %v2567
    %2666 = vmatprep.subr.bf16.mxu0 0
    %2667 = vmatpush1.bf16.msra.mxu0 %v2568
    %2668 = vmatprep.subr.bf16.mxu0 0
    %2669 = vmatpush1.bf16.msra.mxu0 %v2569
    %2670 = vmatprep.subr.bf16.mxu0 0
    %2671 = vmatpush1.bf16.msra.mxu0 %v2570
    %2672 = vmatprep.subr.bf16.mxu0 0
    %2673 = vmatpush1.bf16.msra.mxu0 %v2571
    %2674 = vmatprep.subr.bf16.mxu0 0
    %2675 = vmatpush1.bf16.msra.mxu0 %v2572
    %2676 = vmatprep.subr.bf16.mxu0 0
    %2677 = vmatpush1.bf16.msra.mxu0 %v2573
    %2678 = vmatprep.subr.bf16.mxu0 0
    %2679 = vmatpush1.bf16.msra.mxu0 %v2574
    %2680 = vmatprep.subr.bf16.mxu0 0
    %2681 = vmatpush1.bf16.msra.mxu0 %v2575
    %2682 = vmatprep.subr.bf16.mxu0 0
    %2683 = vmatpush1.bf16.msra.mxu0 %v2576
    %2684 = vmatprep.subr.bf16.mxu0 0
    %2685 = vmatpush1.bf16.msra.mxu0 %v2577
    %2686 = vmatprep.subr.bf16.mxu0 0
    %2687 = vmatpush1.bf16.msra.mxu0 %v2578
    %2688 = vmatprep.subr.bf16.mxu0 0
    %2689 = vmatpush1.bf16.msra.mxu0 %v2579
    %2690 = vmatprep.subr.bf16.mxu0 0
    %2691 = vmatpush1.bf16.msra.mxu0 %v2580
    %2692 = vmatprep.mubr.bf16.mxu0 %v2305
    %2693 = vmatmul.mubr.bf16.gmra.mrb[0].mxu0 %v2304
    %v2694 = vpop.f32.mrb[0].mxu0
    %v2695 = vadd.f32 %v2655, %v2694
    %v2696 = vpop.f32.mrb[0].mxu0
    %v2697 = vpop.f32.mrb[0].mxu0
    %v2698 = vpop.f32.mrb[0].mxu0
    %2699 = vdwg.mxu0
    %2700 = vmatprep.subr.bf16.mxu0 0
    %2701 = vmatpush1.bf16.msra.mxu0 %v2581
    %2702 = vmatprep.subr.bf16.mxu0 0
    %2703 = vmatpush1.bf16.msra.mxu0 %v2582
    %2704 = vmatprep.subr.bf16.mxu0 0
    %2705 = vmatpush1.bf16.msra.mxu0 %v2583
    %2706 = vmatprep.subr.bf16.mxu0 0
    %2707 = vmatpush1.bf16.msra.mxu0 %v2584
    %2708 = vmatprep.subr.bf16.mxu0 0
    %2709 = vmatpush1.bf16.msra.mxu0 %v2585
    %2710 = vmatprep.subr.bf16.mxu0 0
    %2711 = vmatpush1.bf16.msra.mxu0 %v2586
    %2712 = vmatprep.subr.bf16.mxu0 0
    %2713 = vmatpush1.bf16.msra.mxu0 %v2587
    %2714 = vmatprep.subr.bf16.mxu0 0
    %2715 = vmatpush1.bf16.msra.mxu0 %v2588
    %2716 = vmatprep.subr.bf16.mxu0 0
    %2717 = vmatpush1.bf16.msra.mxu0 %v2589
    %2718 = vmatprep.subr.bf16.mxu0 0
    %2719 = vmatpush1.bf16.msra.mxu0 %v2590
    %2720 = vmatprep.subr.bf16.mxu0 0
    %2721 = vmatpush1.bf16.msra.mxu0 %v2591
    %2722 = vmatprep.subr.bf16.mxu0 0
    %2723 = vmatpush1.bf16.msra.mxu0 %v2592
    %2724 = vmatprep.subr.bf16.mxu0 0
    %2725 = vmatpush1.bf16.msra.mxu0 %v2593
    %2726 = vmatprep.subr.bf16.mxu0 0
    %2727 = vmatpush1.bf16.msra.mxu0 %v2594
    %2728 = vmatprep.subr.bf16.mxu0 0
    %2729 = vmatpush1.bf16.msra.mxu0 %v2595
    %2730 = vmatprep.subr.bf16.mxu0 0
    %2731 = vmatpush1.bf16.msra.mxu0 %v2596
    %2732 = vmatprep.mubr.bf16.mxu0 %v2307
    %2733 = vmatmul.mubr.bf16.gmra.mrb[0].mxu0 %v2306
    %v2734 = vpop.f32.mrb[0].mxu0
    %v2735 = vadd.f32 %v2695, %v2734
    %v2736 = vpop.f32.mrb[0].mxu0
    %v2737 = vpop.f32.mrb[0].mxu0
    %v2738 = vpop.f32.mrb[0].mxu0
    %2739 = vdwg.mxu0
    %2740 = vmatprep.subr.bf16.mxu0 0
    %2741 = vmatpush1.bf16.msra.mxu0 %v2597
    %2742 = vmatprep.subr.bf16.mxu0 0
    %2743 = vmatpush1.bf16.msra.mxu0 %v2598
    %2744 = vmatprep.subr.bf16.mxu0 0
    %2745 = vmatpush1.bf16.msra.mxu0 %v2599
    %2746 = vmatprep.subr.bf16.mxu0 0
    %2747 = vmatpush1.bf16.msra.mxu0 %v2600
    %2748 = vmatprep.subr.bf16.mxu0 0
    %2749 = vmatpush1.bf16.msra.mxu0 %v2601
    %2750 = vmatprep.subr.bf16.mxu0 0
    %2751 = vmatpush1.bf16.msra.mxu0 %v2602
    %2752 = vmatprep.subr.bf16.mxu0 0
    %2753 = vmatpush1.bf16.msra.mxu0 %v2603
    %2754 = vmatprep.subr.bf16.mxu0 0
    %2755 = vmatpush1.bf16.msra.mxu0 %v2604
    %2756 = vmatprep.subr.bf16.mxu0 0
    %2757 = vmatpush1.bf16.msra.mxu0 %v2605
    %2758 = vmatprep.subr.bf16.mxu0 0
    %2759 = vmatpush1.bf16.msra.mxu0 %v2606
    %2760 = vmatprep.subr.bf16.mxu0 0
    %2761 = vmatpush1.bf16.msra.mxu0 %v2607
    %2762 = vmatprep.subr.bf16.mxu0 0
    %2763 = vmatpush1.bf16.msra.mxu0 %v2608
    %2764 = vmatprep.subr.bf16.mxu0 0
    %2765 = vmatpush1.bf16.msra.mxu0 %v2609
    %2766 = vmatprep.subr.bf16.mxu0 0
    %2767 = vmatpush1.bf16.msra.mxu0 %v2610
    %2768 = vmatprep.subr.bf16.mxu0 0
    %2769 = vmatpush1.bf16.msra.mxu0 %v2611
    %2770 = vmatprep.subr.bf16.mxu0 0
    %2771 = vmatpush1.bf16.msra.mxu0 %v2612
    %2772 = vmatprep.mubr.bf16.mxu0 %v2309
    %2773 = vmatmul.mubr.bf16.gmra.mrb[0].mxu0 %v2308
    %v2774 = vpop.f32.mrb[0].mxu0
    %v2775 = vadd.f32 %v2735, %v2774
    %v2776 = vpop.f32.mrb[0].mxu0
    %v2777 = vpop.f32.mrb[0].mxu0
    %v2778 = vpop.f32.mrb[0].mxu0
    %2779 = vdwg.mxu0
    %v2780 = vtanh.pop %v2775
    %2781 = vst [vmem:[%s7 + $0x8] sm:$0xff] %v2780
    %s2782 = sshll.u32 %s2311, 4
    %2783 = dma.done %s139, %s2782
    %v2784 = vld [vmem:[%s138] sm:$0xff]
    %v2785 = vld [vmem:[%s138 + $0x8] sm:$0xff]
    %v2786 = vld [vmem:[%s138 + $0x10] sm:$0xff]
    %v2787 = vld [vmem:[%s138 + $0x18] sm:$0xff]
    %v2788 = vld [vmem:[%s138 + $0x20] sm:$0xff]
    %v2789 = vld [vmem:[%s138 + $0x28] sm:$0xff]
    %v2790 = vld [vmem:[%s138 + $0x30] sm:$0xff]
    %v2791 = vld [vmem:[%s138 + $0x38] sm:$0xff]
    %v2792 = vld [vmem:[%s138 + $0x40] sm:$0xff]
    %v2793 = vld [vmem:[%s138 + $0x48] sm:$0xff]
    %v2794 = vld [vmem:[%s138 + $0x50] sm:$0xff]
    %v2795 = vld [vmem:[%s138 + $0x58] sm:$0xff]
    %v2796 = vld [vmem:[%s138 + $0x60] sm:$0xff]
    %v2797 = vld [vmem:[%s138 + $0x68] sm:$0xff]
    %v2798 = vld [vmem:[%s138 + $0x70] sm:$0xff]
    %v2799 = vld [vmem:[%s138 + $0x78] sm:$0xff]
    %v2800 = vld [vmem:[%s138 + $0x80] sm:$0xff]
    %v2801 = vld [vmem:[%s138 + $0x88] sm:$0xff]
    %v2802 = vld [vmem:[%s138 + $0x90] sm:$0xff]
    %v2803 = vld [vmem:[%s138 + $0x98] sm:$0xff]
    %v2804 = vld [vmem:[%s138 + $0xa0] sm:$0xff]
    %v2805 = vld [vmem:[%s138 + $0xa8] sm:$0xff]
    %v2806 = vld [vmem:[%s138 + $0xb0] sm:$0xff]
    %v2807 = vld [vmem:[%s138 + $0xb8] sm:$0xff]
    %v2808 = vld [vmem:[%s138 + $0xc0] sm:$0xff]
    %v2809 = vld [vmem:[%s138 + $0xc8] sm:$0xff]
    %v2810 = vld [vmem:[%s138 + $0xd0] sm:$0xff]
    %v2811 = vld [vmem:[%s138 + $0xd8] sm:$0xff]
    %v2812 = vld [vmem:[%s138 + $0xe0] sm:$0xff]
    %v2813 = vld [vmem:[%s138 + $0xe8] sm:$0xff]
    %v2814 = vld [vmem:[%s138 + $0xf0] sm:$0xff]
    %v2815 = vld [vmem:[%s138 + $0xf8] sm:$0xff]
    %v2816 = vld [vmem:[%s138 + $0x100] sm:$0xff]
    %v2817 = vld [vmem:[%s138 + $0x108] sm:$0xff]
    %v2818 = vld [vmem:[%s138 + $0x110] sm:$0xff]
    %v2819 = vld [vmem:[%s138 + $0x118] sm:$0xff]
    %v2820 = vld [vmem:[%s138 + $0x120] sm:$0xff]
    %v2821 = vld [vmem:[%s138 + $0x128] sm:$0xff]
    %v2822 = vld [vmem:[%s138 + $0x130] sm:$0xff]
    %v2823 = vld [vmem:[%s138 + $0x138] sm:$0xff]
    %v2824 = vld [vmem:[%s138 + $0x140] sm:$0xff]
    %v2825 = vld [vmem:[%s138 + $0x148] sm:$0xff]
    %v2826 = vld [vmem:[%s138 + $0x150] sm:$0xff]
    %v2827 = vld [vmem:[%s138 + $0x158] sm:$0xff]
    %v2828 = vld [vmem:[%s138 + $0x160] sm:$0xff]
    %v2829 = vld [vmem:[%s138 + $0x168] sm:$0xff]
    %v2830 = vld [vmem:[%s138 + $0x170] sm:$0xff]
    %v2831 = vld [vmem:[%s138 + $0x178] sm:$0xff]
    %v2832 = vld [vmem:[%s138 + $0x180] sm:$0xff]
    %v2833 = vld [vmem:[%s138 + $0x188] sm:$0xff]
    %v2834 = vld [vmem:[%s138 + $0x190] sm:$0xff]
    %v2835 = vld [vmem:[%s138 + $0x198] sm:$0xff]
    %v2836 = vld [vmem:[%s138 + $0x1a0] sm:$0xff]
    %v2837 = vld [vmem:[%s138 + $0x1a8] sm:$0xff]
    %v2838 = vld [vmem:[%s138 + $0x1b0] sm:$0xff]
    %v2839 = vld [vmem:[%s138 + $0x1b8] sm:$0xff]
    %v2840 = vld [vmem:[%s138 + $0x1c0] sm:$0xff]
    %v2841 = vld [vmem:[%s138 + $0x1c8] sm:$0xff]
    %v2842 = vld [vmem:[%s138 + $0x1d0] sm:$0xff]
    %v2843 = vld [vmem:[%s138 + $0x1d8] sm:$0xff]
    %v2844 = vld [vmem:[%s138 + $0x1e0] sm:$0xff]
    %v2845 = vld [vmem:[%s138 + $0x1e8] sm:$0xff]
    %v2846 = vld [vmem:[%s138 + $0x1f0] sm:$0xff]
    %v2847 = vld [vmem:[%s138 + $0x1f8] sm:$0xff]
    %v2848 = vld [vmem:[#allocation5 + $0x2d] sm:$0x1]
    %v2850 = vlaneseq
    %v2851 = vshrl.u32 %v2850, 7
    %v2852 = vsub.s32 0, %v2851
    %v2853 = vrot.slane %v2848, %v2852
    %2855 = vmatprep.subr.bf16.mxu0 0
    %2856 = vmatpush1.bf16.msra.mxu0 %v2784
    %2857 = vmatprep.subr.bf16.mxu0 0
    %2858 = vmatpush1.bf16.msra.mxu0 %v2785
    %2859 = vmatprep.subr.bf16.mxu0 0
    %2860 = vmatpush1.bf16.msra.mxu0 %v2786
    %2861 = vmatprep.subr.bf16.mxu0 0
    %2862 = vmatpush1.bf16.msra.mxu0 %v2787
    %2863 = vmatprep.subr.bf16.mxu0 0
    %2864 = vmatpush1.bf16.msra.mxu0 %v2788
    %2865 = vmatprep.subr.bf16.mxu0 0
    %2866 = vmatpush1.bf16.msra.mxu0 %v2789
    %2867 = vmatprep.subr.bf16.mxu0 0
    %2868 = vmatpush1.bf16.msra.mxu0 %v2790
    %2869 = vmatprep.subr.bf16.mxu0 0
    %2870 = vmatpush1.bf16.msra.mxu0 %v2791
    %2871 = vmatprep.subr.bf16.mxu0 0
    %2872 = vmatpush1.bf16.msra.mxu0 %v2792
    %2873 = vmatprep.subr.bf16.mxu0 0
    %2874 = vmatpush1.bf16.msra.mxu0 %v2793
    %2875 = vmatprep.subr.bf16.mxu0 0
    %2876 = vmatpush1.bf16.msra.mxu0 %v2794
    %2877 = vmatprep.subr.bf16.mxu0 0
    %2878 = vmatpush1.bf16.msra.mxu0 %v2795
    %2879 = vmatprep.subr.bf16.mxu0 0
    %2880 = vmatpush1.bf16.msra.mxu0 %v2796
    %2881 = vmatprep.subr.bf16.mxu0 0
    %2882 = vmatpush1.bf16.msra.mxu0 %v2797
    %2883 = vmatprep.subr.bf16.mxu0 0
    %2884 = vmatpush1.bf16.msra.mxu0 %v2798
    %2885 = vmatprep.subr.bf16.mxu0 0
    %2886 = vmatpush1.bf16.msra.mxu0 %v2799
    %2887 = vmatprep.mubr.bf16.mxu0 %v2303
    %2888 = vmatmul.mubr.bf16.gmra.mrb[0].mxu0 %v2302
    %v2889 = vpop.f32.mrb[0].mxu0
    %v2890 = vadd.f32 %v2853, %v2889
    %v2891 = vpop.f32.mrb[0].mxu0
    %v2892 = vpop.f32.mrb[0].mxu0
    %v2893 = vpop.f32.mrb[0].mxu0
    %2894 = vdwg.mxu0
    %2895 = vmatprep.subr.bf16.mxu0 0
    %2896 = vmatpush1.bf16.msra.mxu0 %v2800
    %2897 = vmatprep.subr.bf16.mxu0 0
    %2898 = vmatpush1.bf16.msra.mxu0 %v2801
    %2899 = vmatprep.subr.bf16.mxu0 0
    %2900 = vmatpush1.bf16.msra.mxu0 %v2802
    %2901 = vmatprep.subr.bf16.mxu0 0
    %2902 = vmatpush1.bf16.msra.mxu0 %v2803
    %2903 = vmatprep.subr.bf16.mxu0 0
    %2904 = vmatpush1.bf16.msra.mxu0 %v2804
    %2905 = vmatprep.subr.bf16.mxu0 0
    %2906 = vmatpush1.bf16.msra.mxu0 %v2805
    %2907 = vmatprep.subr.bf16.mxu0 0
    %2908 = vmatpush1.bf16.msra.mxu0 %v2806
    %2909 = vmatprep.subr.bf16.mxu0 0
    %2910 = vmatpush1.bf16.msra.mxu0 %v2807
    %2911 = vmatprep.subr.bf16.mxu0 0
    %2912 = vmatpush1.bf16.msra.mxu0 %v2808
    %2913 = vmatprep.subr.bf16.mxu0 0
    %2914 = vmatpush1.bf16.msra.mxu0 %v2809
    %2915 = vmatprep.subr.bf16.mxu0 0
    %2916 = vmatpush1.bf16.msra.mxu0 %v2810
    %2917 = vmatprep.subr.bf16.mxu0 0
    %2918 = vmatpush1.bf16.msra.mxu0 %v2811
    %2919 = vmatprep.subr.bf16.mxu0 0
    %2920 = vmatpush1.bf16.msra.mxu0 %v2812
    %2921 = vmatprep.subr.bf16.mxu0 0
    %2922 = vmatpush1.bf16.msra.mxu0 %v2813
    %2923 = vmatprep.subr.bf16.mxu0 0
    %2924 = vmatpush1.bf16.msra.mxu0 %v2814
    %2925 = vmatprep.subr.bf16.mxu0 0
    %2926 = vmatpush1.bf16.msra.mxu0 %v2815
    %2927 = vmatprep.mubr.bf16.mxu0 %v2305
    %2928 = vmatmul.mubr.bf16.gmra.mrb[0].mxu0 %v2304
    %v2929 = vpop.f32.mrb[0].mxu0
    %v2930 = vadd.f32 %v2890, %v2929
    %v2931 = vpop.f32.mrb[0].mxu0
    %v2932 = vpop.f32.mrb[0].mxu0
    %v2933 = vpop.f32.mrb[0].mxu0
    %2934 = vdwg.mxu0
    %2935 = vmatprep.subr.bf16.mxu0 0
    %2936 = vmatpush1.bf16.msra.mxu0 %v2816
    %2937 = vmatprep.subr.bf16.mxu0 0
    %2938 = vmatpush1.bf16.msra.mxu0 %v2817
    %2939 = vmatprep.subr.bf16.mxu0 0
    %2940 = vmatpush1.bf16.msra.mxu0 %v2818
    %2941 = vmatprep.subr.bf16.mxu0 0
    %2942 = vmatpush1.bf16.msra.mxu0 %v2819
    %2943 = vmatprep.subr.bf16.mxu0 0
    %2944 = vmatpush1.bf16.msra.mxu0 %v2820
    %2945 = vmatprep.subr.bf16.mxu0 0
    %2946 = vmatpush1.bf16.msra.mxu0 %v2821
    %2947 = vmatprep.subr.bf16.mxu0 0
    %2948 = vmatpush1.bf16.msra.mxu0 %v2822
    %2949 = vmatprep.subr.bf16.mxu0 0
    %2950 = vmatpush1.bf16.msra.mxu0 %v2823
    %2951 = vmatprep.subr.bf16.mxu0 0
    %2952 = vmatpush1.bf16.msra.mxu0 %v2824
    %2953 = vmatprep.subr.bf16.mxu0 0
    %2954 = vmatpush1.bf16.msra.mxu0 %v2825
    %2955 = vmatprep.subr.bf16.mxu0 0
    %2956 = vmatpush1.bf16.msra.mxu0 %v2826
    %2957 = vmatprep.subr.bf16.mxu0 0
    %2958 = vmatpush1.bf16.msra.mxu0 %v2827
    %2959 = vmatprep.subr.bf16.mxu0 0
    %2960 = vmatpush1.bf16.msra.mxu0 %v2828
    %2961 = vmatprep.subr.bf16.mxu0 0
    %2962 = vmatpush1.bf16.msra.mxu0 %v2829
    %2963 = vmatprep.subr.bf16.mxu0 0
    %2964 = vmatpush1.bf16.msra.mxu0 %v2830
    %2965 = vmatprep.subr.bf16.mxu0 0
    %2966 = vmatpush1.bf16.msra.mxu0 %v2831
    %2967 = vmatprep.mubr.bf16.mxu0 %v2307
    %2968 = vmatmul.mubr.bf16.gmra.mrb[0].mxu0 %v2306
    %v2969 = vpop.f32.mrb[0].mxu0
    %v2970 = vadd.f32 %v2930, %v2969
    %v2971 = vpop.f32.mrb[0].mxu0
    %v2972 = vpop.f32.mrb[0].mxu0
    %v2973 = vpop.f32.mrb[0].mxu0
    %2974 = vdwg.mxu0
    %2975 = vmatprep.subr.bf16.mxu0 0
    %2976 = vmatpush1.bf16.msra.mxu0 %v2832
    %2977 = vmatprep.subr.bf16.mxu0 0
    %2978 = vmatpush1.bf16.msra.mxu0 %v2833
    %2979 = vmatprep.subr.bf16.mxu0 0
    %2980 = vmatpush1.bf16.msra.mxu0 %v2834
    %2981 = vmatprep.subr.bf16.mxu0 0
    %2982 = vmatpush1.bf16.msra.mxu0 %v2835
    %2983 = vmatprep.subr.bf16.mxu0 0
    %2984 = vmatpush1.bf16.msra.mxu0 %v2836
    %2985 = vmatprep.subr.bf16.mxu0 0
    %2986 = vmatpush1.bf16.msra.mxu0 %v2837
    %2987 = vmatprep.subr.bf16.mxu0 0
    %2988 = vmatpush1.bf16.msra.mxu0 %v2838
    %2989 = vmatprep.subr.bf16.mxu0 0
    %2990 = vmatpush1.bf16.msra.mxu0 %v2839
    %2991 = vmatprep.subr.bf16.mxu0 0
    %2992 = vmatpush1.bf16.msra.mxu0 %v2840
    %2993 = vmatprep.subr.bf16.mxu0 0
    %2994 = vmatpush1.bf16.msra.mxu0 %v2841
    %2995 = vmatprep.subr.bf16.mxu0 0
    %2996 = vmatpush1.bf16.msra.mxu0 %v2842
    %2997 = vmatprep.subr.bf16.mxu0 0
    %2998 = vmatpush1.bf16.msra.mxu0 %v2843
    %2999 = vmatprep.subr.bf16.mxu0 0
    %3000 = vmatpush1.bf16.msra.mxu0 %v2844
    %3001 = vmatprep.subr.bf16.mxu0 0
    %3002 = vmatpush1.bf16.msra.mxu0 %v2845
    %3003 = vmatprep.subr.bf16.mxu0 0
    %3004 = vmatpush1.bf16.msra.mxu0 %v2846
    %3005 = vmatprep.subr.bf16.mxu0 0
    %3006 = vmatpush1.bf16.msra.mxu0 %v2847
    %3007 = vmatprep.mubr.bf16.mxu0 %v2309
    %3008 = vmatmul.mubr.bf16.gmra.mrb[0].mxu0 %v2308
    %v3009 = vpop.f32.mrb[0].mxu0
    %v3010 = vadd.f32 %v2970, %v3009
    %v3011 = vpop.f32.mrb[0].mxu0
    %v3012 = vpop.f32.mrb[0].mxu0
    %v3013 = vpop.f32.mrb[0].mxu0
    %3014 = vdwg.mxu0
    %v3015 = vtanh.pop %v3010
    %3016 = vst [vmem:[%s7 + $0x10] sm:$0xff] %v3015
    %s3017 = sshll.u32 %s2311, 4
    %3018 = dma.done %s153, %s3017
    %v3019 = vld [vmem:[%s152] sm:$0xff]
    %v3020 = vld [vmem:[%s152 + $0x8] sm:$0xff]
    %v3021 = vld [vmem:[%s152 + $0x10] sm:$0xff]
    %v3022 = vld [vmem:[%s152 + $0x18] sm:$0xff]
    %v3023 = vld [vmem:[%s152 + $0x20] sm:$0xff]
    %v3024 = vld [vmem:[%s152 + $0x28] sm:$0xff]
    %v3025 = vld [vmem:[%s152 + $0x30] sm:$0xff]
    %v3026 = vld [vmem:[%s152 + $0x38] sm:$0xff]
    %v3027 = vld [vmem:[%s152 + $0x40] sm:$0xff]
    %v3028 = vld [vmem:[%s152 + $0x48] sm:$0xff]
    %v3029 = vld [vmem:[%s152 + $0x50] sm:$0xff]
    %v3030 = vld [vmem:[%s152 + $0x58] sm:$0xff]
    %v3031 = vld [vmem:[%s152 + $0x60] sm:$0xff]
    %v3032 = vld [vmem:[%s152 + $0x68] sm:$0xff]
    %v3033 = vld [vmem:[%s152 + $0x70] sm:$0xff]
    %v3034 = vld [vmem:[%s152 + $0x78] sm:$0xff]
    %v3035 = vld [vmem:[%s152 + $0x80] sm:$0xff]
    %v3036 = vld [vmem:[%s152 + $0x88] sm:$0xff]
    %v3037 = vld [vmem:[%s152 + $0x90] sm:$0xff]
    %v3038 = vld [vmem:[%s152 + $0x98] sm:$0xff]
    %v3039 = vld [vmem:[%s152 + $0xa0] sm:$0xff]
    %v3040 = vld [vmem:[%s152 + $0xa8] sm:$0xff]
    %v3041 = vld [vmem:[%s152 + $0xb0] sm:$0xff]
    %v3042 = vld [vmem:[%s152 + $0xb8] sm:$0xff]
    %v3043 = vld [vmem:[%s152 + $0xc0] sm:$0xff]
    %v3044 = vld [vmem:[%s152 + $0xc8] sm:$0xff]
    %v3045 = vld [vmem:[%s152 + $0xd0] sm:$0xff]
    %v3046 = vld [vmem:[%s152 + $0xd8] sm:$0xff]
    %v3047 = vld [vmem:[%s152 + $0xe0] sm:$0xff]
    %v3048 = vld [vmem:[%s152 + $0xe8] sm:$0xff]
    %v3049 = vld [vmem:[%s152 + $0xf0] sm:$0xff]
    %v3050 = vld [vmem:[%s152 + $0xf8] sm:$0xff]
    %v3051 = vld [vmem:[%s152 + $0x100] sm:$0xff]
    %v3052 = vld [vmem:[%s152 + $0x108] sm:$0xff]
    %v3053 = vld [vmem:[%s152 + $0x110] sm:$0xff]
    %v3054 = vld [vmem:[%s152 + $0x118] sm:$0xff]
    %v3055 = vld [vmem:[%s152 + $0x120] sm:$0xff]
    %v3056 = vld [vmem:[%s152 + $0x128] sm:$0xff]
    %v3057 = vld [vmem:[%s152 + $0x130] sm:$0xff]
    %v3058 = vld [vmem:[%s152 + $0x138] sm:$0xff]
    %v3059 = vld [vmem:[%s152 + $0x140] sm:$0xff]
    %v3060 = vld [vmem:[%s152 + $0x148] sm:$0xff]
    %v3061 = vld [vmem:[%s152 + $0x150] sm:$0xff]
    %v3062 = vld [vmem:[%s152 + $0x158] sm:$0xff]
    %v3063 = vld [vmem:[%s152 + $0x160] sm:$0xff]
    %v3064 = vld [vmem:[%s152 + $0x168] sm:$0xff]
    %v3065 = vld [vmem:[%s152 + $0x170] sm:$0xff]
    %v3066 = vld [vmem:[%s152 + $0x178] sm:$0xff]
    %v3067 = vld [vmem:[%s152 + $0x180] sm:$0xff]
    %v3068 = vld [vmem:[%s152 + $0x188] sm:$0xff]
    %v3069 = vld [vmem:[%s152 + $0x190] sm:$0xff]
    %v3070 = vld [vmem:[%s152 + $0x198] sm:$0xff]
    %v3071 = vld [vmem:[%s152 + $0x1a0] sm:$0xff]
    %v3072 = vld [vmem:[%s152 + $0x1a8] sm:$0xff]
    %v3073 = vld [vmem:[%s152 + $0x1b0] sm:$0xff]
    %v3074 = vld [vmem:[%s152 + $0x1b8] sm:$0xff]
    %v3075 = vld [vmem:[%s152 + $0x1c0] sm:$0xff]
    %v3076 = vld [vmem:[%s152 + $0x1c8] sm:$0xff]
    %v3077 = vld [vmem:[%s152 + $0x1d0] sm:$0xff]
    %v3078 = vld [vmem:[%s152 + $0x1d8] sm:$0xff]
    %v3079 = vld [vmem:[%s152 + $0x1e0] sm:$0xff]
    %v3080 = vld [vmem:[%s152 + $0x1e8] sm:$0xff]
    %v3081 = vld [vmem:[%s152 + $0x1f0] sm:$0xff]
    %v3082 = vld [vmem:[%s152 + $0x1f8] sm:$0xff]
    %v3083 = vld [vmem:[#allocation5 + $0x2e] sm:$0x1]
    %v3085 = vlaneseq
    %v3086 = vshrl.u32 %v3085, 7
    %v3087 = vsub.s32 0, %v3086
    %v3088 = vrot.slane %v3083, %v3087
    %3090 = vmatprep.subr.bf16.mxu0 0
    %3091 = vmatpush1.bf16.msra.mxu0 %v3019
    %3092 = vmatprep.subr.bf16.mxu0 0
    %3093 = vmatpush1.bf16.msra.mxu0 %v3020
    %3094 = vmatprep.subr.bf16.mxu0 0
    %3095 = vmatpush1.bf16.msra.mxu0 %v3021
    %3096 = vmatprep.subr.bf16.mxu0 0
    %3097 = vmatpush1.bf16.msra.mxu0 %v3022
    %3098 = vmatprep.subr.bf16.mxu0 0
    %3099 = vmatpush1.bf16.msra.mxu0 %v3023
    %3100 = vmatprep.subr.bf16.mxu0 0
    %3101 = vmatpush1.bf16.msra.mxu0 %v3024
    %3102 = vmatprep.subr.bf16.mxu0 0
    %3103 = vmatpush1.bf16.msra.mxu0 %v3025
    %3104 = vmatprep.subr.bf16.mxu0 0
    %3105 = vmatpush1.bf16.msra.mxu0 %v3026
    %3106 = vmatprep.subr.bf16.mxu0 0
    %3107 = vmatpush1.bf16.msra.mxu0 %v3027
    %3108 = vmatprep.subr.bf16.mxu0 0
    %3109 = vmatpush1.bf16.msra.mxu0 %v3028
    %3110 = vmatprep.subr.bf16.mxu0 0
    %3111 = vmatpush1.bf16.msra.mxu0 %v3029
    %3112 = vmatprep.subr.bf16.mxu0 0
    %3113 = vmatpush1.bf16.msra.mxu0 %v3030
    %3114 = vmatprep.subr.bf16.mxu0 0
    %3115 = vmatpush1.bf16.msra.mxu0 %v3031
    %3116 = vmatprep.subr.bf16.mxu0 0
    %3117 = vmatpush1.bf16.msra.mxu0 %v3032
    %3118 = vmatprep.subr.bf16.mxu0 0
    %3119 = vmatpush1.bf16.msra.mxu0 %v3033
    %3120 = vmatprep.subr.bf16.mxu0 0
    %3121 = vmatpush1.bf16.msra.mxu0 %v3034
    %3122 = vmatprep.mubr.bf16.mxu0 %v2303
    %3123 = vmatmul.mubr.bf16.gmra.mrb[0].mxu0 %v2302
    %v3124 = vpop.f32.mrb[0].mxu0
    %v3125 = vadd.f32 %v3088, %v3124
    %v3126 = vpop.f32.mrb[0].mxu0
    %v3127 = vpop.f32.mrb[0].mxu0
    %v3128 = vpop.f32.mrb[0].mxu0
    %3129 = vdwg.mxu0
    %3130 = vmatprep.subr.bf16.mxu0 0
    %3131 = vmatpush1.bf16.msra.mxu0 %v3035
    %3132 = vmatprep.subr.bf16.mxu0 0
    %3133 = vmatpush1.bf16.msra.mxu0 %v3036
    %3134 = vmatprep.subr.bf16.mxu0 0
    %3135 = vmatpush1.bf16.msra.mxu0 %v3037
    %3136 = vmatprep.subr.bf16.mxu0 0
    %3137 = vmatpush1.bf16.msra.mxu0 %v3038
    %3138 = vmatprep.subr.bf16.mxu0 0
    %3139 = vmatpush1.bf16.msra.mxu0 %v3039
    %3140 = vmatprep.subr.bf16.mxu0 0
    %3141 = vmatpush1.bf16.msra.mxu0 %v3040
    %3142 = vmatprep.subr.bf16.mxu0 0
    %3143 = vmatpush1.bf16.msra.mxu0 %v3041
    %3144 = vmatprep.subr.bf16.mxu0 0
    %3145 = vmatpush1.bf16.msra.mxu0 %v3042
    %3146 = vmatprep.subr.bf16.mxu0 0
    %3147 = vmatpush1.bf16.msra.mxu0 %v3043
    %3148 = vmatprep.subr.bf16.mxu0 0
    %3149 = vmatpush1.bf16.msra.mxu0 %v3044
    %3150 = vmatprep.subr.bf16.mxu0 0
    %3151 = vmatpush1.bf16.msra.mxu0 %v3045
    %3152 = vmatprep.subr.bf16.mxu0 0
    %3153 = vmatpush1.bf16.msra.mxu0 %v3046
    %3154 = vmatprep.subr.bf16.mxu0 0
    %3155 = vmatpush1.bf16.msra.mxu0 %v3047
    %3156 = vmatprep.subr.bf16.mxu0 0
    %3157 = vmatpush1.bf16.msra.mxu0 %v3048
    %3158 = vmatprep.subr.bf16.mxu0 0
    %3159 = vmatpush1.bf16.msra.mxu0 %v3049
    %3160 = vmatprep.subr.bf16.mxu0 0
    %3161 = vmatpush1.bf16.msra.mxu0 %v3050
    %3162 = vmatprep.mubr.bf16.mxu0 %v2305
    %3163 = vmatmul.mubr.bf16.gmra.mrb[0].mxu0 %v2304
    %v3164 = vpop.f32.mrb[0].mxu0
    %v3165 = vadd.f32 %v3125, %v3164
    %v3166 = vpop.f32.mrb[0].mxu0
    %v3167 = vpop.f32.mrb[0].mxu0
    %v3168 = vpop.f32.mrb[0].mxu0
    %3169 = vdwg.mxu0
    %3170 = vmatprep.subr.bf16.mxu0 0
    %3171 = vmatpush1.bf16.msra.mxu0 %v3051
    %3172 = vmatprep.subr.bf16.mxu0 0
    %3173 = vmatpush1.bf16.msra.mxu0 %v3052
    %3174 = vmatprep.subr.bf16.mxu0 0
    %3175 = vmatpush1.bf16.msra.mxu0 %v3053
    %3176 = vmatprep.subr.bf16.mxu0 0
    %3177 = vmatpush1.bf16.msra.mxu0 %v3054
    %3178 = vmatprep.subr.bf16.mxu0 0
    %3179 = vmatpush1.bf16.msra.mxu0 %v3055
    %3180 = vmatprep.subr.bf16.mxu0 0
    %3181 = vmatpush1.bf16.msra.mxu0 %v3056
    %3182 = vmatprep.subr.bf16.mxu0 0
    %3183 = vmatpush1.bf16.msra.mxu0 %v3057
    %3184 = vmatprep.subr.bf16.mxu0 0
    %3185 = vmatpush1.bf16.msra.mxu0 %v3058
    %3186 = vmatprep.subr.bf16.mxu0 0
    %3187 = vmatpush1.bf16.msra.mxu0 %v3059
    %3188 = vmatprep.subr.bf16.mxu0 0
    %3189 = vmatpush1.bf16.msra.mxu0 %v3060
    %3190 = vmatprep.subr.bf16.mxu0 0
    %3191 = vmatpush1.bf16.msra.mxu0 %v3061
    %3192 = vmatprep.subr.bf16.mxu0 0
    %3193 = vmatpush1.bf16.msra.mxu0 %v3062
    %3194 = vmatprep.subr.bf16.mxu0 0
    %3195 = vmatpush1.bf16.msra.mxu0 %v3063
    %3196 = vmatprep.subr.bf16.mxu0 0
    %3197 = vmatpush1.bf16.msra.mxu0 %v3064
    %3198 = vmatprep.subr.bf16.mxu0 0
    %3199 = vmatpush1.bf16.msra.mxu0 %v3065
    %3200 = vmatprep.subr.bf16.mxu0 0
    %3201 = vmatpush1.bf16.msra.mxu0 %v3066
    %3202 = vmatprep.mubr.bf16.mxu0 %v2307
    %3203 = vmatmul.mubr.bf16.gmra.mrb[0].mxu0 %v2306
    %v3204 = vpop.f32.mrb[0].mxu0
    %v3205 = vadd.f32 %v3165, %v3204
    %v3206 = vpop.f32.mrb[0].mxu0
    %v3207 = vpop.f32.mrb[0].mxu0
    %v3208 = vpop.f32.mrb[0].mxu0
    %3209 = vdwg.mxu0
    %3210 = vmatprep.subr.bf16.mxu0 0
    %3211 = vmatpush1.bf16.msra.mxu0 %v3067
    %3212 = vmatprep.subr.bf16.mxu0 0
    %3213 = vmatpush1.bf16.msra.mxu0 %v3068
    %3214 = vmatprep.subr.bf16.mxu0 0
    %3215 = vmatpush1.bf16.msra.mxu0 %v3069
    %3216 = vmatprep.subr.bf16.mxu0 0
    %3217 = vmatpush1.bf16.msra.mxu0 %v3070
    %3218 = vmatprep.subr.bf16.mxu0 0
    %3219 = vmatpush1.bf16.msra.mxu0 %v3071
    %3220 = vmatprep.subr.bf16.mxu0 0
    %3221 = vmatpush1.bf16.msra.mxu0 %v3072
    %3222 = vmatprep.subr.bf16.mxu0 0
    %3223 = vmatpush1.bf16.msra.mxu0 %v3073
    %3224 = vmatprep.subr.bf16.mxu0 0
    %3225 = vmatpush1.bf16.msra.mxu0 %v3074
    %3226 = vmatprep.subr.bf16.mxu0 0
    %3227 = vmatpush1.bf16.msra.mxu0 %v3075
    %3228 = vmatprep.subr.bf16.mxu0 0
    %3229 = vmatpush1.bf16.msra.mxu0 %v3076
    %3230 = vmatprep.subr.bf16.mxu0 0
    %3231 = vmatpush1.bf16.msra.mxu0 %v3077
    %3232 = vmatprep.subr.bf16.mxu0 0
    %3233 = vmatpush1.bf16.msra.mxu0 %v3078
    %3234 = vmatprep.subr.bf16.mxu0 0
    %3235 = vmatpush1.bf16.msra.mxu0 %v3079
    %3236 = vmatprep.subr.bf16.mxu0 0
    %3237 = vmatpush1.bf16.msra.mxu0 %v3080
    %3238 = vmatprep.subr.bf16.mxu0 0
    %3239 = vmatpush1.bf16.msra.mxu0 %v3081
    %3240 = vmatprep.subr.bf16.mxu0 0
    %3241 = vmatpush1.bf16.msra.mxu0 %v3082
    %3242 = vmatprep.mubr.bf16.mxu0 %v2309
    %3243 = vmatmul.mubr.bf16.gmra.mrb[0].mxu0 %v2308
    %v3244 = vpop.f32.mrb[0].mxu0
    %v3245 = vadd.f32 %v3205, %v3244
    %v3246 = vpop.f32.mrb[0].mxu0
    %v3247 = vpop.f32.mrb[0].mxu0
    %v3248 = vpop.f32.mrb[0].mxu0
    %3249 = vdwg.mxu0
    %v3250 = vtanh.pop %v3245
    %3251 = vst [vmem:[%s7 + $0x18] sm:$0xff] %v3250
    %s3252 = sshll.u32 %s2311, 4
    %3253 = dma.done %s167, %s3252
    %v3254 = vld [vmem:[%s166] sm:$0xff]
    %v3255 = vld [vmem:[%s166 + $0x8] sm:$0xff]
    %v3256 = vld [vmem:[%s166 + $0x10] sm:$0xff]
    %v3257 = vld [vmem:[%s166 + $0x18] sm:$0xff]
    %v3258 = vld [vmem:[%s166 + $0x20] sm:$0xff]
    %v3259 = vld [vmem:[%s166 + $0x28] sm:$0xff]
    %v3260 = vld [vmem:[%s166 + $0x30] sm:$0xff]
    %v3261 = vld [vmem:[%s166 + $0x38] sm:$0xff]
    %v3262 = vld [vmem:[%s166 + $0x40] sm:$0xff]
    %v3263 = vld [vmem:[%s166 + $0x48] sm:$0xff]
    %v3264 = vld [vmem:[%s166 + $0x50] sm:$0xff]
    %v3265 = vld [vmem:[%s166 + $0x58] sm:$0xff]
    %v3266 = vld [vmem:[%s166 + $0x60] sm:$0xff]
    %v3267 = vld [vmem:[%s166 + $0x68] sm:$0xff]
    %v3268 = vld [vmem:[%s166 + $0x70] sm:$0xff]
    %v3269 = vld [vmem:[%s166 + $0x78] sm:$0xff]
    %v3270 = vld [vmem:[%s166 + $0x80] sm:$0xff]
    %v3271 = vld [vmem:[%s166 + $0x88] sm:$0xff]
    %v3272 = vld [vmem:[%s166 + $0x90] sm:$0xff]
    %v3273 = vld [vmem:[%s166 + $0x98] sm:$0xff]
    %v3274 = vld [vmem:[%s166 + $0xa0] sm:$0xff]
    %v3275 = vld [vmem:[%s166 + $0xa8] sm:$0xff]
    %v3276 = vld [vmem:[%s166 + $0xb0] sm:$0xff]
    %v3277 = vld [vmem:[%s166 + $0xb8] sm:$0xff]
    %v3278 = vld [vmem:[%s166 + $0xc0] sm:$0xff]
    %v3279 = vld [vmem:[%s166 + $0xc8] sm:$0xff]
    %v3280 = vld [vmem:[%s166 + $0xd0] sm:$0xff]
    %v3281 = vld [vmem:[%s166 + $0xd8] sm:$0xff]
    %v3282 = vld [vmem:[%s166 + $0xe0] sm:$0xff]
    %v3283 = vld [vmem:[%s166 + $0xe8] sm:$0xff]
    %v3284 = vld [vmem:[%s166 + $0xf0] sm:$0xff]
    %v3285 = vld [vmem:[%s166 + $0xf8] sm:$0xff]
    %v3286 = vld [vmem:[%s166 + $0x100] sm:$0xff]
    %v3287 = vld [vmem:[%s166 + $0x108] sm:$0xff]
    %v3288 = vld [vmem:[%s166 + $0x110] sm:$0xff]
    %v3289 = vld [vmem:[%s166 + $0x118] sm:$0xff]
    %v3290 = vld [vmem:[%s166 + $0x120] sm:$0xff]
    %v3291 = vld [vmem:[%s166 + $0x128] sm:$0xff]
    %v3292 = vld [vmem:[%s166 + $0x130] sm:$0xff]
    %v3293 = vld [vmem:[%s166 + $0x138] sm:$0xff]
    %v3294 = vld [vmem:[%s166 + $0x140] sm:$0xff]
    %v3295 = vld [vmem:[%s166 + $0x148] sm:$0xff]
    %v3296 = vld [vmem:[%s166 + $0x150] sm:$0xff]
    %v3297 = vld [vmem:[%s166 + $0x158] sm:$0xff]
    %v3298 = vld [vmem:[%s166 + $0x160] sm:$0xff]
    %v3299 = vld [vmem:[%s166 + $0x168] sm:$0xff]
    %v3300 = vld [vmem:[%s166 + $0x170] sm:$0xff]
    %v3301 = vld [vmem:[%s166 + $0x178] sm:$0xff]
    %v3302 = vld [vmem:[%s166 + $0x180] sm:$0xff]
    %v3303 = vld [vmem:[%s166 + $0x188] sm:$0xff]
    %v3304 = vld [vmem:[%s166 + $0x190] sm:$0xff]
    %v3305 = vld [vmem:[%s166 + $0x198] sm:$0xff]
    %v3306 = vld [vmem:[%s166 + $0x1a0] sm:$0xff]
    %v3307 = vld [vmem:[%s166 + $0x1a8] sm:$0xff]
    %v3308 = vld [vmem:[%s166 + $0x1b0] sm:$0xff]
    %v3309 = vld [vmem:[%s166 + $0x1b8] sm:$0xff]
    %v3310 = vld [vmem:[%s166 + $0x1c0] sm:$0xff]
    %v3311 = vld [vmem:[%s166 + $0x1c8] sm:$0xff]
    %v3312 = vld [vmem:[%s166 + $0x1d0] sm:$0xff]
    %v3313 = vld [vmem:[%s166 + $0x1d8] sm:$0xff]
    %v3314 = vld [vmem:[%s166 + $0x1e0] sm:$0xff]
    %v3315 = vld [vmem:[%s166 + $0x1e8] sm:$0xff]
    %v3316 = vld [vmem:[%s166 + $0x1f0] sm:$0xff]
    %v3317 = vld [vmem:[%s166 + $0x1f8] sm:$0xff]
    %v3318 = vld [vmem:[#allocation5 + $0x2f] sm:$0x1]
    %v3320 = vlaneseq
    %v3321 = vshrl.u32 %v3320, 7
    %v3322 = vsub.s32 0, %v3321
    %v3323 = vrot.slane %v3318, %v3322
    %3325 = vmatprep.subr.bf16.mxu0 0
    %3326 = vmatpush1.bf16.msra.mxu0 %v3254
    %3327 = vmatprep.subr.bf16.mxu0 0
    %3328 = vmatpush1.bf16.msra.mxu0 %v3255
    %3329 = vmatprep.subr.bf16.mxu0 0
    %3330 = vmatpush1.bf16.msra.mxu0 %v3256
    %3331 = vmatprep.subr.bf16.mxu0 0
    %3332 = vmatpush1.bf16.msra.mxu0 %v3257
    %3333 = vmatprep.subr.bf16.mxu0 0
    %3334 = vmatpush1.bf16.msra.mxu0 %v3258
    %3335 = vmatprep.subr.bf16.mxu0 0
    %3336 = vmatpush1.bf16.msra.mxu0 %v3259
    %3337 = vmatprep.subr.bf16.mxu0 0
    %3338 = vmatpush1.bf16.msra.mxu0 %v3260
    %3339 = vmatprep.subr.bf16.mxu0 0
    %3340 = vmatpush1.bf16.msra.mxu0 %v3261
    %3341 = vmatprep.subr.bf16.mxu0 0
    %3342 = vmatpush1.bf16.msra.mxu0 %v3262
    %3343 = vmatprep.subr.bf16.mxu0 0
    %3344 = vmatpush1.bf16.msra.mxu0 %v3263
    %3345 = vmatprep.subr.bf16.mxu0 0
    %3346 = vmatpush1.bf16.msra.mxu0 %v3264
    %3347 = vmatprep.subr.bf16.mxu0 0
    %3348 = vmatpush1.bf16.msra.mxu0 %v3265
    %3349 = vmatprep.subr.bf16.mxu0 0
    %3350 = vmatpush1.bf16.msra.mxu0 %v3266
    %3351 = vmatprep.subr.bf16.mxu0 0
    %3352 = vmatpush1.bf16.msra.mxu0 %v3267
    %3353 = vmatprep.subr.bf16.mxu0 0
    %3354 = vmatpush1.bf16.msra.mxu0 %v3268
    %3355 = vmatprep.subr.bf16.mxu0 0
    %3356 = vmatpush1.bf16.msra.mxu0 %v3269
    %3357 = vmatprep.mubr.bf16.mxu0 %v2303
    %3358 = vmatmul.mubr.bf16.gmra.mrb[0].mxu0 %v2302
    %v3359 = vpop.f32.mrb[0].mxu0
    %v3360 = vadd.f32 %v3323, %v3359
    %v3361 = vpop.f32.mrb[0].mxu0
    %v3362 = vpop.f32.mrb[0].mxu0
    %v3363 = vpop.f32.mrb[0].mxu0
    %3364 = vdwg.mxu0
    %3365 = vmatprep.subr.bf16.mxu0 0
    %3366 = vmatpush1.bf16.msra.mxu0 %v3270
    %3367 = vmatprep.subr.bf16.mxu0 0
    %3368 = vmatpush1.bf16.msra.mxu0 %v3271
    %3369 = vmatprep.subr.bf16.mxu0 0
    %3370 = vmatpush1.bf16.msra.mxu0 %v3272
    %3371 = vmatprep.subr.bf16.mxu0 0
    %3372 = vmatpush1.bf16.msra.mxu0 %v3273
    %3373 = vmatprep.subr.bf16.mxu0 0
    %3374 = vmatpush1.bf16.msra.mxu0 %v3274
    %3375 = vmatprep.subr.bf16.mxu0 0
    %3376 = vmatpush1.bf16.msra.mxu0 %v3275
    %3377 = vmatprep.subr.bf16.mxu0 0
    %3378 = vmatpush1.bf16.msra.mxu0 %v3276
    %3379 = vmatprep.subr.bf16.mxu0 0
    %3380 = vmatpush1.bf16.msra.mxu0 %v3277
    %3381 = vmatprep.subr.bf16.mxu0 0
    %3382 = vmatpush1.bf16.msra.mxu0 %v3278
    %3383 = vmatprep.subr.bf16.mxu0 0
    %3384 = vmatpush1.bf16.msra.mxu0 %v3279
    %3385 = vmatprep.subr.bf16.mxu0 0
    %3386 = vmatpush1.bf16.msra.mxu0 %v3280
    %3387 = vmatprep.subr.bf16.mxu0 0
    %3388 = vmatpush1.bf16.msra.mxu0 %v3281
    %3389 = vmatprep.subr.bf16.mxu0 0
    %3390 = vmatpush1.bf16.msra.mxu0 %v3282
    %3391 = vmatprep.subr.bf16.mxu0 0
    %3392 = vmatpush1.bf16.msra.mxu0 %v3283
    %3393 = vmatprep.subr.bf16.mxu0 0
    %3394 = vmatpush1.bf16.msra.mxu0 %v3284
    %3395 = vmatprep.subr.bf16.mxu0 0
    %3396 = vmatpush1.bf16.msra.mxu0 %v3285
    %3397 = vmatprep.mubr.bf16.mxu0 %v2305
    %3398 = vmatmul.mubr.bf16.gmra.mrb[0].mxu0 %v2304
    %v3399 = vpop.f32.mrb[0].mxu0
    %v3400 = vadd.f32 %v3360, %v3399
    %v3401 = vpop.f32.mrb[0].mxu0
    %v3402 = vpop.f32.mrb[0].mxu0
    %v3403 = vpop.f32.mrb[0].mxu0
    %3404 = vdwg.mxu0
    %3405 = vmatprep.subr.bf16.mxu0 0
    %3406 = vmatpush1.bf16.msra.mxu0 %v3286
    %3407 = vmatprep.subr.bf16.mxu0 0
    %3408 = vmatpush1.bf16.msra.mxu0 %v3287
    %3409 = vmatprep.subr.bf16.mxu0 0
    %3410 = vmatpush1.bf16.msra.mxu0 %v3288
    %3411 = vmatprep.subr.bf16.mxu0 0
    %3412 = vmatpush1.bf16.msra.mxu0 %v3289
    %3413 = vmatprep.subr.bf16.mxu0 0
    %3414 = vmatpush1.bf16.msra.mxu0 %v3290
    %3415 = vmatprep.subr.bf16.mxu0 0
    %3416 = vmatpush1.bf16.msra.mxu0 %v3291
    %3417 = vmatprep.subr.bf16.mxu0 0
    %3418 = vmatpush1.bf16.msra.mxu0 %v3292
    %3419 = vmatprep.subr.bf16.mxu0 0
    %3420 = vmatpush1.bf16.msra.mxu0 %v3293
    %3421 = vmatprep.subr.bf16.mxu0 0
    %3422 = vmatpush1.bf16.msra.mxu0 %v3294
    %3423 = vmatprep.subr.bf16.mxu0 0
    %3424 = vmatpush1.bf16.msra.mxu0 %v3295
    %3425 = vmatprep.subr.bf16.mxu0 0
    %3426 = vmatpush1.bf16.msra.mxu0 %v3296
    %3427 = vmatprep.subr.bf16.mxu0 0
    %3428 = vmatpush1.bf16.msra.mxu0 %v3297
    %3429 = vmatprep.subr.bf16.mxu0 0
    %3430 = vmatpush1.bf16.msra.mxu0 %v3298
    %3431 = vmatprep.subr.bf16.mxu0 0
    %3432 = vmatpush1.bf16.msra.mxu0 %v3299
    %3433 = vmatprep.subr.bf16.mxu0 0
    %3434 = vmatpush1.bf16.msra.mxu0 %v3300
    %3435 = vmatprep.subr.bf16.mxu0 0
    %3436 = vmatpush1.bf16.msra.mxu0 %v3301
    %3437 = vmatprep.mubr.bf16.mxu0 %v2307
    %3438 = vmatmul.mubr.bf16.gmra.mrb[0].mxu0 %v2306
    %v3439 = vpop.f32.mrb[0].mxu0
    %v3440 = vadd.f32 %v3400, %v3439
    %v3441 = vpop.f32.mrb[0].mxu0
    %v3442 = vpop.f32.mrb[0].mxu0
    %v3443 = vpop.f32.mrb[0].mxu0
    %3444 = vdwg.mxu0
    %3445 = vmatprep.subr.bf16.mxu0 0
    %3446 = vmatpush1.bf16.msra.mxu0 %v3302
    %3447 = vmatprep.subr.bf16.mxu0 0
    %3448 = vmatpush1.bf16.msra.mxu0 %v3303
    %3449 = vmatprep.subr.bf16.mxu0 0
    %3450 = vmatpush1.bf16.msra.mxu0 %v3304
    %3451 = vmatprep.subr.bf16.mxu0 0
    %3452 = vmatpush1.bf16.msra.mxu0 %v3305
    %3453 = vmatprep.subr.bf16.mxu0 0
    %3454 = vmatpush1.bf16.msra.mxu0 %v3306
    %3455 = vmatprep.subr.bf16.mxu0 0
    %3456 = vmatpush1.bf16.msra.mxu0 %v3307
    %3457 = vmatprep.subr.bf16.mxu0 0
    %3458 = vmatpush1.bf16.msra.mxu0 %v3308
    %3459 = vmatprep.subr.bf16.mxu0 0
    %3460 = vmatpush1.bf16.msra.mxu0 %v3309
    %3461 = vmatprep.subr.bf16.mxu0 0
    %3462 = vmatpush1.bf16.msra.mxu0 %v3310
    %3463 = vmatprep.subr.bf16.mxu0 0
    %3464 = vmatpush1.bf16.msra.mxu0 %v3311
    %3465 = vmatprep.subr.bf16.mxu0 0
    %3466 = vmatpush1.bf16.msra.mxu0 %v3312
    %3467 = vmatprep.subr.bf16.mxu0 0
    %3468 = vmatpush1.bf16.msra.mxu0 %v3313
    %3469 = vmatprep.subr.bf16.mxu0 0
    %3470 = vmatpush1.bf16.msra.mxu0 %v3314
    %3471 = vmatprep.subr.bf16.mxu0 0
    %3472 = vmatpush1.bf16.msra.mxu0 %v3315
    %3473 = vmatprep.subr.bf16.mxu0 0
    %3474 = vmatpush1.bf16.msra.mxu0 %v3316
    %3475 = vmatprep.subr.bf16.mxu0 0
    %3476 = vmatpush1.bf16.msra.mxu0 %v3317
    %3477 = vmatprep.mubr.bf16.mxu0 %v2309
    %3478 = vmatmul.mubr.bf16.gmra.mrb[0].mxu0 %v2308
    %v3479 = vpop.f32.mrb[0].mxu0
    %v3480 = vadd.f32 %v3440, %v3479
    %v3481 = vpop.f32.mrb[0].mxu0
    %v3482 = vpop.f32.mrb[0].mxu0
    %v3483 = vpop.f32.mrb[0].mxu0
    %3484 = vdwg.mxu0
    %v3485 = vtanh.pop %v3480
    %3486 = vst [vmem:[%s7 + $0x20] sm:$0xff] %v3485
    %s3487 = sshll.u32 %s2311, 4
    %3488 = dma.done %s181, %s3487
    %v3489 = vld [vmem:[%s180] sm:$0xff]
    %v3490 = vld [vmem:[%s180 + $0x8] sm:$0xff]
    %v3491 = vld [vmem:[%s180 + $0x10] sm:$0xff]
    %v3492 = vld [vmem:[%s180 + $0x18] sm:$0xff]
    %v3493 = vld [vmem:[%s180 + $0x20] sm:$0xff]
    %v3494 = vld [vmem:[%s180 + $0x28] sm:$0xff]
    %v3495 = vld [vmem:[%s180 + $0x30] sm:$0xff]
    %v3496 = vld [vmem:[%s180 + $0x38] sm:$0xff]
    %v3497 = vld [vmem:[%s180 + $0x40] sm:$0xff]
    %v3498 = vld [vmem:[%s180 + $0x48] sm:$0xff]
    %v3499 = vld [vmem:[%s180 + $0x50] sm:$0xff]
    %v3500 = vld [vmem:[%s180 + $0x58] sm:$0xff]
    %v3501 = vld [vmem:[%s180 + $0x60] sm:$0xff]
    %v3502 = vld [vmem:[%s180 + $0x68] sm:$0xff]
    %v3503 = vld [vmem:[%s180 + $0x70] sm:$0xff]
    %v3504 = vld [vmem:[%s180 + $0x78] sm:$0xff]
    %v3505 = vld [vmem:[%s180 + $0x80] sm:$0xff]
    %v3506 = vld [vmem:[%s180 + $0x88] sm:$0xff]
    %v3507 = vld [vmem:[%s180 + $0x90] sm:$0xff]
    %v3508 = vld [vmem:[%s180 + $0x98] sm:$0xff]
    %v3509 = vld [vmem:[%s180 + $0xa0] sm:$0xff]
    %v3510 = vld [vmem:[%s180 + $0xa8] sm:$0xff]
    %v3511 = vld [vmem:[%s180 + $0xb0] sm:$0xff]
    %v3512 = vld [vmem:[%s180 + $0xb8] sm:$0xff]
    %v3513 = vld [vmem:[%s180 + $0xc0] sm:$0xff]
    %v3514 = vld [vmem:[%s180 + $0xc8] sm:$0xff]
    %v3515 = vld [vmem:[%s180 + $0xd0] sm:$0xff]
    %v3516 = vld [vmem:[%s180 + $0xd8] sm:$0xff]
    %v3517 = vld [vmem:[%s180 + $0xe0] sm:$0xff]
    %v3518 = vld [vmem:[%s180 + $0xe8] sm:$0xff]
    %v3519 = vld [vmem:[%s180 + $0xf0] sm:$0xff]
    %v3520 = vld [vmem:[%s180 + $0xf8] sm:$0xff]
    %v3521 = vld [vmem:[%s180 + $0x100] sm:$0xff]
    %v3522 = vld [vmem:[%s180 + $0x108] sm:$0xff]
    %v3523 = vld [vmem:[%s180 + $0x110] sm:$0xff]
    %v3524 = vld [vmem:[%s180 + $0x118] sm:$0xff]
    %v3525 = vld [vmem:[%s180 + $0x120] sm:$0xff]
    %v3526 = vld [vmem:[%s180 + $0x128] sm:$0xff]
    %v3527 = vld [vmem:[%s180 + $0x130] sm:$0xff]
    %v3528 = vld [vmem:[%s180 + $0x138] sm:$0xff]
    %v3529 = vld [vmem:[%s180 + $0x140] sm:$0xff]
    %v3530 = vld [vmem:[%s180 + $0x148] sm:$0xff]
    %v3531 = vld [vmem:[%s180 + $0x150] sm:$0xff]
    %v3532 = vld [vmem:[%s180 + $0x158] sm:$0xff]
    %v3533 = vld [vmem:[%s180 + $0x160] sm:$0xff]
    %v3534 = vld [vmem:[%s180 + $0x168] sm:$0xff]
    %v3535 = vld [vmem:[%s180 + $0x170] sm:$0xff]
    %v3536 = vld [vmem:[%s180 + $0x178] sm:$0xff]
    %v3537 = vld [vmem:[%s180 + $0x180] sm:$0xff]
    %v3538 = vld [vmem:[%s180 + $0x188] sm:$0xff]
    %v3539 = vld [vmem:[%s180 + $0x190] sm:$0xff]
    %v3540 = vld [vmem:[%s180 + $0x198] sm:$0xff]
    %v3541 = vld [vmem:[%s180 + $0x1a0] sm:$0xff]
    %v3542 = vld [vmem:[%s180 + $0x1a8] sm:$0xff]
    %v3543 = vld [vmem:[%s180 + $0x1b0] sm:$0xff]
    %v3544 = vld [vmem:[%s180 + $0x1b8] sm:$0xff]
    %v3545 = vld [vmem:[%s180 + $0x1c0] sm:$0xff]
    %v3546 = vld [vmem:[%s180 + $0x1c8] sm:$0xff]
    %v3547 = vld [vmem:[%s180 + $0x1d0] sm:$0xff]
    %v3548 = vld [vmem:[%s180 + $0x1d8] sm:$0xff]
    %v3549 = vld [vmem:[%s180 + $0x1e0] sm:$0xff]
    %v3550 = vld [vmem:[%s180 + $0x1e8] sm:$0xff]
    %v3551 = vld [vmem:[%s180 + $0x1f0] sm:$0xff]
    %v3552 = vld [vmem:[%s180 + $0x1f8] sm:$0xff]
    %v3553 = vld [vmem:[#allocation5 + $0x30] sm:$0x1]
    %v3555 = vlaneseq
    %v3556 = vshrl.u32 %v3555, 7
    %v3557 = vsub.s32 0, %v3556
    %v3558 = vrot.slane %v3553, %v3557
    %3560 = vmatprep.subr.bf16.mxu0 0
    %3561 = vmatpush1.bf16.msra.mxu0 %v3489
    %3562 = vmatprep.subr.bf16.mxu0 0
    %3563 = vmatpush1.bf16.msra.mxu0 %v3490
    %3564 = vmatprep.subr.bf16.mxu0 0
    %3565 = vmatpush1.bf16.msra.mxu0 %v3491
    %3566 = vmatprep.subr.bf16.mxu0 0
    %3567 = vmatpush1.bf16.msra.mxu0 %v3492
    %3568 = vmatprep.subr.bf16.mxu0 0
    %3569 = vmatpush1.bf16.msra.mxu0 %v3493
    %3570 = vmatprep.subr.bf16.mxu0 0
    %3571 = vmatpush1.bf16.msra.mxu0 %v3494
    %3572 = vmatprep.subr.bf16.mxu0 0
    %3573 = vmatpush1.bf16.msra.mxu0 %v3495
    %3574 = vmatprep.subr.bf16.mxu0 0
    %3575 = vmatpush1.bf16.msra.mxu0 %v3496
    %3576 = vmatprep.subr.bf16.mxu0 0
    %3577 = vmatpush1.bf16.msra.mxu0 %v3497
    %3578 = vmatprep.subr.bf16.mxu0 0
    %3579 = vmatpush1.bf16.msra.mxu0 %v3498
    %3580 = vmatprep.subr.bf16.mxu0 0
    %3581 = vmatpush1.bf16.msra.mxu0 %v3499
    %3582 = vmatprep.subr.bf16.mxu0 0
    %3583 = vmatpush1.bf16.msra.mxu0 %v3500
    %3584 = vmatprep.subr.bf16.mxu0 0
    %3585 = vmatpush1.bf16.msra.mxu0 %v3501
    %3586 = vmatprep.subr.bf16.mxu0 0
    %3587 = vmatpush1.bf16.msra.mxu0 %v3502
    %3588 = vmatprep.subr.bf16.mxu0 0
    %3589 = vmatpush1.bf16.msra.mxu0 %v3503
    %3590 = vmatprep.subr.bf16.mxu0 0
    %3591 = vmatpush1.bf16.msra.mxu0 %v3504
    %3592 = vmatprep.mubr.bf16.mxu0 %v2303
    %3593 = vmatmul.mubr.bf16.gmra.mrb[0].mxu0 %v2302
    %v3594 = vpop.f32.mrb[0].mxu0
    %v3595 = vadd.f32 %v3558, %v3594
    %v3596 = vpop.f32.mrb[0].mxu0
    %v3597 = vpop.f32.mrb[0].mxu0
    %v3598 = vpop.f32.mrb[0].mxu0
    %3599 = vdwg.mxu0
    %3600 = vmatprep.subr.bf16.mxu0 0
    %3601 = vmatpush1.bf16.msra.mxu0 %v3505
    %3602 = vmatprep.subr.bf16.mxu0 0
    %3603 = vmatpush1.bf16.msra.mxu0 %v3506
    %3604 = vmatprep.subr.bf16.mxu0 0
    %3605 = vmatpush1.bf16.msra.mxu0 %v3507
    %3606 = vmatprep.subr.bf16.mxu0 0
    %3607 = vmatpush1.bf16.msra.mxu0 %v3508
    %3608 = vmatprep.subr.bf16.mxu0 0
    %3609 = vmatpush1.bf16.msra.mxu0 %v3509
    %3610 = vmatprep.subr.bf16.mxu0 0
    %3611 = vmatpush1.bf16.msra.mxu0 %v3510
    %3612 = vmatprep.subr.bf16.mxu0 0
    %3613 = vmatpush1.bf16.msra.mxu0 %v3511
    %3614 = vmatprep.subr.bf16.mxu0 0
    %3615 = vmatpush1.bf16.msra.mxu0 %v3512
    %3616 = vmatprep.subr.bf16.mxu0 0
    %3617 = vmatpush1.bf16.msra.mxu0 %v3513
    %3618 = vmatprep.subr.bf16.mxu0 0
    %3619 = vmatpush1.bf16.msra.mxu0 %v3514
    %3620 = vmatprep.subr.bf16.mxu0 0
    %3621 = vmatpush1.bf16.msra.mxu0 %v3515
    %3622 = vmatprep.subr.bf16.mxu0 0
    %3623 = vmatpush1.bf16.msra.mxu0 %v3516
    %3624 = vmatprep.subr.bf16.mxu0 0
    %3625 = vmatpush1.bf16.msra.mxu0 %v3517
    %3626 = vmatprep.subr.bf16.mxu0 0
    %3627 = vmatpush1.bf16.msra.mxu0 %v3518
    %3628 = vmatprep.subr.bf16.mxu0 0
    %3629 = vmatpush1.bf16.msra.mxu0 %v3519
    %3630 = vmatprep.subr.bf16.mxu0 0
    %3631 = vmatpush1.bf16.msra.mxu0 %v3520
    %3632 = vmatprep.mubr.bf16.mxu0 %v2305
    %3633 = vmatmul.mubr.bf16.gmra.mrb[0].mxu0 %v2304
    %v3634 = vpop.f32.mrb[0].mxu0
    %v3635 = vadd.f32 %v3595, %v3634
    %v3636 = vpop.f32.mrb[0].mxu0
    %v3637 = vpop.f32.mrb[0].mxu0
    %v3638 = vpop.f32.mrb[0].mxu0
    %3639 = vdwg.mxu0
    %3640 = vmatprep.subr.bf16.mxu0 0
    %3641 = vmatpush1.bf16.msra.mxu0 %v3521
    %3642 = vmatprep.subr.bf16.mxu0 0
    %3643 = vmatpush1.bf16.msra.mxu0 %v3522
    %3644 = vmatprep.subr.bf16.mxu0 0
    %3645 = vmatpush1.bf16.msra.mxu0 %v3523
    %3646 = vmatprep.subr.bf16.mxu0 0
    %3647 = vmatpush1.bf16.msra.mxu0 %v3524
    %3648 = vmatprep.subr.bf16.mxu0 0
    %3649 = vmatpush1.bf16.msra.mxu0 %v3525
    %3650 = vmatprep.subr.bf16.mxu0 0
    %3651 = vmatpush1.bf16.msra.mxu0 %v3526
    %3652 = vmatprep.subr.bf16.mxu0 0
    %3653 = vmatpush1.bf16.msra.mxu0 %v3527
    %3654 = vmatprep.subr.bf16.mxu0 0
    %3655 = vmatpush1.bf16.msra.mxu0 %v3528
    %3656 = vmatprep.subr.bf16.mxu0 0
    %3657 = vmatpush1.bf16.msra.mxu0 %v3529
    %3658 = vmatprep.subr.bf16.mxu0 0
    %3659 = vmatpush1.bf16.msra.mxu0 %v3530
    %3660 = vmatprep.subr.bf16.mxu0 0
    %3661 = vmatpush1.bf16.msra.mxu0 %v3531
    %3662 = vmatprep.subr.bf16.mxu0 0
    %3663 = vmatpush1.bf16.msra.mxu0 %v3532
    %3664 = vmatprep.subr.bf16.mxu0 0
    %3665 = vmatpush1.bf16.msra.mxu0 %v3533
    %3666 = vmatprep.subr.bf16.mxu0 0
    %3667 = vmatpush1.bf16.msra.mxu0 %v3534
    %3668 = vmatprep.subr.bf16.mxu0 0
    %3669 = vmatpush1.bf16.msra.mxu0 %v3535
    %3670 = vmatprep.subr.bf16.mxu0 0
    %3671 = vmatpush1.bf16.msra.mxu0 %v3536
    %3672 = vmatprep.mubr.bf16.mxu0 %v2307
    %3673 = vmatmul.mubr.bf16.gmra.mrb[0].mxu0 %v2306
    %v3674 = vpop.f32.mrb[0].mxu0
    %v3675 = vadd.f32 %v3635, %v3674
    %v3676 = vpop.f32.mrb[0].mxu0
    %v3677 = vpop.f32.mrb[0].mxu0
    %v3678 = vpop.f32.mrb[0].mxu0
    %3679 = vdwg.mxu0
    %3680 = vmatprep.subr.bf16.mxu0 0
    %3681 = vmatpush1.bf16.msra.mxu0 %v3537
    %3682 = vmatprep.subr.bf16.mxu0 0
    %3683 = vmatpush1.bf16.msra.mxu0 %v3538
    %3684 = vmatprep.subr.bf16.mxu0 0
    %3685 = vmatpush1.bf16.msra.mxu0 %v3539
    %3686 = vmatprep.subr.bf16.mxu0 0
    %3687 = vmatpush1.bf16.msra.mxu0 %v3540
    %3688 = vmatprep.subr.bf16.mxu0 0
    %3689 = vmatpush1.bf16.msra.mxu0 %v3541
    %3690 = vmatprep.subr.bf16.mxu0 0
    %3691 = vmatpush1.bf16.msra.mxu0 %v3542
    %3692 = vmatprep.subr.bf16.mxu0 0
    %3693 = vmatpush1.bf16.msra.mxu0 %v3543
    %3694 = vmatprep.subr.bf16.mxu0 0
    %3695 = vmatpush1.bf16.msra.mxu0 %v3544
    %3696 = vmatprep.subr.bf16.mxu0 0
    %3697 = vmatpush1.bf16.msra.mxu0 %v3545
    %3698 = vmatprep.subr.bf16.mxu0 0
    %3699 = vmatpush1.bf16.msra.mxu0 %v3546
    %3700 = vmatprep.subr.bf16.mxu0 0
    %3701 = vmatpush1.bf16.msra.mxu0 %v3547
    %3702 = vmatprep.subr.bf16.mxu0 0
    %3703 = vmatpush1.bf16.msra.mxu0 %v3548
    %3704 = vmatprep.subr.bf16.mxu0 0
    %3705 = vmatpush1.bf16.msra.mxu0 %v3549
    %3706 = vmatprep.subr.bf16.mxu0 0
    %3707 = vmatpush1.bf16.msra.mxu0 %v3550
    %3708 = vmatprep.subr.bf16.mxu0 0
    %3709 = vmatpush1.bf16.msra.mxu0 %v3551
    %3710 = vmatprep.subr.bf16.mxu0 0
    %3711 = vmatpush1.bf16.msra.mxu0 %v3552
    %3712 = vmatprep.mubr.bf16.mxu0 %v2309
    %3713 = vmatmul.mubr.bf16.gmra.mrb[0].mxu0 %v2308
    %v3714 = vpop.f32.mrb[0].mxu0
    %v3715 = vadd.f32 %v3675, %v3714
    %v3716 = vpop.f32.mrb[0].mxu0
    %v3717 = vpop.f32.mrb[0].mxu0
    %v3718 = vpop.f32.mrb[0].mxu0
    %3719 = vdwg.mxu0
    %v3720 = vtanh.pop %v3715
    %3721 = vst [vmem:[%s7 + $0x28] sm:$0xff] %v3720
    %s3722 = sshll.u32 %s2311, 4
    %3723 = dma.done %s195, %s3722
    %v3724 = vld [vmem:[%s194] sm:$0xff]
    %v3725 = vld [vmem:[%s194 + $0x8] sm:$0xff]
    %v3726 = vld [vmem:[%s194 + $0x10] sm:$0xff]
    %v3727 = vld [vmem:[%s194 + $0x18] sm:$0xff]
    %v3728 = vld [vmem:[%s194 + $0x20] sm:$0xff]
    %v3729 = vld [vmem:[%s194 + $0x28] sm:$0xff]
    %v3730 = vld [vmem:[%s194 + $0x30] sm:$0xff]
    %v3731 = vld [vmem:[%s194 + $0x38] sm:$0xff]
    %v3732 = vld [vmem:[%s194 + $0x40] sm:$0xff]
    %v3733 = vld [vmem:[%s194 + $0x48] sm:$0xff]
    %v3734 = vld [vmem:[%s194 + $0x50] sm:$0xff]
    %v3735 = vld [vmem:[%s194 + $0x58] sm:$0xff]
    %v3736 = vld [vmem:[%s194 + $0x60] sm:$0xff]
    %v3737 = vld [vmem:[%s194 + $0x68] sm:$0xff]
    %v3738 = vld [vmem:[%s194 + $0x70] sm:$0xff]
    %v3739 = vld [vmem:[%s194 + $0x78] sm:$0xff]
    %v3740 = vld [vmem:[%s194 + $0x80] sm:$0xff]
    %v3741 = vld [vmem:[%s194 + $0x88] sm:$0xff]
    %v3742 = vld [vmem:[%s194 + $0x90] sm:$0xff]
    %v3743 = vld [vmem:[%s194 + $0x98] sm:$0xff]
    %v3744 = vld [vmem:[%s194 + $0xa0] sm:$0xff]
    %v3745 = vld [vmem:[%s194 + $0xa8] sm:$0xff]
    %v3746 = vld [vmem:[%s194 + $0xb0] sm:$0xff]
    %v3747 = vld [vmem:[%s194 + $0xb8] sm:$0xff]
    %v3748 = vld [vmem:[%s194 + $0xc0] sm:$0xff]
    %v3749 = vld [vmem:[%s194 + $0xc8] sm:$0xff]
    %v3750 = vld [vmem:[%s194 + $0xd0] sm:$0xff]
    %v3751 = vld [vmem:[%s194 + $0xd8] sm:$0xff]
    %v3752 = vld [vmem:[%s194 + $0xe0] sm:$0xff]
    %v3753 = vld [vmem:[%s194 + $0xe8] sm:$0xff]
    %v3754 = vld [vmem:[%s194 + $0xf0] sm:$0xff]
    %v3755 = vld [vmem:[%s194 + $0xf8] sm:$0xff]
    %v3756 = vld [vmem:[%s194 + $0x100] sm:$0xff]
    %v3757 = vld [vmem:[%s194 + $0x108] sm:$0xff]
    %v3758 = vld [vmem:[%s194 + $0x110] sm:$0xff]
    %v3759 = vld [vmem:[%s194 + $0x118] sm:$0xff]
    %v3760 = vld [vmem:[%s194 + $0x120] sm:$0xff]
    %v3761 = vld [vmem:[%s194 + $0x128] sm:$0xff]
    %v3762 = vld [vmem:[%s194 + $0x130] sm:$0xff]
    %v3763 = vld [vmem:[%s194 + $0x138] sm:$0xff]
    %v3764 = vld [vmem:[%s194 + $0x140] sm:$0xff]
    %v3765 = vld [vmem:[%s194 + $0x148] sm:$0xff]
    %v3766 = vld [vmem:[%s194 + $0x150] sm:$0xff]
    %v3767 = vld [vmem:[%s194 + $0x158] sm:$0xff]
    %v3768 = vld [vmem:[%s194 + $0x160] sm:$0xff]
    %v3769 = vld [vmem:[%s194 + $0x168] sm:$0xff]
    %v3770 = vld [vmem:[%s194 + $0x170] sm:$0xff]
    %v3771 = vld [vmem:[%s194 + $0x178] sm:$0xff]
    %v3772 = vld [vmem:[%s194 + $0x180] sm:$0xff]
    %v3773 = vld [vmem:[%s194 + $0x188] sm:$0xff]
    %v3774 = vld [vmem:[%s194 + $0x190] sm:$0xff]
    %v3775 = vld [vmem:[%s194 + $0x198] sm:$0xff]
    %v3776 = vld [vmem:[%s194 + $0x1a0] sm:$0xff]
    %v3777 = vld [vmem:[%s194 + $0x1a8] sm:$0xff]
    %v3778 = vld [vmem:[%s194 + $0x1b0] sm:$0xff]
    %v3779 = vld [vmem:[%s194 + $0x1b8] sm:$0xff]
    %v3780 = vld [vmem:[%s194 + $0x1c0] sm:$0xff]
    %v3781 = vld [vmem:[%s194 + $0x1c8] sm:$0xff]
    %v3782 = vld [vmem:[%s194 + $0x1d0] sm:$0xff]
    %v3783 = vld [vmem:[%s194 + $0x1d8] sm:$0xff]
    %v3784 = vld [vmem:[%s194 + $0x1e0] sm:$0xff]
    %v3785 = vld [vmem:[%s194 + $0x1e8] sm:$0xff]
    %v3786 = vld [vmem:[%s194 + $0x1f0] sm:$0xff]
    %v3787 = vld [vmem:[%s194 + $0x1f8] sm:$0xff]
    %v3788 = vld [vmem:[#allocation5 + $0x31] sm:$0x1]
    %v3790 = vlaneseq
    %v3791 = vshrl.u32 %v3790, 7
    %v3792 = vsub.s32 0, %v3791
    %v3793 = vrot.slane %v3788, %v3792
    %3795 = vmatprep.subr.bf16.mxu0 0
    %3796 = vmatpush1.bf16.msra.mxu0 %v3724
    %3797 = vmatprep.subr.bf16.mxu0 0
    %3798 = vmatpush1.bf16.msra.mxu0 %v3725
    %3799 = vmatprep.subr.bf16.mxu0 0
    %3800 = vmatpush1.bf16.msra.mxu0 %v3726
    %3801 = vmatprep.subr.bf16.mxu0 0
    %3802 = vmatpush1.bf16.msra.mxu0 %v3727
    %3803 = vmatprep.subr.bf16.mxu0 0
    %3804 = vmatpush1.bf16.msra.mxu0 %v3728
    %3805 = vmatprep.subr.bf16.mxu0 0
    %3806 = vmatpush1.bf16.msra.mxu0 %v3729
    %3807 = vmatprep.subr.bf16.mxu0 0
    %3808 = vmatpush1.bf16.msra.mxu0 %v3730
    %3809 = vmatprep.subr.bf16.mxu0 0
    %3810 = vmatpush1.bf16.msra.mxu0 %v3731
    %3811 = vmatprep.subr.bf16.mxu0 0
    %3812 = vmatpush1.bf16.msra.mxu0 %v3732
    %3813 = vmatprep.subr.bf16.mxu0 0
    %3814 = vmatpush1.bf16.msra.mxu0 %v3733
    %3815 = vmatprep.subr.bf16.mxu0 0
    %3816 = vmatpush1.bf16.msra.mxu0 %v3734
    %3817 = vmatprep.subr.bf16.mxu0 0
    %3818 = vmatpush1.bf16.msra.mxu0 %v3735
    %3819 = vmatprep.subr.bf16.mxu0 0
    %3820 = vmatpush1.bf16.msra.mxu0 %v3736
    %3821 = vmatprep.subr.bf16.mxu0 0
    %3822 = vmatpush1.bf16.msra.mxu0 %v3737
    %3823 = vmatprep.subr.bf16.mxu0 0
    %3824 = vmatpush1.bf16.msra.mxu0 %v3738
    %3825 = vmatprep.subr.bf16.mxu0 0
    %3826 = vmatpush1.bf16.msra.mxu0 %v3739
    %3827 = vmatprep.mubr.bf16.mxu0 %v2303
    %3828 = vmatmul.mubr.bf16.gmra.mrb[0].mxu0 %v2302
    %v3829 = vpop.f32.mrb[0].mxu0
    %v3830 = vadd.f32 %v3793, %v3829
    %v3831 = vpop.f32.mrb[0].mxu0
    %v3832 = vpop.f32.mrb[0].mxu0
    %v3833 = vpop.f32.mrb[0].mxu0
    %3834 = vdwg.mxu0
    %3835 = vmatprep.subr.bf16.mxu0 0
    %3836 = vmatpush1.bf16.msra.mxu0 %v3740
    %3837 = vmatprep.subr.bf16.mxu0 0
    %3838 = vmatpush1.bf16.msra.mxu0 %v3741
    %3839 = vmatprep.subr.bf16.mxu0 0
    %3840 = vmatpush1.bf16.msra.mxu0 %v3742
    %3841 = vmatprep.subr.bf16.mxu0 0
    %3842 = vmatpush1.bf16.msra.mxu0 %v3743
    %3843 = vmatprep.subr.bf16.mxu0 0
    %3844 = vmatpush1.bf16.msra.mxu0 %v3744
    %3845 = vmatprep.subr.bf16.mxu0 0
    %3846 = vmatpush1.bf16.msra.mxu0 %v3745
    %3847 = vmatprep.subr.bf16.mxu0 0
    %3848 = vmatpush1.bf16.msra.mxu0 %v3746
    %3849 = vmatprep.subr.bf16.mxu0 0
    %3850 = vmatpush1.bf16.msra.mxu0 %v3747
    %3851 = vmatprep.subr.bf16.mxu0 0
    %3852 = vmatpush1.bf16.msra.mxu0 %v3748
    %3853 = vmatprep.subr.bf16.mxu0 0
    %3854 = vmatpush1.bf16.msra.mxu0 %v3749
    %3855 = vmatprep.subr.bf16.mxu0 0
    %3856 = vmatpush1.bf16.msra.mxu0 %v3750
    %3857 = vmatprep.subr.bf16.mxu0 0
    %3858 = vmatpush1.bf16.msra.mxu0 %v3751
    %3859 = vmatprep.subr.bf16.mxu0 0
    %3860 = vmatpush1.bf16.msra.mxu0 %v3752
    %3861 = vmatprep.subr.bf16.mxu0 0
    %3862 = vmatpush1.bf16.msra.mxu0 %v3753
    %3863 = vmatprep.subr.bf16.mxu0 0
    %3864 = vmatpush1.bf16.msra.mxu0 %v3754
    %3865 = vmatprep.subr.bf16.mxu0 0
    %3866 = vmatpush1.bf16.msra.mxu0 %v3755
    %3867 = vmatprep.mubr.bf16.mxu0 %v2305
    %3868 = vmatmul.mubr.bf16.gmra.mrb[0].mxu0 %v2304
    %v3869 = vpop.f32.mrb[0].mxu0
    %v3870 = vadd.f32 %v3830, %v3869
    %v3871 = vpop.f32.mrb[0].mxu0
    %v3872 = vpop.f32.mrb[0].mxu0
    %v3873 = vpop.f32.mrb[0].mxu0
    %3874 = vdwg.mxu0
    %3875 = vmatprep.subr.bf16.mxu0 0
    %3876 = vmatpush1.bf16.msra.mxu0 %v3756
    %3877 = vmatprep.subr.bf16.mxu0 0
    %3878 = vmatpush1.bf16.msra.mxu0 %v3757
    %3879 = vmatprep.subr.bf16.mxu0 0
    %3880 = vmatpush1.bf16.msra.mxu0 %v3758
    %3881 = vmatprep.subr.bf16.mxu0 0
    %3882 = vmatpush1.bf16.msra.mxu0 %v3759
    %3883 = vmatprep.subr.bf16.mxu0 0
    %3884 = vmatpush1.bf16.msra.mxu0 %v3760
    %3885 = vmatprep.subr.bf16.mxu0 0
    %3886 = vmatpush1.bf16.msra.mxu0 %v3761
    %3887 = vmatprep.subr.bf16.mxu0 0
    %3888 = vmatpush1.bf16.msra.mxu0 %v3762
    %3889 = vmatprep.subr.bf16.mxu0 0
    %3890 = vmatpush1.bf16.msra.mxu0 %v3763
    %3891 = vmatprep.subr.bf16.mxu0 0
    %3892 = vmatpush1.bf16.msra.mxu0 %v3764
    %3893 = vmatprep.subr.bf16.mxu0 0
    %3894 = vmatpush1.bf16.msra.mxu0 %v3765
    %3895 = vmatprep.subr.bf16.mxu0 0
    %3896 = vmatpush1.bf16.msra.mxu0 %v3766
    %3897 = vmatprep.subr.bf16.mxu0 0
    %3898 = vmatpush1.bf16.msra.mxu0 %v3767
    %3899 = vmatprep.subr.bf16.mxu0 0
    %3900 = vmatpush1.bf16.msra.mxu0 %v3768
    %3901 = vmatprep.subr.bf16.mxu0 0
    %3902 = vmatpush1.bf16.msra.mxu0 %v3769
    %3903 = vmatprep.subr.bf16.mxu0 0
    %3904 = vmatpush1.bf16.msra.mxu0 %v3770
    %3905 = vmatprep.subr.bf16.mxu0 0
    %3906 = vmatpush1.bf16.msra.mxu0 %v3771
    %3907 = vmatprep.mubr.bf16.mxu0 %v2307
    %3908 = vmatmul.mubr.bf16.gmra.mrb[0].mxu0 %v2306
    %v3909 = vpop.f32.mrb[0].mxu0
    %v3910 = vadd.f32 %v3870, %v3909
    %v3911 = vpop.f32.mrb[0].mxu0
    %v3912 = vpop.f32.mrb[0].mxu0
    %v3913 = vpop.f32.mrb[0].mxu0
    %3914 = vdwg.mxu0
    %3915 = vmatprep.subr.bf16.mxu0 0
    %3916 = vmatpush1.bf16.msra.mxu0 %v3772
    %3917 = vmatprep.subr.bf16.mxu0 0
    %3918 = vmatpush1.bf16.msra.mxu0 %v3773
    %3919 = vmatprep.subr.bf16.mxu0 0
    %3920 = vmatpush1.bf16.msra.mxu0 %v3774
    %3921 = vmatprep.subr.bf16.mxu0 0
    %3922 = vmatpush1.bf16.msra.mxu0 %v3775
    %3923 = vmatprep.subr.bf16.mxu0 0
    %3924 = vmatpush1.bf16.msra.mxu0 %v3776
    %3925 = vmatprep.subr.bf16.mxu0 0
    %3926 = vmatpush1.bf16.msra.mxu0 %v3777
    %3927 = vmatprep.subr.bf16.mxu0 0
    %3928 = vmatpush1.bf16.msra.mxu0 %v3778
    %3929 = vmatprep.subr.bf16.mxu0 0
    %3930 = vmatpush1.bf16.msra.mxu0 %v3779
    %3931 = vmatprep.subr.bf16.mxu0 0
    %3932 = vmatpush1.bf16.msra.mxu0 %v3780
    %3933 = vmatprep.subr.bf16.mxu0 0
    %3934 = vmatpush1.bf16.msra.mxu0 %v3781
    %3935 = vmatprep.subr.bf16.mxu0 0
    %3936 = vmatpush1.bf16.msra.mxu0 %v3782
    %3937 = vmatprep.subr.bf16.mxu0 0
    %3938 = vmatpush1.bf16.msra.mxu0 %v3783
    %3939 = vmatprep.subr.bf16.mxu0 0
    %3940 = vmatpush1.bf16.msra.mxu0 %v3784
    %3941 = vmatprep.subr.bf16.mxu0 0
    %3942 = vmatpush1.bf16.msra.mxu0 %v3785
    %3943 = vmatprep.subr.bf16.mxu0 0
    %3944 = vmatpush1.bf16.msra.mxu0 %v3786
    %3945 = vmatprep.subr.bf16.mxu0 0
    %3946 = vmatpush1.bf16.msra.mxu0 %v3787
    %3947 = vmatprep.mubr.bf16.mxu0 %v2309
    %3948 = vmatmul.mubr.bf16.gmra.mrb[0].mxu0 %v2308
    %v3949 = vpop.f32.mrb[0].mxu0
    %v3950 = vadd.f32 %v3910, %v3949
    %v3951 = vpop.f32.mrb[0].mxu0
    %v3952 = vpop.f32.mrb[0].mxu0
    %v3953 = vpop.f32.mrb[0].mxu0
    %3954 = vdwg.mxu0
    %v3955 = vtanh.pop %v3950
    %3956 = vst [vmem:[%s7 + $0x30] sm:$0xff] %v3955
    // Predicated region
    $region66: #{generator_forward.1} parent=1 // pred_check
      _
    $region67: #{generator_forward.1} parent=1 // pred_check_branch
      %3958 = sbr.rel (0) target = $region69
    $region68: #{generator_forward.1} parent=1 // pred_region
      _
    $region69: #{generator_forward.1} parent=1 // pred_fallthru
      _
    // Predicated region
    $region70: #{generator_forward.1} parent=1 // pred_check
      _
    $region71: #{generator_forward.1} parent=1 // pred_check_branch
      %3960 = sbr.rel (0) target = $region73
    $region72: #{generator_forward.1} parent=1 // pred_region
      _
    $region73: #{generator_forward.1} parent=1 // pred_fallthru
      _
    %3961 = vsyncpa [#allocation6], 1
    %3962 = vsyncpa [#allocation8], 1
    %3963 = vsyncpa [#allocation11], 1
  %3964 = vsyncmov [#allocation4]
  %s3965 = vpop.sfrf %3964
  %p3966 = scmp.eq.s32.totalorder %s3965, 0
  %p3967 = pneg %p3966
  %3969 = shalt.err (%p3967)
  %s3970 = scalar_lea.sflag [#allocation4], 1
  %3971 = vsyncmov %s3970
  %s3972 = vpop.sfrf %3971
  %p3973 = scmp.eq.s32.totalorder %s3972, 0
  %p3974 = pneg %p3973
  %3976 = shalt.err (%p3974)
  %s3977 = scalar_lea.sflag [#allocation4], 2
  %3978 = vsyncmov %s3977
  %s3979 = vpop.sfrf %3978
  %p3980 = scmp.eq.s32.totalorder %s3979, 0
  %p3981 = pneg %p3980
  %3983 = shalt.err (%p3981)
  %s3984 = scalar_lea.sflag [#allocation4], 3
  %3985 = vsyncmov %s3984
  %s3986 = vpop.sfrf %3985
  %p3987 = scmp.eq.s32.totalorder %s3986, 0
  %p3988 = pneg %p3987
  %3990 = shalt.err (%p3988)
  %s3991 = scalar_lea.sflag [#allocation4], 4
  %3992 = vsyncmov %s3991
  %s3993 = vpop.sfrf %3992
  %p3994 = scmp.eq.s32.totalorder %s3993, 0
  %p3995 = pneg %p3994
  %3997 = shalt.err (%p3995)
  %s3998 = scalar_lea.sflag [#allocation4], 5
  %3999 = vsyncmov %s3998
  %s4000 = vpop.sfrf %3999
  %p4001 = scmp.eq.s32.totalorder %s4000, 0
  %p4002 = pneg %p4001
  %4004 = shalt.err (%p4002)
  %s4005 = scalar_lea.sflag [#allocation4], 6
  %4006 = vsyncmov %s4005
  %s4007 = vpop.sfrf %4006
  %p4008 = scmp.eq.s32.totalorder %s4007, 0
  %p4009 = pneg %p4008
  %4011 = shalt.err (%p4009)
  %s4012 = scalar_lea.sflag [#allocation4], 7
  %4013 = vsyncmov %s4012
  %s4014 = vpop.sfrf %4013
  %p4015 = scmp.eq.s32.totalorder %s4014, 0
  %p4016 = pneg %p4015
  %4018 = shalt.err (%p4016)

</llo_original>
